<compile_context>
chip_gen: v7x
topology: tpu7x:2x2x1
jax: 0.10.0
libtpu: 0.0.40
codegen_flags: <defaults>
</compile_context>

<pallas_src>
import functools

import numpy as np
import jax
import jax.numpy as jnp
from jax import lax
from jax.experimental import pallas as pl
from jax.experimental.pallas import tpu as pltpu

SEQ_LEN = 8
INPUT_DIM = 32
HIDDEN = 32
HP = 128           # per-gate lane-aligned slot width (one full vreg lane span)
MAX_WORDS = 2      # max lexicon matches starting at one position
MAX_CELLS = 8      # max lattice cell candidates ending at one position


def _lattice_lstm_kernel(
    # --- scalar prefetch (SMEM, 1-D int32) ---
    ncells_ref,      # (seq,)        #lattice cells visible when step t reads its merge
    dest_ref,        # (seq*max_w,)  flat destination row (= d*max_c + slot) or trash row
    # --- tensor inputs (VMEM, full-array blocks) ---
    x_ref,           # (seq, D)            f32 character inputs
    we_ref,          # (seq*max_w, D)      f32 padded lexicon word embeddings
    wx_ref,          # (D, 5*HP)           f32 packed [W_ih(i,f,o,g) | AW_ih]
    bx_ref,          # (1, 5*HP)           f32 packed biases (+1 folded into the f slot)
    ww_ref,          # (D, 3*HP)           f32 packed WW_ih(i,f,g)
    bw_ref,          # (1, 3*HP)           f32 packed word biases (+1 folded into the f slot)
    whh_ref,         # (H, 7*HP)           bf16 fused [W_hh(i,f,o,g) | WW_hh(i,f,g)]
    awhh_ref,        # (H, HP)             bf16 alpha recurrent weights
    # --- outputs ---
    h_out_ref,       # (seq, HP) f32
    c_out_ref,       # (seq, HP) f32
    # --- scratch ---
    cstore,          # ((seq+1)*max_c, HP) f32 flat lattice-cell table (+ trash block at the end)
    *, hidden, seq_len, max_c, max_w,
):
    H = hidden

    # -------- prologue: input-side projections (off the recurrent critical path) --------
    xproj = jnp.dot(x_ref[...], wx_ref[...],
                    preferred_element_type=jnp.float32) + bx_ref[...]          # (seq, 5*HP)
    wproj = jnp.dot(we_ref[...], ww_ref[...],
                    preferred_element_type=jnp.float32) + bw_ref[...]          # (seq*max_w, 3*HP)

    cstore[...] = jnp.zeros(cstore.shape, jnp.float32)
    row_id = lax.broadcasted_iota(jnp.int32, (max_c, HP), 0)                   # loop-invariant

    c = jnp.zeros((1, HP), jnp.float32)
    gproj = jnp.zeros((1, 4 * HP), jnp.float32)    # h_{t-1} @ W_hh, zero for the h=0 initial state

    for t in range(seq_len):
        xp = xproj[t:t + 1, :]                                  # (1, 5*HP), static slice

        # ---- MultiInputLSTMCell gates (gproj carried from the previous step) ----
        gates = xp[:, :4 * HP] + gproj
        sg = jax.nn.sigmoid(gates[:, :3 * HP])                  # i|f|o in one full-width pass
        i_g = sg[:, 0 * HP:1 * HP]
        f_g = sg[:, 1 * HP:2 * HP]
        o_g = sg[:, 2 * HP:3 * HP]
        g_g = jnp.tanh(gates[:, 3 * HP:4 * HP])
        alpha_x = xp[:, 4 * HP:5 * HP]                          # x @ AW_ih + ab

        # ---- lattice merge over cell candidates ending at t ----
        n_c = ncells_ref[t]
        cvar = cstore[t * max_c:(t + 1) * max_c, :]             # (max_c, HP); unused rows are 0
        alpha = jax.nn.sigmoid(
            alpha_x + jnp.dot(cvar[:, :H].astype(jnp.bfloat16), awhh_ref[...],
                              preferred_element_type=jnp.float32))
        exp_a = jnp.where(row_id < n_c, jnp.exp(alpha), 0.0)    # masked exp(alpha)
        exp_i = jnp.exp(i_g)
        denom = exp_i + jnp.sum(exp_a, axis=0, keepdims=True)
        num = exp_i * g_g + jnp.sum(exp_a * cvar, axis=0, keepdims=True)
        c_lat = num * pl.reciprocal(denom, approx=True)         # denom > 1, approx is safe
        c_plain = f_g * c + i_g * g_g
        c = jnp.where(n_c > 0, c_lat, c_plain)
        h = o_g * jnp.tanh(c)

        h_out_ref[t:t + 1, :] = h
        c_out_ref[t:t + 1, :] = c

        # ---- single fused h-dependent matmul per step: [W_hh | WW_hh] (bf16 in, f32 acc) ----
        hproj = jnp.dot(h[:, :H].astype(jnp.bfloat16), whh_ref[...],
                        preferred_element_type=jnp.float32)     # (1, 7*HP)
        gproj = hproj[:, :4 * HP]                               # carried into step t+1

        # ---- WordLSTMCell on the (padded) lexicon words starting at t ----
        wgates = wproj[t * max_w:(t + 1) * max_w, :] + hproj[:, 4 * HP:]
        wsg = jax.nn.sigmoid(wgates[:, :2 * HP])                # wi|wf in one pass
        wi = wsg[:, 0 * HP:1 * HP]
        wf = wsg[:, 1 * HP:2 * HP]
        wg = jnp.tanh(wgates[:, 2 * HP:3 * HP])
        ct = wf * c + wi * wg                                   # (max_w, HP)

        # unconditional dynamic-row scatter; invalid slots were host-pointed at the trash block
        for idx in range(max_w):
            flat = dest_ref[t * max_w + idx]
            cstore[pl.ds(flat, 1), :] = ct[idx:idx + 1, :]


def _pad_cols(w, hp):
    w = jnp.asarray(w, jnp.float32)
    return jnp.pad(w, ((0, 0), (0, hp - w.shape[-1])))


@jax.jit
def _device_forward(ncells, dest, x_flat, we_flat, params):
    seq_len, D = x_flat.shape
    max_w = we_flat.shape[0] // seq_len
    H = params["w_hh"].shape[-1]

    # ---- pack weights: one 128-lane slot per gate, biases (+1 forget-gate fold) included ----
    w_ih, w_hh, b = params["w_ih"], params["w_hh"], params["b"]
    aw_ih, aw_hh, ab = params["aw_ih"], params["aw_hh"], params["ab"]
    ww_ih, ww_hh, wb = params["ww_ih"], params["ww_hh"], params["wb"]

    wx = jnp.concatenate([_pad_cols(w_ih[k], HP) for k in range(4)]
                         + [_pad_cols(aw_ih, HP)], axis=1)                       # (D, 5*HP)
    bx = jnp.concatenate([_pad_cols(b[0], HP), _pad_cols(b[1] + 1.0, HP),
                          _pad_cols(b[2], HP), _pad_cols(b[3], HP),
                          _pad_cols(ab, HP)], axis=1)                            # (1, 5*HP)
    ww = jnp.concatenate([_pad_cols(ww_ih[k], HP) for k in range(3)], axis=1)    # (D, 3*HP)
    bw = jnp.concatenate([_pad_cols(wb[0], HP), _pad_cols(wb[1] + 1.0, HP),
                          _pad_cols(wb[2], HP)], axis=1)                         # (1, 3*HP)
    whh = jnp.concatenate([_pad_cols(w_hh[k], HP) for k in range(4)]
                          + [_pad_cols(ww_hh[k], HP) for k in range(3)],
                          axis=1).astype(jnp.bfloat16)                           # (H, 7*HP)
    awhh = _pad_cols(aw_hh, HP).astype(jnp.bfloat16)                             # (H, HP)

    kernel = functools.partial(
        _lattice_lstm_kernel,
        hidden=H, seq_len=seq_len, max_c=MAX_CELLS, max_w=max_w)

    grid_spec = pltpu.PrefetchScalarGridSpec(
        num_scalar_prefetch=2,
        grid=(1,),
        in_specs=[
            pl.BlockSpec((seq_len, D), lambda i, *_: (0, 0)),               # x
            pl.BlockSpec((seq_len * max_w, D), lambda i, *_: (0, 0)),       # word embs
            pl.BlockSpec((D, 5 * HP), lambda i, *_: (0, 0)),                # packed input weights
            pl.BlockSpec((1, 5 * HP), lambda i, *_: (0, 0)),                # packed input biases
            pl.BlockSpec((D, 3 * HP), lambda i, *_: (0, 0)),                # packed word-in weights
            pl.BlockSpec((1, 3 * HP), lambda i, *_: (0, 0)),                # packed word biases
            pl.BlockSpec((H, 7 * HP), lambda i, *_: (0, 0)),                # fused recurrent (bf16)
            pl.BlockSpec((H, HP), lambda i, *_: (0, 0)),                    # alpha recurrent (bf16)
        ],
        out_specs=(
            pl.BlockSpec((seq_len, HP), lambda i, *_: (0, 0)),
            pl.BlockSpec((seq_len, HP), lambda i, *_: (0, 0)),
        ),
        scratch_shapes=[
            pltpu.VMEM(((seq_len + 1) * MAX_CELLS, HP), jnp.float32),       # cells + trash block
        ],
    )

    h_pad, c_pad = pl.pallas_call(
        kernel,
        grid_spec=grid_spec,
        out_shape=(jax.ShapeDtypeStruct((seq_len, HP), jnp.float32),
                   jax.ShapeDtypeStruct((seq_len, HP), jnp.float32)),
        compiler_params=pltpu.CompilerParams(dimension_semantics=("arbitrary",)),
    )(ncells, dest, x_flat, we_flat, wx, bx, ww, bw, whh, awhh)

    # torch returns (output_hidden.unsqueeze(0), output_memory.unsqueeze(0)) : (1, seq, H)
    return h_pad[None, :, :H], c_pad[None, :, :H]


def lattice_lstm_forward(x, lexicon, params):
    """x: (seq, 1, D) f32; lexicon[t] = (ndarray (nw, D), [word lengths]); params: dict."""
    seq_len, batch, D = x.shape
    assert batch == 1

    # Host-side flattening of the lexicon (plain Python metadata, as in the torch module).
    trash_row = seq_len * MAX_CELLS
    ncells = np.zeros((seq_len,), np.int32)
    dest = np.full((seq_len * MAX_WORDS,), trash_row, np.int32)
    word_embs = np.zeros((seq_len, MAX_WORDS, D), np.float32)
    counts = np.zeros((seq_len,), np.int64)
    for t in range(seq_len):
        # cells visible when step t reads (read-before-append; a length-1 word starting at t is
        # appended AFTER the char cell at t has run, exactly like the torch loop ordering).
        ncells[t] = counts[t]
        embs, lens = lexicon[t]
        nw = len(lens)
        assert nw <= MAX_WORDS
        if nw:
            word_embs[t, :nw] = np.asarray(embs, np.float32)[:nw]
        for idx in range(nw):
            d = t + lens[idx] - 1
            assert 0 <= d < seq_len
            slot = int(counts[d])
            assert slot < MAX_CELLS
            dest[t * MAX_WORDS + idx] = d * MAX_CELLS + slot
            counts[d] += 1

    return _device_forward(
        jnp.asarray(ncells), jnp.asarray(dest),
        jnp.asarray(x, jnp.float32).reshape(seq_len, D),
        jnp.asarray(word_embs).reshape(seq_len * MAX_WORDS, D),
        params)


def reference_forward(x, lexicon, p):
    """Pure numpy mirror of the torch LatticeLSTM forward (batch=1, f32)."""
    def sig(v):
        return 1.0 / (1.0 + np.exp(-v))
    seq = x.shape[0]
    H = p["w_hh"].shape[-1]
    h = np.zeros((1, H), np.float32)
    c = np.zeros((1, H), np.float32)
    input_c = [[] for _ in range(seq)]
    hs, cs = [], []
    for t in range(seq):
        xt = x[t]                                       # (1, D)
        lin = [xt @ p["w_ih"][k] + h @ p["w_hh"][k] + p["b"][k] for k in range(4)]
        i = sig(lin[0]); f = sig(lin[1] + 1.0); o = sig(lin[2]); g = np.tanh(lin[3])
        if len(input_c[t]) == 0:
            c = f * c + i * g
        else:
            cvar = np.concatenate(input_c[t], 0)
            alpha = sig(xt @ p["aw_ih"] + cvar @ p["aw_hh"] + p["ab"])
            a_all = np.exp(np.concatenate([i, alpha], 0))
            a_all = a_all / a_all.sum(0)
            merge = np.concatenate([g, cvar], 0)
            c = (merge * a_all).sum(0, keepdims=True)
        h = o * np.tanh(c)
        hs.append(h.copy()); cs.append(c.copy())
        embs, lens = lexicon[t]
        nw = len(lens)
        if nw > 0:
            we = np.asarray(embs, np.float32)[:nw]
            wi = sig(we @ p["ww_ih"][0] + h @ p["ww_hh"][0] + p["wb"][0])
            wf = sig(we @ p["ww_ih"][1] + h @ p["ww_hh"][1] + p["wb"][1] + 1.0)
            wg = np.tanh(we @ p["ww_ih"][2] + h @ p["ww_hh"][2] + p["wb"][2])
            ct = wf * c + wi * wg
            for idx in range(nw):
                L = lens[idx]
                input_c[t + L - 1].append(ct[idx:idx + 1])
    return np.concatenate(hs, 0)[None], np.concatenate(cs, 0)[None]


if __name__ == "__main__":
    key = jax.random.PRNGKey(0)
    ks = jax.random.split(key, 8)
    D, H = INPUT_DIM, HIDDEN
    scale = 0.2
    params = {
        # MultiInputLSTMCell (weights deterministic; biases zero, matching reset_parameters)
        "w_ih":  (scale * jax.random.normal(ks[0], (4, D, H))).astype(jnp.float32),
        "w_hh":  (scale * jax.random.normal(ks[1], (4, H, H))).astype(jnp.float32),
        "b":     jnp.zeros((4, 1, H), jnp.float32),
        "aw_ih": (scale * jax.random.normal(ks[2], (D, H))).astype(jnp.float32),
        "aw_hh": (scale * jax.random.normal(ks[3], (H, H))).astype(jnp.float32),
        "ab":    jnp.zeros((1, H), jnp.float32),
        # WordLSTMCell
        "ww_ih": (scale * jax.random.normal(ks[4], (3, D, H))).astype(jnp.float32),
        "ww_hh": (scale * jax.random.normal(ks[5], (3, H, H))).astype(jnp.float32),
        "wb":    jnp.zeros((3, 1, H), jnp.float32),
    }
    # TODO(synk): orthonormal_initializer (iterative numpy pretrainer) is init-time only;
    # deterministic scaled-normal weights are used instead.

    x = jax.random.normal(ks[6], (SEQ_LEN, 1, D), jnp.float32)
    lex_emb = np.asarray(jax.random.normal(ks[7], (SEQ_LEN, MAX_WORDS, D), jnp.float32))
    # lexicon[t] = (word embedding matrix (nw, D), list of word lengths), as in the torch module
    length_table = {0: [2, 3], 2: [3], 4: [2, 4]}
    lexicon = []
    for t in range(SEQ_LEN):
        lens = length_table.get(t, [])
        lexicon.append((lex_emb[t, :len(lens)].copy(), lens))

    h_k, c_k = lattice_lstm_forward(x, lexicon, params)
    h_k = jax.block_until_ready(h_k)
    c_k = jax.block_until_ready(c_k)

    params_np = {k: np.asarray(v) for k, v in params.items()}
    h_r, c_r = reference_forward(np.asarray(x), lexicon, params_np)

    assert h_k.shape == (1, SEQ_LEN, H) and c_k.shape == (1, SEQ_LEN, H)
    # bf16 recurrent matmuls + approx reciprocal => compare against the f32 reference at 2e-2.
    np.testing.assert_allclose(np.asarray(h_k), h_r, atol=2e-2, rtol=2e-2)
    np.testing.assert_allclose(np.asarray(c_k), c_r, atol=2e-2, rtol=2e-2)
    print("KERNEL_OK")
</pallas_src>

<mosaic_0001>
module attributes {stable_mosaic.version = 11 : i64} {
  func.func @_lattice_lstm_kernel(%arg0: i32, %arg1: memref<8xi32, #tpu.memory_space<smem>>, %arg2: memref<16xi32, #tpu.memory_space<smem>>, %arg3: memref<8x32xf32, #tpu.memory_space<vmem>>, %arg4: memref<16x32xf32, #tpu.memory_space<vmem>>, %arg5: memref<32x640xf32, #tpu.memory_space<vmem>>, %arg6: memref<1x640xf32, #tpu.memory_space<vmem>>, %arg7: memref<32x384xf32, #tpu.memory_space<vmem>>, %arg8: memref<1x384xf32, #tpu.memory_space<vmem>>, %arg9: memref<32x896xbf16, #tpu.memory_space<vmem>>, %arg10: memref<32x128xbf16, #tpu.memory_space<vmem>>, %arg11: memref<8x128xf32, #tpu.memory_space<vmem>>, %arg12: memref<8x128xf32, #tpu.memory_space<vmem>>, %arg13: memref<72x128xf32, #tpu.memory_space<vmem>>) attributes {dimension_semantics = [#tpu.dimension_semantics<arbitrary>], iteration_bounds = array<i64: 1>, scalar_prefetch = 2 : i64, scratch_operands = 1 : i64, tpu.core_type = #tpu.core_type<tc>, window_params = [{pipeline_mode = #tpu.pipeline_mode<synchronous>, transform_indices = @transform_0, window_bounds = array<i64: 8, 32>}, {pipeline_mode = #tpu.pipeline_mode<synchronous>, transform_indices = @transform_1, window_bounds = array<i64: 16, 32>}, {pipeline_mode = #tpu.pipeline_mode<synchronous>, transform_indices = @transform_2, window_bounds = array<i64: 32, 640>}, {pipeline_mode = #tpu.pipeline_mode<synchronous>, transform_indices = @transform_3, window_bounds = array<i64: 1, 640>}, {pipeline_mode = #tpu.pipeline_mode<synchronous>, transform_indices = @transform_4, window_bounds = array<i64: 32, 384>}, {pipeline_mode = #tpu.pipeline_mode<synchronous>, transform_indices = @transform_5, window_bounds = array<i64: 1, 384>}, {pipeline_mode = #tpu.pipeline_mode<synchronous>, transform_indices = @transform_6, window_bounds = array<i64: 32, 896>}, {pipeline_mode = #tpu.pipeline_mode<synchronous>, transform_indices = @transform_7, window_bounds = array<i64: 32, 128>}, {pipeline_mode = #tpu.pipeline_mode<synchronous>, transform_indices = @transform_8, window_bounds = array<i64: 8, 128>}, {pipeline_mode = #tpu.pipeline_mode<synchronous>, transform_indices = @transform_9, window_bounds = array<i64: 8, 128>}]} {
    %c0 = arith.constant 0 : index
    %c0_0 = arith.constant 0 : index
    %0 = vector.load %arg3[%c0, %c0_0] : memref<8x32xf32, #tpu.memory_space<vmem>>, vector<8x32xf32>
    %c0_1 = arith.constant 0 : index
    %c0_2 = arith.constant 0 : index
    %1 = vector.load %arg5[%c0_1, %c0_2] : memref<32x640xf32, #tpu.memory_space<vmem>>, vector<32x640xf32>
    %cst = arith.constant dense<0.000000e+00> : vector<8x640xf32>
    %2 = tpu.matmul %0, %1, %cst {dimension_numbers = #tpu.dot_dimension_numbers<[1], [0], [0], [1], [0, 0, 1, 1], [], []>} : vector<8x32xf32>, vector<32x640xf32>, vector<8x640xf32> -> vector<8x640xf32>
    %c0_3 = arith.constant 0 : index
    %c0_4 = arith.constant 0 : index
    %3 = vector.load %arg6[%c0_3, %c0_4] : memref<1x640xf32, #tpu.memory_space<vmem>>, vector<1x640xf32>
    %4 = vector.broadcast %3 : vector<1x640xf32> to vector<8x640xf32>
    %5 = arith.addf %2, %4 : vector<8x640xf32>
    %c0_5 = arith.constant 0 : index
    %c0_6 = arith.constant 0 : index
    %6 = vector.load %arg4[%c0_5, %c0_6] : memref<16x32xf32, #tpu.memory_space<vmem>>, vector<16x32xf32>
    %c0_7 = arith.constant 0 : index
    %c0_8 = arith.constant 0 : index
    %7 = vector.load %arg7[%c0_7, %c0_8] : memref<32x384xf32, #tpu.memory_space<vmem>>, vector<32x384xf32>
    %cst_9 = arith.constant dense<0.000000e+00> : vector<16x384xf32>
    %8 = tpu.matmul %6, %7, %cst_9 {dimension_numbers = #tpu.dot_dimension_numbers<[1], [0], [0], [1], [0, 0, 1, 1], [], []>} : vector<16x32xf32>, vector<32x384xf32>, vector<16x384xf32> -> vector<16x384xf32>
    %c0_10 = arith.constant 0 : index
    %c0_11 = arith.constant 0 : index
    %9 = vector.load %arg8[%c0_10, %c0_11] : memref<1x384xf32, #tpu.memory_space<vmem>>, vector<1x384xf32>
    %10 = vector.broadcast %9 : vector<1x384xf32> to vector<16x384xf32>
    %11 = arith.addf %8, %10 : vector<16x384xf32>
    %cst_12 = arith.constant 0.000000e+00 : f32
    %12 = vector.broadcast %cst_12 : f32 to vector<72x128xf32>
    %c0_13 = arith.constant 0 : index
    %c0_14 = arith.constant 0 : index
    %13 = vector.load %arg13[%c0_13, %c0_14] : memref<72x128xf32, #tpu.memory_space<vmem>>, vector<72x128xf32>
    tpu.vector_store %arg13[%c0_13, %c0_14], %12 {strides = array<i32>} : memref<72x128xf32, #tpu.memory_space<vmem>>, vector<72x128xf32>,
    %14 = tpu.iota {dimensions = array<i32: 0>} : vector<8x128xi32>
    %cst_15 = arith.constant 0.000000e+00 : f32
    %15 = vector.broadcast %cst_15 : f32 to vector<1x128xf32>
    %cst_16 = arith.constant 0.000000e+00 : f32
    %16 = vector.broadcast %cst_16 : f32 to vector<1x512xf32>
    %17 = vector.extract_strided_slice %5 {offsets = [0, 0], sizes = [1, 640], strides = [1, 1]} : vector<8x640xf32> to vector<1x640xf32>
    %18 = vector.extract_strided_slice %17 {offsets = [0, 0], sizes = [1, 512], strides = [1, 1]} : vector<1x640xf32> to vector<1x512xf32>
    %19 = arith.addf %18, %16 : vector<1x512xf32>
    %20 = vector.extract_strided_slice %19 {offsets = [0, 0], sizes = [1, 384], strides = [1, 1]} : vector<1x512xf32> to vector<1x384xf32>
    %21 = arith.negf %20 : vector<1x384xf32>
    %22 = math.exp %21 : vector<1x384xf32>
    %cst_17 = arith.constant 1.000000e+00 : f32
    %23 = vector.broadcast %cst_17 : f32 to vector<1x384xf32>
    %24 = arith.addf %23, %22 : vector<1x384xf32>
    %25 = arith.divf %23, %24 : vector<1x384xf32>
    %26 = vector.extract_strided_slice %25 {offsets = [0, 0], sizes = [1, 128], strides = [1, 1]} : vector<1x384xf32> to vector<1x128xf32>
    %27 = vector.extract_strided_slice %25 {offsets = [0, 128], sizes = [1, 128], strides = [1, 1]} : vector<1x384xf32> to vector<1x128xf32>
    %28 = vector.extract_strided_slice %25 {offsets = [0, 256], sizes = [1, 128], strides = [1, 1]} : vector<1x384xf32> to vector<1x128xf32>
    %29 = vector.extract_strided_slice %19 {offsets = [0, 384], sizes = [1, 128], strides = [1, 1]} : vector<1x512xf32> to vector<1x128xf32>
    %30 = math.tanh %29 : vector<1x128xf32>
    %31 = vector.extract_strided_slice %17 {offsets = [0, 512], sizes = [1, 128], strides = [1, 1]} : vector<1x640xf32> to vector<1x128xf32>
    %c0_18 = arith.constant 0 : index
    %32 = memref.load %arg1[%c0_18] : memref<8xi32, #tpu.memory_space<smem>>
    %c0_19 = arith.constant 0 : index
    %c0_20 = arith.constant 0 : index
    %33 = vector.load %arg13[%c0_19, %c0_20] : memref<72x128xf32, #tpu.memory_space<vmem>>, vector<8x128xf32>
    %34 = vector.extract_strided_slice %33 {offsets = [0, 0], sizes = [8, 32], strides = [1, 1]} : vector<8x128xf32> to vector<8x32xf32>
    %35 = arith.truncf %34 : vector<8x32xf32> to vector<8x32xbf16>
    %c0_21 = arith.constant 0 : index
    %c0_22 = arith.constant 0 : index
    %36 = vector.load %arg10[%c0_21, %c0_22] : memref<32x128xbf16, #tpu.memory_space<vmem>>, vector<32x128xbf16>
    %cst_23 = arith.constant dense<0.000000e+00> : vector<8x128xf32>
    %37 = tpu.matmul %35, %36, %cst_23 {dimension_numbers = #tpu.dot_dimension_numbers<[1], [0], [0], [1], [0, 0, 1, 1], [], []>} : vector<8x32xbf16>, vector<32x128xbf16>, vector<8x128xf32> -> vector<8x128xf32>
    %38 = vector.broadcast %31 : vector<1x128xf32> to vector<8x128xf32>
    %39 = arith.addf %38, %37 : vector<8x128xf32>
    %40 = arith.negf %39 : vector<8x128xf32>
    %41 = math.exp %40 : vector<8x128xf32>
    %cst_24 = arith.constant 1.000000e+00 : f32
    %42 = vector.broadcast %cst_24 : f32 to vector<8x128xf32>
    %43 = arith.addf %42, %41 : vector<8x128xf32>
    %44 = arith.divf %42, %43 : vector<8x128xf32>
    %45 = vector.broadcast %32 : i32 to vector<8x128xi32>
    %46 = arith.cmpi slt, %14, %45 : vector<8x128xi32>
    %47 = math.exp %44 : vector<8x128xf32>
    %cst_25 = arith.constant 0.000000e+00 : f32
    %48 = vector.broadcast %cst_25 : f32 to vector<8x128xf32>
    %49 = arith.select %46, %47, %48 : vector<8x128xi1>, vector<8x128xf32>
    %50 = math.exp %26 : vector<1x128xf32>
    %cst_26 = arith.constant dense<0.000000e+00> : vector<128xf32>
    %51 = vector.multi_reduction <add>, %49, %cst_26 [0] : vector<8x128xf32> to vector<128xf32>
    %52 = vector.shape_cast %51 : vector<128xf32> to vector<1x128xf32>
    %53 = arith.addf %50, %52 : vector<1x128xf32>
    %54 = arith.mulf %50, %30 : vector<1x128xf32>
    %55 = arith.mulf %49, %33 : vector<8x128xf32>
    %cst_27 = arith.constant dense<0.000000e+00> : vector<128xf32>
    %56 = vector.multi_reduction <add>, %55, %cst_27 [0] : vector<8x128xf32> to vector<128xf32>
    %57 = vector.shape_cast %56 : vector<128xf32> to vector<1x128xf32>
    %58 = arith.addf %54, %57 : vector<1x128xf32>
    %59 = tpu.reciprocal %53 {approx = true} : vector<1x128xf32> -> vector<1x128xf32>
    %60 = arith.mulf %58, %59 : vector<1x128xf32>
    %61 = arith.mulf %27, %15 : vector<1x128xf32>
    %62 = arith.mulf %26, %30 : vector<1x128xf32>
    %63 = arith.addf %61, %62 : vector<1x128xf32>
    %c0_i32 = arith.constant 0 : i32
    %64 = arith.cmpi sgt, %32, %c0_i32 : i32
    %65 = arith.select %64, %60, %63 : vector<1x128xf32>
    %66 = math.tanh %65 : vector<1x128xf32>
    %67 = arith.mulf %28, %66 : vector<1x128xf32>
    %c0_28 = arith.constant 0 : index
    %c0_29 = arith.constant 0 : index
    %68 = vector.load %arg11[%c0_28, %c0_29] : memref<8x128xf32, #tpu.memory_space<vmem>>, vector<1x128xf32>
    tpu.vector_store %arg11[%c0_28, %c0_29], %67 {strides = array<i32>} : memref<8x128xf32, #tpu.memory_space<vmem>>, vector<1x128xf32>,
    %c0_30 = arith.constant 0 : index
    %c0_31 = arith.constant 0 : index
    %69 = vector.load %arg12[%c0_30, %c0_31] : memref<8x128xf32, #tpu.memory_space<vmem>>, vector<1x128xf32>
    tpu.vector_store %arg12[%c0_30, %c0_31], %65 {strides = array<i32>} : memref<8x128xf32, #tpu.memory_space<vmem>>, vector<1x128xf32>,
    %70 = vector.extract_strided_slice %67 {offsets = [0, 0], sizes = [1, 32], strides = [1, 1]} : vector<1x128xf32> to vector<1x32xf32>
    %71 = arith.truncf %70 : vector<1x32xf32> to vector<1x32xbf16>
    %c0_32 = arith.constant 0 : index
    %c0_33 = arith.constant 0 : index
    %72 = vector.load %arg9[%c0_32, %c0_33] : memref<32x896xbf16, #tpu.memory_space<vmem>>, vector<32x896xbf16>
    %cst_34 = arith.constant dense<0.000000e+00> : vector<1x896xf32>
    %73 = tpu.matmul %71, %72, %cst_34 {dimension_numbers = #tpu.dot_dimension_numbers<[1], [0], [0], [1], [0, 0, 1, 1], [], []>} : vector<1x32xbf16>, vector<32x896xbf16>, vector<1x896xf32> -> vector<1x896xf32>
    %74 = vector.extract_strided_slice %73 {offsets = [0, 0], sizes = [1, 512], strides = [1, 1]} : vector<1x896xf32> to vector<1x512xf32>
    %75 = vector.extract_strided_slice %11 {offsets = [0, 0], sizes = [2, 384], strides = [1, 1]} : vector<16x384xf32> to vector<2x384xf32>
    %76 = vector.extract_strided_slice %73 {offsets = [0, 512], sizes = [1, 384], strides = [1, 1]} : vector<1x896xf32> to vector<1x384xf32>
    %77 = vector.broadcast %76 : vector<1x384xf32> to vector<2x384xf32>
    %78 = arith.addf %75, %77 : vector<2x384xf32>
    %79 = vector.extract_strided_slice %78 {offsets = [0, 0], sizes = [2, 256], strides = [1, 1]} : vector<2x384xf32> to vector<2x256xf32>
    %80 = arith.negf %79 : vector<2x256xf32>
    %81 = math.exp %80 : vector<2x256xf32>
    %cst_35 = arith.constant 1.000000e+00 : f32
    %82 = vector.broadcast %cst_35 : f32 to vector<2x256xf32>
    %83 = arith.addf %82, %81 : vector<2x256xf32>
    %84 = arith.divf %82, %83 : vector<2x256xf32>
    %85 = vector.extract_strided_slice %84 {offsets = [0, 0], sizes = [2, 128], strides = [1, 1]} : vector<2x256xf32> to vector<2x128xf32>
    %86 = vector.extract_strided_slice %84 {offsets = [0, 128], sizes = [2, 128], strides = [1, 1]} : vector<2x256xf32> to vector<2x128xf32>
    %87 = vector.extract_strided_slice %78 {offsets = [0, 256], sizes = [2, 128], strides = [1, 1]} : vector<2x384xf32> to vector<2x128xf32>
    %88 = math.tanh %87 : vector<2x128xf32>
    %89 = vector.broadcast %65 : vector<1x128xf32> to vector<2x128xf32>
    %90 = arith.mulf %86, %89 : vector<2x128xf32>
    %91 = arith.mulf %85, %88 : vector<2x128xf32>
    %92 = arith.addf %90, %91 : vector<2x128xf32>
    %c0_36 = arith.constant 0 : index
    %93 = memref.load %arg2[%c0_36] : memref<16xi32, #tpu.memory_space<smem>>
    %94 = vector.extract_strided_slice %92 {offsets = [0, 0], sizes = [1, 128], strides = [1, 1]} : vector<2x128xf32> to vector<1x128xf32>
    %95 = arith.index_cast %93 : i32 to index
    %c0_37 = arith.constant 0 : index
    %96 = vector.load %arg13[%95, %c0_37] : memref<72x128xf32, #tpu.memory_space<vmem>>, vector<1x128xf32>
    tpu.vector_store %arg13[%95, %c0_37], %94 {strides = array<i32>} : memref<72x128xf32, #tpu.memory_space<vmem>>, vector<1x128xf32>,
    %c1 = arith.constant 1 : index
    %97 = memref.load %arg2[%c1] : memref<16xi32, #tpu.memory_space<smem>>
    %98 = vector.extract_strided_slice %92 {offsets = [1, 0], sizes = [1, 128], strides = [1, 1]} : vector<2x128xf32> to vector<1x128xf32>
    %99 = arith.index_cast %97 : i32 to index
    %c0_38 = arith.constant 0 : index
    %100 = vector.load %arg13[%99, %c0_38] : memref<72x128xf32, #tpu.memory_space<vmem>>, vector<1x128xf32>
    tpu.vector_store %arg13[%99, %c0_38], %98 {strides = array<i32>} : memref<72x128xf32, #tpu.memory_space<vmem>>, vector<1x128xf32>,
    %101 = vector.extract_strided_slice %5 {offsets = [1, 0], sizes = [1, 640], strides = [1, 1]} : vector<8x640xf32> to vector<1x640xf32>
    %102 = vector.extract_strided_slice %101 {offsets = [0, 0], sizes = [1, 512], strides = [1, 1]} : vector<1x640xf32> to vector<1x512xf32>
    %103 = arith.addf %102, %74 : vector<1x512xf32>
    %104 = vector.extract_strided_slice %103 {offsets = [0, 0], sizes = [1, 384], strides = [1, 1]} : vector<1x512xf32> to vector<1x384xf32>
    %105 = arith.negf %104 : vector<1x384xf32>
    %106 = math.exp %105 : vector<1x384xf32>
    %cst_39 = arith.constant 1.000000e+00 : f32
    %107 = vector.broadcast %cst_39 : f32 to vector<1x384xf32>
    %108 = arith.addf %107, %106 : vector<1x384xf32>
    %109 = arith.divf %107, %108 : vector<1x384xf32>
    %110 = vector.extract_strided_slice %109 {offsets = [0, 0], sizes = [1, 128], strides = [1, 1]} : vector<1x384xf32> to vector<1x128xf32>
    %111 = vector.extract_strided_slice %109 {offsets = [0, 128], sizes = [1, 128], strides = [1, 1]} : vector<1x384xf32> to vector<1x128xf32>
    %112 = vector.extract_strided_slice %109 {offsets = [0, 256], sizes = [1, 128], strides = [1, 1]} : vector<1x384xf32> to vector<1x128xf32>
    %113 = vector.extract_strided_slice %103 {offsets = [0, 384], sizes = [1, 128], strides = [1, 1]} : vector<1x512xf32> to vector<1x128xf32>
    %114 = math.tanh %113 : vector<1x128xf32>
    %115 = vector.extract_strided_slice %101 {offsets = [0, 512], sizes = [1, 128], strides = [1, 1]} : vector<1x640xf32> to vector<1x128xf32>
    %c1_40 = arith.constant 1 : index
    %116 = memref.load %arg1[%c1_40] : memref<8xi32, #tpu.memory_space<smem>>
    %c8 = arith.constant 8 : index
    %c0_41 = arith.constant 0 : index
    %117 = vector.load %arg13[%c8, %c0_41] : memref<72x128xf32, #tpu.memory_space<vmem>>, vector<8x128xf32>
    %118 = vector.extract_strided_slice %117 {offsets = [0, 0], sizes = [8, 32], strides = [1, 1]} : vector<8x128xf32> to vector<8x32xf32>
    %119 = arith.truncf %118 : vector<8x32xf32> to vector<8x32xbf16>
    %c0_42 = arith.constant 0 : index
    %c0_43 = arith.constant 0 : index
    %120 = vector.load %arg10[%c0_42, %c0_43] : memref<32x128xbf16, #tpu.memory_space<vmem>>, vector<32x128xbf16>
    %cst_44 = arith.constant dense<0.000000e+00> : vector<8x128xf32>
    %121 = tpu.matmul %119, %120, %cst_44 {dimension_numbers = #tpu.dot_dimension_numbers<[1], [0], [0], [1], [0, 0, 1, 1], [], []>} : vector<8x32xbf16>, vector<32x128xbf16>, vector<8x128xf32> -> vector<8x128xf32>
    %122 = vector.broadcast %115 : vector<1x128xf32> to vector<8x128xf32>
    %123 = arith.addf %122, %121 : vector<8x128xf32>
    %124 = arith.negf %123 : vector<8x128xf32>
    %125 = math.exp %124 : vector<8x128xf32>
    %cst_45 = arith.constant 1.000000e+00 : f32
    %126 = vector.broadcast %cst_45 : f32 to vector<8x128xf32>
    %127 = arith.addf %126, %125 : vector<8x128xf32>
    %128 = arith.divf %126, %127 : vector<8x128xf32>
    %129 = vector.broadcast %116 : i32 to vector<8x128xi32>
    %130 = arith.cmpi slt, %14, %129 : vector<8x128xi32>
    %131 = math.exp %128 : vector<8x128xf32>
    %cst_46 = arith.constant 0.000000e+00 : f32
    %132 = vector.broadcast %cst_46 : f32 to vector<8x128xf32>
    %133 = arith.select %130, %131, %132 : vector<8x128xi1>, vector<8x128xf32>
    %134 = math.exp %110 : vector<1x128xf32>
    %cst_47 = arith.constant dense<0.000000e+00> : vector<128xf32>
    %135 = vector.multi_reduction <add>, %133, %cst_47 [0] : vector<8x128xf32> to vector<128xf32>
    %136 = vector.shape_cast %135 : vector<128xf32> to vector<1x128xf32>
    %137 = arith.addf %134, %136 : vector<1x128xf32>
    %138 = arith.mulf %134, %114 : vector<1x128xf32>
    %139 = arith.mulf %133, %117 : vector<8x128xf32>
    %cst_48 = arith.constant dense<0.000000e+00> : vector<128xf32>
    %140 = vector.multi_reduction <add>, %139, %cst_48 [0] : vector<8x128xf32> to vector<128xf32>
    %141 = vector.shape_cast %140 : vector<128xf32> to vector<1x128xf32>
    %142 = arith.addf %138, %141 : vector<1x128xf32>
    %143 = tpu.reciprocal %137 {approx = true} : vector<1x128xf32> -> vector<1x128xf32>
    %144 = arith.mulf %142, %143 : vector<1x128xf32>
    %145 = arith.mulf %111, %65 : vector<1x128xf32>
    %146 = arith.mulf %110, %114 : vector<1x128xf32>
    %147 = arith.addf %145, %146 : vector<1x128xf32>
    %c0_i32_49 = arith.constant 0 : i32
    %148 = arith.cmpi sgt, %116, %c0_i32_49 : i32
    %149 = arith.select %148, %144, %147 : vector<1x128xf32>
    %150 = math.tanh %149 : vector<1x128xf32>
    %151 = arith.mulf %112, %150 : vector<1x128xf32>
    %c1_50 = arith.constant 1 : index
    %c0_51 = arith.constant 0 : index
    %152 = vector.load %arg11[%c1_50, %c0_51] : memref<8x128xf32, #tpu.memory_space<vmem>>, vector<1x128xf32>
    tpu.vector_store %arg11[%c1_50, %c0_51], %151 {strides = array<i32>} : memref<8x128xf32, #tpu.memory_space<vmem>>, vector<1x128xf32>,
    %c1_52 = arith.constant 1 : index
    %c0_53 = arith.constant 0 : index
    %153 = vector.load %arg12[%c1_52, %c0_53] : memref<8x128xf32, #tpu.memory_space<vmem>>, vector<1x128xf32>
    tpu.vector_store %arg12[%c1_52, %c0_53], %149 {strides = array<i32>} : memref<8x128xf32, #tpu.memory_space<vmem>>, vector<1x128xf32>,
    %154 = vector.extract_strided_slice %151 {offsets = [0, 0], sizes = [1, 32], strides = [1, 1]} : vector<1x128xf32> to vector<1x32xf32>
    %155 = arith.truncf %154 : vector<1x32xf32> to vector<1x32xbf16>
    %c0_54 = arith.constant 0 : index
    %c0_55 = arith.constant 0 : index
    %156 = vector.load %arg9[%c0_54, %c0_55] : memref<32x896xbf16, #tpu.memory_space<vmem>>, vector<32x896xbf16>
    %cst_56 = arith.constant dense<0.000000e+00> : vector<1x896xf32>
    %157 = tpu.matmul %155, %156, %cst_56 {dimension_numbers = #tpu.dot_dimension_numbers<[1], [0], [0], [1], [0, 0, 1, 1], [], []>} : vector<1x32xbf16>, vector<32x896xbf16>, vector<1x896xf32> -> vector<1x896xf32>
    %158 = vector.extract_strided_slice %157 {offsets = [0, 0], sizes = [1, 512], strides = [1, 1]} : vector<1x896xf32> to vector<1x512xf32>
    %159 = vector.extract_strided_slice %11 {offsets = [2, 0], sizes = [2, 384], strides = [1, 1]} : vector<16x384xf32> to vector<2x384xf32>
    %160 = vector.extract_strided_slice %157 {offsets = [0, 512], sizes = [1, 384], strides = [1, 1]} : vector<1x896xf32> to vector<1x384xf32>
    %161 = vector.broadcast %160 : vector<1x384xf32> to vector<2x384xf32>
    %162 = arith.addf %159, %161 : vector<2x384xf32>
    %163 = vector.extract_strided_slice %162 {offsets = [0, 0], sizes = [2, 256], strides = [1, 1]} : vector<2x384xf32> to vector<2x256xf32>
    %164 = arith.negf %163 : vector<2x256xf32>
    %165 = math.exp %164 : vector<2x256xf32>
    %cst_57 = arith.constant 1.000000e+00 : f32
    %166 = vector.broadcast %cst_57 : f32 to vector<2x256xf32>
    %167 = arith.addf %166, %165 : vector<2x256xf32>
    %168 = arith.divf %166, %167 : vector<2x256xf32>
    %169 = vector.extract_strided_slice %168 {offsets = [0, 0], sizes = [2, 128], strides = [1, 1]} : vector<2x256xf32> to vector<2x128xf32>
    %170 = vector.extract_strided_slice %168 {offsets = [0, 128], sizes = [2, 128], strides = [1, 1]} : vector<2x256xf32> to vector<2x128xf32>
    %171 = vector.extract_strided_slice %162 {offsets = [0, 256], sizes = [2, 128], strides = [1, 1]} : vector<2x384xf32> to vector<2x128xf32>
    %172 = math.tanh %171 : vector<2x128xf32>
    %173 = vector.broadcast %149 : vector<1x128xf32> to vector<2x128xf32>
    %174 = arith.mulf %170, %173 : vector<2x128xf32>
    %175 = arith.mulf %169, %172 : vector<2x128xf32>
    %176 = arith.addf %174, %175 : vector<2x128xf32>
    %c2 = arith.constant 2 : index
    %177 = memref.load %arg2[%c2] : memref<16xi32, #tpu.memory_space<smem>>
    %178 = vector.extract_strided_slice %176 {offsets = [0, 0], sizes = [1, 128], strides = [1, 1]} : vector<2x128xf32> to vector<1x128xf32>
    %179 = arith.index_cast %177 : i32 to index
    %c0_58 = arith.constant 0 : index
    %180 = vector.load %arg13[%179, %c0_58] : memref<72x128xf32, #tpu.memory_space<vmem>>, vector<1x128xf32>
    tpu.vector_store %arg13[%179, %c0_58], %178 {strides = array<i32>} : memref<72x128xf32, #tpu.memory_space<vmem>>, vector<1x128xf32>,
    %c3 = arith.constant 3 : index
    %181 = memref.load %arg2[%c3] : memref<16xi32, #tpu.memory_space<smem>>
    %182 = vector.extract_strided_slice %176 {offsets = [1, 0], sizes = [1, 128], strides = [1, 1]} : vector<2x128xf32> to vector<1x128xf32>
    %183 = arith.index_cast %181 : i32 to index
    %c0_59 = arith.constant 0 : index
    %184 = vector.load %arg13[%183, %c0_59] : memref<72x128xf32, #tpu.memory_space<vmem>>, vector<1x128xf32>
    tpu.vector_store %arg13[%183, %c0_59], %182 {strides = array<i32>} : memref<72x128xf32, #tpu.memory_space<vmem>>, vector<1x128xf32>,
    %185 = vector.extract_strided_slice %5 {offsets = [2, 0], sizes = [1, 640], strides = [1, 1]} : vector<8x640xf32> to vector<1x640xf32>
    %186 = vector.extract_strided_slice %185 {offsets = [0, 0], sizes = [1, 512], strides = [1, 1]} : vector<1x640xf32> to vector<1x512xf32>
    %187 = arith.addf %186, %158 : vector<1x512xf32>
    %188 = vector.extract_strided_slice %187 {offsets = [0, 0], sizes = [1, 384], strides = [1, 1]} : vector<1x512xf32> to vector<1x384xf32>
    %189 = arith.negf %188 : vector<1x384xf32>
    %190 = math.exp %189 : vector<1x384xf32>
    %cst_60 = arith.constant 1.000000e+00 : f32
    %191 = vector.broadcast %cst_60 : f32 to vector<1x384xf32>
    %192 = arith.addf %191, %190 : vector<1x384xf32>
    %193 = arith.divf %191, %192 : vector<1x384xf32>
    %194 = vector.extract_strided_slice %193 {offsets = [0, 0], sizes = [1, 128], strides = [1, 1]} : vector<1x384xf32> to vector<1x128xf32>
    %195 = vector.extract_strided_slice %193 {offsets = [0, 128], sizes = [1, 128], strides = [1, 1]} : vector<1x384xf32> to vector<1x128xf32>
    %196 = vector.extract_strided_slice %193 {offsets = [0, 256], sizes = [1, 128], strides = [1, 1]} : vector<1x384xf32> to vector<1x128xf32>
    %197 = vector.extract_strided_slice %187 {offsets = [0, 384], sizes = [1, 128], strides = [1, 1]} : vector<1x512xf32> to vector<1x128xf32>
    %198 = math.tanh %197 : vector<1x128xf32>
    %199 = vector.extract_strided_slice %185 {offsets = [0, 512], sizes = [1, 128], strides = [1, 1]} : vector<1x640xf32> to vector<1x128xf32>
    %c2_61 = arith.constant 2 : index
    %200 = memref.load %arg1[%c2_61] : memref<8xi32, #tpu.memory_space<smem>>
    %c16 = arith.constant 16 : index
    %c0_62 = arith.constant 0 : index
    %201 = vector.load %arg13[%c16, %c0_62] : memref<72x128xf32, #tpu.memory_space<vmem>>, vector<8x128xf32>
    %202 = vector.extract_strided_slice %201 {offsets = [0, 0], sizes = [8, 32], strides = [1, 1]} : vector<8x128xf32> to vector<8x32xf32>
    %203 = arith.truncf %202 : vector<8x32xf32> to vector<8x32xbf16>
    %c0_63 = arith.constant 0 : index
    %c0_64 = arith.constant 0 : index
    %204 = vector.load %arg10[%c0_63, %c0_64] : memref<32x128xbf16, #tpu.memory_space<vmem>>, vector<32x128xbf16>
    %cst_65 = arith.constant dense<0.000000e+00> : vector<8x128xf32>
    %205 = tpu.matmul %203, %204, %cst_65 {dimension_numbers = #tpu.dot_dimension_numbers<[1], [0], [0], [1], [0, 0, 1, 1], [], []>} : vector<8x32xbf16>, vector<32x128xbf16>, vector<8x128xf32> -> vector<8x128xf32>
    %206 = vector.broadcast %199 : vector<1x128xf32> to vector<8x128xf32>
    %207 = arith.addf %206, %205 : vector<8x128xf32>
    %208 = arith.negf %207 : vector<8x128xf32>
    %209 = math.exp %208 : vector<8x128xf32>
    %cst_66 = arith.constant 1.000000e+00 : f32
    %210 = vector.broadcast %cst_66 : f32 to vector<8x128xf32>
    %211 = arith.addf %210, %209 : vector<8x128xf32>
    %212 = arith.divf %210, %211 : vector<8x128xf32>
    %213 = vector.broadcast %200 : i32 to vector<8x128xi32>
    %214 = arith.cmpi slt, %14, %213 : vector<8x128xi32>
    %215 = math.exp %212 : vector<8x128xf32>
    %cst_67 = arith.constant 0.000000e+00 : f32
    %216 = vector.broadcast %cst_67 : f32 to vector<8x128xf32>
    %217 = arith.select %214, %215, %216 : vector<8x128xi1>, vector<8x128xf32>
    %218 = math.exp %194 : vector<1x128xf32>
    %cst_68 = arith.constant dense<0.000000e+00> : vector<128xf32>
    %219 = vector.multi_reduction <add>, %217, %cst_68 [0] : vector<8x128xf32> to vector<128xf32>
    %220 = vector.shape_cast %219 : vector<128xf32> to vector<1x128xf32>
    %221 = arith.addf %218, %220 : vector<1x128xf32>
    %222 = arith.mulf %218, %198 : vector<1x128xf32>
    %223 = arith.mulf %217, %201 : vector<8x128xf32>
    %cst_69 = arith.constant dense<0.000000e+00> : vector<128xf32>
    %224 = vector.multi_reduction <add>, %223, %cst_69 [0] : vector<8x128xf32> to vector<128xf32>
    %225 = vector.shape_cast %224 : vector<128xf32> to vector<1x128xf32>
    %226 = arith.addf %222, %225 : vector<1x128xf32>
    %227 = tpu.reciprocal %221 {approx = true} : vector<1x128xf32> -> vector<1x128xf32>
    %228 = arith.mulf %226, %227 : vector<1x128xf32>
    %229 = arith.mulf %195, %149 : vector<1x128xf32>
    %230 = arith.mulf %194, %198 : vector<1x128xf32>
    %231 = arith.addf %229, %230 : vector<1x128xf32>
    %c0_i32_70 = arith.constant 0 : i32
    %232 = arith.cmpi sgt, %200, %c0_i32_70 : i32
    %233 = arith.select %232, %228, %231 : vector<1x128xf32>
    %234 = math.tanh %233 : vector<1x128xf32>
    %235 = arith.mulf %196, %234 : vector<1x128xf32>
    %c2_71 = arith.constant 2 : index
    %c0_72 = arith.constant 0 : index
    %236 = vector.load %arg11[%c2_71, %c0_72] : memref<8x128xf32, #tpu.memory_space<vmem>>, vector<1x128xf32>
    tpu.vector_store %arg11[%c2_71, %c0_72], %235 {strides = array<i32>} : memref<8x128xf32, #tpu.memory_space<vmem>>, vector<1x128xf32>,
    %c2_73 = arith.constant 2 : index
    %c0_74 = arith.constant 0 : index
    %237 = vector.load %arg12[%c2_73, %c0_74] : memref<8x128xf32, #tpu.memory_space<vmem>>, vector<1x128xf32>
    tpu.vector_store %arg12[%c2_73, %c0_74], %233 {strides = array<i32>} : memref<8x128xf32, #tpu.memory_space<vmem>>, vector<1x128xf32>,
    %238 = vector.extract_strided_slice %235 {offsets = [0, 0], sizes = [1, 32], strides = [1, 1]} : vector<1x128xf32> to vector<1x32xf32>
    %239 = arith.truncf %238 : vector<1x32xf32> to vector<1x32xbf16>
    %c0_75 = arith.constant 0 : index
    %c0_76 = arith.constant 0 : index
    %240 = vector.load %arg9[%c0_75, %c0_76] : memref<32x896xbf16, #tpu.memory_space<vmem>>, vector<32x896xbf16>
    %cst_77 = arith.constant dense<0.000000e+00> : vector<1x896xf32>
    %241 = tpu.matmul %239, %240, %cst_77 {dimension_numbers = #tpu.dot_dimension_numbers<[1], [0], [0], [1], [0, 0, 1, 1], [], []>} : vector<1x32xbf16>, vector<32x896xbf16>, vector<1x896xf32> -> vector<1x896xf32>
    %242 = vector.extract_strided_slice %241 {offsets = [0, 0], sizes = [1, 512], strides = [1, 1]} : vector<1x896xf32> to vector<1x512xf32>
    %243 = vector.extract_strided_slice %11 {offsets = [4, 0], sizes = [2, 384], strides = [1, 1]} : vector<16x384xf32> to vector<2x384xf32>
    %244 = vector.extract_strided_slice %241 {offsets = [0, 512], sizes = [1, 384], strides = [1, 1]} : vector<1x896xf32> to vector<1x384xf32>
    %245 = vector.broadcast %244 : vector<1x384xf32> to vector<2x384xf32>
    %246 = arith.addf %243, %245 : vector<2x384xf32>
    %247 = vector.extract_strided_slice %246 {offsets = [0, 0], sizes = [2, 256], strides = [1, 1]} : vector<2x384xf32> to vector<2x256xf32>
    %248 = arith.negf %247 : vector<2x256xf32>
    %249 = math.exp %248 : vector<2x256xf32>
    %cst_78 = arith.constant 1.000000e+00 : f32
    %250 = vector.broadcast %cst_78 : f32 to vector<2x256xf32>
    %251 = arith.addf %250, %249 : vector<2x256xf32>
    %252 = arith.divf %250, %251 : vector<2x256xf32>
    %253 = vector.extract_strided_slice %252 {offsets = [0, 0], sizes = [2, 128], strides = [1, 1]} : vector<2x256xf32> to vector<2x128xf32>
    %254 = vector.extract_strided_slice %252 {offsets = [0, 128], sizes = [2, 128], strides = [1, 1]} : vector<2x256xf32> to vector<2x128xf32>
    %255 = vector.extract_strided_slice %246 {offsets = [0, 256], sizes = [2, 128], strides = [1, 1]} : vector<2x384xf32> to vector<2x128xf32>
    %256 = math.tanh %255 : vector<2x128xf32>
    %257 = vector.broadcast %233 : vector<1x128xf32> to vector<2x128xf32>
    %258 = arith.mulf %254, %257 : vector<2x128xf32>
    %259 = arith.mulf %253, %256 : vector<2x128xf32>
    %260 = arith.addf %258, %259 : vector<2x128xf32>
    %c4 = arith.constant 4 : index
    %261 = memref.load %arg2[%c4] : memref<16xi32, #tpu.memory_space<smem>>
    %262 = vector.extract_strided_slice %260 {offsets = [0, 0], sizes = [1, 128], strides = [1, 1]} : vector<2x128xf32> to vector<1x128xf32>
    %263 = arith.index_cast %261 : i32 to index
    %c0_79 = arith.constant 0 : index
    %264 = vector.load %arg13[%263, %c0_79] : memref<72x128xf32, #tpu.memory_space<vmem>>, vector<1x128xf32>
    tpu.vector_store %arg13[%263, %c0_79], %262 {strides = array<i32>} : memref<72x128xf32, #tpu.memory_space<vmem>>, vector<1x128xf32>,
    %c5 = arith.constant 5 : index
    %265 = memref.load %arg2[%c5] : memref<16xi32, #tpu.memory_space<smem>>
    %266 = vector.extract_strided_slice %260 {offsets = [1, 0], sizes = [1, 128], strides = [1, 1]} : vector<2x128xf32> to vector<1x128xf32>
    %267 = arith.index_cast %265 : i32 to index
    %c0_80 = arith.constant 0 : index
    %268 = vector.load %arg13[%267, %c0_80] : memref<72x128xf32, #tpu.memory_space<vmem>>, vector<1x128xf32>
    tpu.vector_store %arg13[%267, %c0_80], %266 {strides = array<i32>} : memref<72x128xf32, #tpu.memory_space<vmem>>, vector<1x128xf32>,
    %269 = vector.extract_strided_slice %5 {offsets = [3, 0], sizes = [1, 640], strides = [1, 1]} : vector<8x640xf32> to vector<1x640xf32>
    %270 = vector.extract_strided_slice %269 {offsets = [0, 0], sizes = [1, 512], strides = [1, 1]} : vector<1x640xf32> to vector<1x512xf32>
    %271 = arith.addf %270, %242 : vector<1x512xf32>
    %272 = vector.extract_strided_slice %271 {offsets = [0, 0], sizes = [1, 384], strides = [1, 1]} : vector<1x512xf32> to vector<1x384xf32>
    %273 = arith.negf %272 : vector<1x384xf32>
    %274 = math.exp %273 : vector<1x384xf32>
    %cst_81 = arith.constant 1.000000e+00 : f32
    %275 = vector.broadcast %cst_81 : f32 to vector<1x384xf32>
    %276 = arith.addf %275, %274 : vector<1x384xf32>
    %277 = arith.divf %275, %276 : vector<1x384xf32>
    %278 = vector.extract_strided_slice %277 {offsets = [0, 0], sizes = [1, 128], strides = [1, 1]} : vector<1x384xf32> to vector<1x128xf32>
    %279 = vector.extract_strided_slice %277 {offsets = [0, 128], sizes = [1, 128], strides = [1, 1]} : vector<1x384xf32> to vector<1x128xf32>
    %280 = vector.extract_strided_slice %277 {offsets = [0, 256], sizes = [1, 128], strides = [1, 1]} : vector<1x384xf32> to vector<1x128xf32>
    %281 = vector.extract_strided_slice %271 {offsets = [0, 384], sizes = [1, 128], strides = [1, 1]} : vector<1x512xf32> to vector<1x128xf32>
    %282 = math.tanh %281 : vector<1x128xf32>
    %283 = vector.extract_strided_slice %269 {offsets = [0, 512], sizes = [1, 128], strides = [1, 1]} : vector<1x640xf32> to vector<1x128xf32>
    %c3_82 = arith.constant 3 : index
    %284 = memref.load %arg1[%c3_82] : memref<8xi32, #tpu.memory_space<smem>>
    %c24 = arith.constant 24 : index
    %c0_83 = arith.constant 0 : index
    %285 = vector.load %arg13[%c24, %c0_83] : memref<72x128xf32, #tpu.memory_space<vmem>>, vector<8x128xf32>
    %286 = vector.extract_strided_slice %285 {offsets = [0, 0], sizes = [8, 32], strides = [1, 1]} : vector<8x128xf32> to vector<8x32xf32>
    %287 = arith.truncf %286 : vector<8x32xf32> to vector<8x32xbf16>
    %c0_84 = arith.constant 0 : index
    %c0_85 = arith.constant 0 : index
    %288 = vector.load %arg10[%c0_84, %c0_85] : memref<32x128xbf16, #tpu.memory_space<vmem>>, vector<32x128xbf16>
    %cst_86 = arith.constant dense<0.000000e+00> : vector<8x128xf32>
    %289 = tpu.matmul %287, %288, %cst_86 {dimension_numbers = #tpu.dot_dimension_numbers<[1], [0], [0], [1], [0, 0, 1, 1], [], []>} : vector<8x32xbf16>, vector<32x128xbf16>, vector<8x128xf32> -> vector<8x128xf32>
    %290 = vector.broadcast %283 : vector<1x128xf32> to vector<8x128xf32>
    %291 = arith.addf %290, %289 : vector<8x128xf32>
    %292 = arith.negf %291 : vector<8x128xf32>
    %293 = math.exp %292 : vector<8x128xf32>
    %cst_87 = arith.constant 1.000000e+00 : f32
    %294 = vector.broadcast %cst_87 : f32 to vector<8x128xf32>
    %295 = arith.addf %294, %293 : vector<8x128xf32>
    %296 = arith.divf %294, %295 : vector<8x128xf32>
    %297 = vector.broadcast %284 : i32 to vector<8x128xi32>
    %298 = arith.cmpi slt, %14, %297 : vector<8x128xi32>
    %299 = math.exp %296 : vector<8x128xf32>
    %cst_88 = arith.constant 0.000000e+00 : f32
    %300 = vector.broadcast %cst_88 : f32 to vector<8x128xf32>
    %301 = arith.select %298, %299, %300 : vector<8x128xi1>, vector<8x128xf32>
    %302 = math.exp %278 : vector<1x128xf32>
    %cst_89 = arith.constant dense<0.000000e+00> : vector<128xf32>
    %303 = vector.multi_reduction <add>, %301, %cst_89 [0] : vector<8x128xf32> to vector<128xf32>
    %304 = vector.shape_cast %303 : vector<128xf32> to vector<1x128xf32>
    %305 = arith.addf %302, %304 : vector<1x128xf32>
    %306 = arith.mulf %302, %282 : vector<1x128xf32>
    %307 = arith.mulf %301, %285 : vector<8x128xf32>
    %cst_90 = arith.constant dense<0.000000e+00> : vector<128xf32>
    %308 = vector.multi_reduction <add>, %307, %cst_90 [0] : vector<8x128xf32> to vector<128xf32>
    %309 = vector.shape_cast %308 : vector<128xf32> to vector<1x128xf32>
    %310 = arith.addf %306, %309 : vector<1x128xf32>
    %311 = tpu.reciprocal %305 {approx = true} : vector<1x128xf32> -> vector<1x128xf32>
    %312 = arith.mulf %310, %311 : vector<1x128xf32>
    %313 = arith.mulf %279, %233 : vector<1x128xf32>
    %314 = arith.mulf %278, %282 : vector<1x128xf32>
    %315 = arith.addf %313, %314 : vector<1x128xf32>
    %c0_i32_91 = arith.constant 0 : i32
    %316 = arith.cmpi sgt, %284, %c0_i32_91 : i32
    %317 = arith.select %316, %312, %315 : vector<1x128xf32>
    %318 = math.tanh %317 : vector<1x128xf32>
    %319 = arith.mulf %280, %318 : vector<1x128xf32>
    %c3_92 = arith.constant 3 : index
    %c0_93 = arith.constant 0 : index
    %320 = vector.load %arg11[%c3_92, %c0_93] : memref<8x128xf32, #tpu.memory_space<vmem>>, vector<1x128xf32>
    tpu.vector_store %arg11[%c3_92, %c0_93], %319 {strides = array<i32>} : memref<8x128xf32, #tpu.memory_space<vmem>>, vector<1x128xf32>,
    %c3_94 = arith.constant 3 : index
    %c0_95 = arith.constant 0 : index
    %321 = vector.load %arg12[%c3_94, %c0_95] : memref<8x128xf32, #tpu.memory_space<vmem>>, vector<1x128xf32>
    tpu.vector_store %arg12[%c3_94, %c0_95], %317 {strides = array<i32>} : memref<8x128xf32, #tpu.memory_space<vmem>>, vector<1x128xf32>,
    %322 = vector.extract_strided_slice %319 {offsets = [0, 0], sizes = [1, 32], strides = [1, 1]} : vector<1x128xf32> to vector<1x32xf32>
    %323 = arith.truncf %322 : vector<1x32xf32> to vector<1x32xbf16>
    %c0_96 = arith.constant 0 : index
    %c0_97 = arith.constant 0 : index
    %324 = vector.load %arg9[%c0_96, %c0_97] : memref<32x896xbf16, #tpu.memory_space<vmem>>, vector<32x896xbf16>
    %cst_98 = arith.constant dense<0.000000e+00> : vector<1x896xf32>
    %325 = tpu.matmul %323, %324, %cst_98 {dimension_numbers = #tpu.dot_dimension_numbers<[1], [0], [0], [1], [0, 0, 1, 1], [], []>} : vector<1x32xbf16>, vector<32x896xbf16>, vector<1x896xf32> -> vector<1x896xf32>
    %326 = vector.extract_strided_slice %325 {offsets = [0, 0], sizes = [1, 512], strides = [1, 1]} : vector<1x896xf32> to vector<1x512xf32>
    %327 = vector.extract_strided_slice %11 {offsets = [6, 0], sizes = [2, 384], strides = [1, 1]} : vector<16x384xf32> to vector<2x384xf32>
    %328 = vector.extract_strided_slice %325 {offsets = [0, 512], sizes = [1, 384], strides = [1, 1]} : vector<1x896xf32> to vector<1x384xf32>
    %329 = vector.broadcast %328 : vector<1x384xf32> to vector<2x384xf32>
    %330 = arith.addf %327, %329 : vector<2x384xf32>
    %331 = vector.extract_strided_slice %330 {offsets = [0, 0], sizes = [2, 256], strides = [1, 1]} : vector<2x384xf32> to vector<2x256xf32>
    %332 = arith.negf %331 : vector<2x256xf32>
    %333 = math.exp %332 : vector<2x256xf32>
    %cst_99 = arith.constant 1.000000e+00 : f32
    %334 = vector.broadcast %cst_99 : f32 to vector<2x256xf32>
    %335 = arith.addf %334, %333 : vector<2x256xf32>
    %336 = arith.divf %334, %335 : vector<2x256xf32>
    %337 = vector.extract_strided_slice %336 {offsets = [0, 0], sizes = [2, 128], strides = [1, 1]} : vector<2x256xf32> to vector<2x128xf32>
    %338 = vector.extract_strided_slice %336 {offsets = [0, 128], sizes = [2, 128], strides = [1, 1]} : vector<2x256xf32> to vector<2x128xf32>
    %339 = vector.extract_strided_slice %330 {offsets = [0, 256], sizes = [2, 128], strides = [1, 1]} : vector<2x384xf32> to vector<2x128xf32>
    %340 = math.tanh %339 : vector<2x128xf32>
    %341 = vector.broadcast %317 : vector<1x128xf32> to vector<2x128xf32>
    %342 = arith.mulf %338, %341 : vector<2x128xf32>
    %343 = arith.mulf %337, %340 : vector<2x128xf32>
    %344 = arith.addf %342, %343 : vector<2x128xf32>
    %c6 = arith.constant 6 : index
    %345 = memref.load %arg2[%c6] : memref<16xi32, #tpu.memory_space<smem>>
    %346 = vector.extract_strided_slice %344 {offsets = [0, 0], sizes = [1, 128], strides = [1, 1]} : vector<2x128xf32> to vector<1x128xf32>
    %347 = arith.index_cast %345 : i32 to index
    %c0_100 = arith.constant 0 : index
    %348 = vector.load %arg13[%347, %c0_100] : memref<72x128xf32, #tpu.memory_space<vmem>>, vector<1x128xf32>
    tpu.vector_store %arg13[%347, %c0_100], %346 {strides = array<i32>} : memref<72x128xf32, #tpu.memory_space<vmem>>, vector<1x128xf32>,
    %c7 = arith.constant 7 : index
    %349 = memref.load %arg2[%c7] : memref<16xi32, #tpu.memory_space<smem>>
    %350 = vector.extract_strided_slice %344 {offsets = [1, 0], sizes = [1, 128], strides = [1, 1]} : vector<2x128xf32> to vector<1x128xf32>
    %351 = arith.index_cast %349 : i32 to index
    %c0_101 = arith.constant 0 : index
    %352 = vector.load %arg13[%351, %c0_101] : memref<72x128xf32, #tpu.memory_space<vmem>>, vector<1x128xf32>
    tpu.vector_store %arg13[%351, %c0_101], %350 {strides = array<i32>} : memref<72x128xf32, #tpu.memory_space<vmem>>, vector<1x128xf32>,
    %353 = vector.extract_strided_slice %5 {offsets = [4, 0], sizes = [1, 640], strides = [1, 1]} : vector<8x640xf32> to vector<1x640xf32>
    %354 = vector.extract_strided_slice %353 {offsets = [0, 0], sizes = [1, 512], strides = [1, 1]} : vector<1x640xf32> to vector<1x512xf32>
    %355 = arith.addf %354, %326 : vector<1x512xf32>
    %356 = vector.extract_strided_slice %355 {offsets = [0, 0], sizes = [1, 384], strides = [1, 1]} : vector<1x512xf32> to vector<1x384xf32>
    %357 = arith.negf %356 : vector<1x384xf32>
    %358 = math.exp %357 : vector<1x384xf32>
    %cst_102 = arith.constant 1.000000e+00 : f32
    %359 = vector.broadcast %cst_102 : f32 to vector<1x384xf32>
    %360 = arith.addf %359, %358 : vector<1x384xf32>
    %361 = arith.divf %359, %360 : vector<1x384xf32>
    %362 = vector.extract_strided_slice %361 {offsets = [0, 0], sizes = [1, 128], strides = [1, 1]} : vector<1x384xf32> to vector<1x128xf32>
    %363 = vector.extract_strided_slice %361 {offsets = [0, 128], sizes = [1, 128], strides = [1, 1]} : vector<1x384xf32> to vector<1x128xf32>
    %364 = vector.extract_strided_slice %361 {offsets = [0, 256], sizes = [1, 128], strides = [1, 1]} : vector<1x384xf32> to vector<1x128xf32>
    %365 = vector.extract_strided_slice %355 {offsets = [0, 384], sizes = [1, 128], strides = [1, 1]} : vector<1x512xf32> to vector<1x128xf32>
    %366 = math.tanh %365 : vector<1x128xf32>
    %367 = vector.extract_strided_slice %353 {offsets = [0, 512], sizes = [1, 128], strides = [1, 1]} : vector<1x640xf32> to vector<1x128xf32>
    %c4_103 = arith.constant 4 : index
    %368 = memref.load %arg1[%c4_103] : memref<8xi32, #tpu.memory_space<smem>>
    %c32 = arith.constant 32 : index
    %c0_104 = arith.constant 0 : index
    %369 = vector.load %arg13[%c32, %c0_104] : memref<72x128xf32, #tpu.memory_space<vmem>>, vector<8x128xf32>
    %370 = vector.extract_strided_slice %369 {offsets = [0, 0], sizes = [8, 32], strides = [1, 1]} : vector<8x128xf32> to vector<8x32xf32>
    %371 = arith.truncf %370 : vector<8x32xf32> to vector<8x32xbf16>
    %c0_105 = arith.constant 0 : index
    %c0_106 = arith.constant 0 : index
    %372 = vector.load %arg10[%c0_105, %c0_106] : memref<32x128xbf16, #tpu.memory_space<vmem>>, vector<32x128xbf16>
    %cst_107 = arith.constant dense<0.000000e+00> : vector<8x128xf32>
    %373 = tpu.matmul %371, %372, %cst_107 {dimension_numbers = #tpu.dot_dimension_numbers<[1], [0], [0], [1], [0, 0, 1, 1], [], []>} : vector<8x32xbf16>, vector<32x128xbf16>, vector<8x128xf32> -> vector<8x128xf32>
    %374 = vector.broadcast %367 : vector<1x128xf32> to vector<8x128xf32>
    %375 = arith.addf %374, %373 : vector<8x128xf32>
    %376 = arith.negf %375 : vector<8x128xf32>
    %377 = math.exp %376 : vector<8x128xf32>
    %cst_108 = arith.constant 1.000000e+00 : f32
    %378 = vector.broadcast %cst_108 : f32 to vector<8x128xf32>
    %379 = arith.addf %378, %377 : vector<8x128xf32>
    %380 = arith.divf %378, %379 : vector<8x128xf32>
    %381 = vector.broadcast %368 : i32 to vector<8x128xi32>
    %382 = arith.cmpi slt, %14, %381 : vector<8x128xi32>
    %383 = math.exp %380 : vector<8x128xf32>
    %cst_109 = arith.constant 0.000000e+00 : f32
    %384 = vector.broadcast %cst_109 : f32 to vector<8x128xf32>
    %385 = arith.select %382, %383, %384 : vector<8x128xi1>, vector<8x128xf32>
    %386 = math.exp %362 : vector<1x128xf32>
    %cst_110 = arith.constant dense<0.000000e+00> : vector<128xf32>
    %387 = vector.multi_reduction <add>, %385, %cst_110 [0] : vector<8x128xf32> to vector<128xf32>
    %388 = vector.shape_cast %387 : vector<128xf32> to vector<1x128xf32>
    %389 = arith.addf %386, %388 : vector<1x128xf32>
    %390 = arith.mulf %386, %366 : vector<1x128xf32>
    %391 = arith.mulf %385, %369 : vector<8x128xf32>
    %cst_111 = arith.constant dense<0.000000e+00> : vector<128xf32>
    %392 = vector.multi_reduction <add>, %391, %cst_111 [0] : vector<8x128xf32> to vector<128xf32>
    %393 = vector.shape_cast %392 : vector<128xf32> to vector<1x128xf32>
    %394 = arith.addf %390, %393 : vector<1x128xf32>
    %395 = tpu.reciprocal %389 {approx = true} : vector<1x128xf32> -> vector<1x128xf32>
    %396 = arith.mulf %394, %395 : vector<1x128xf32>
    %397 = arith.mulf %363, %317 : vector<1x128xf32>
    %398 = arith.mulf %362, %366 : vector<1x128xf32>
    %399 = arith.addf %397, %398 : vector<1x128xf32>
    %c0_i32_112 = arith.constant 0 : i32
    %400 = arith.cmpi sgt, %368, %c0_i32_112 : i32
    %401 = arith.select %400, %396, %399 : vector<1x128xf32>
    %402 = math.tanh %401 : vector<1x128xf32>
    %403 = arith.mulf %364, %402 : vector<1x128xf32>
    %c4_113 = arith.constant 4 : index
    %c0_114 = arith.constant 0 : index
    %404 = vector.load %arg11[%c4_113, %c0_114] : memref<8x128xf32, #tpu.memory_space<vmem>>, vector<1x128xf32>
    tpu.vector_store %arg11[%c4_113, %c0_114], %403 {strides = array<i32>} : memref<8x128xf32, #tpu.memory_space<vmem>>, vector<1x128xf32>,
    %c4_115 = arith.constant 4 : index
    %c0_116 = arith.constant 0 : index
    %405 = vector.load %arg12[%c4_115, %c0_116] : memref<8x128xf32, #tpu.memory_space<vmem>>, vector<1x128xf32>
    tpu.vector_store %arg12[%c4_115, %c0_116], %401 {strides = array<i32>} : memref<8x128xf32, #tpu.memory_space<vmem>>, vector<1x128xf32>,
    %406 = vector.extract_strided_slice %403 {offsets = [0, 0], sizes = [1, 32], strides = [1, 1]} : vector<1x128xf32> to vector<1x32xf32>
    %407 = arith.truncf %406 : vector<1x32xf32> to vector<1x32xbf16>
    %c0_117 = arith.constant 0 : index
    %c0_118 = arith.constant 0 : index
    %408 = vector.load %arg9[%c0_117, %c0_118] : memref<32x896xbf16, #tpu.memory_space<vmem>>, vector<32x896xbf16>
    %cst_119 = arith.constant dense<0.000000e+00> : vector<1x896xf32>
    %409 = tpu.matmul %407, %408, %cst_119 {dimension_numbers = #tpu.dot_dimension_numbers<[1], [0], [0], [1], [0, 0, 1, 1], [], []>} : vector<1x32xbf16>, vector<32x896xbf16>, vector<1x896xf32> -> vector<1x896xf32>
    %410 = vector.extract_strided_slice %409 {offsets = [0, 0], sizes = [1, 512], strides = [1, 1]} : vector<1x896xf32> to vector<1x512xf32>
    %411 = vector.extract_strided_slice %11 {offsets = [8, 0], sizes = [2, 384], strides = [1, 1]} : vector<16x384xf32> to vector<2x384xf32>
    %412 = vector.extract_strided_slice %409 {offsets = [0, 512], sizes = [1, 384], strides = [1, 1]} : vector<1x896xf32> to vector<1x384xf32>
    %413 = vector.broadcast %412 : vector<1x384xf32> to vector<2x384xf32>
    %414 = arith.addf %411, %413 : vector<2x384xf32>
    %415 = vector.extract_strided_slice %414 {offsets = [0, 0], sizes = [2, 256], strides = [1, 1]} : vector<2x384xf32> to vector<2x256xf32>
    %416 = arith.negf %415 : vector<2x256xf32>
    %417 = math.exp %416 : vector<2x256xf32>
    %cst_120 = arith.constant 1.000000e+00 : f32
    %418 = vector.broadcast %cst_120 : f32 to vector<2x256xf32>
    %419 = arith.addf %418, %417 : vector<2x256xf32>
    %420 = arith.divf %418, %419 : vector<2x256xf32>
    %421 = vector.extract_strided_slice %420 {offsets = [0, 0], sizes = [2, 128], strides = [1, 1]} : vector<2x256xf32> to vector<2x128xf32>
    %422 = vector.extract_strided_slice %420 {offsets = [0, 128], sizes = [2, 128], strides = [1, 1]} : vector<2x256xf32> to vector<2x128xf32>
    %423 = vector.extract_strided_slice %414 {offsets = [0, 256], sizes = [2, 128], strides = [1, 1]} : vector<2x384xf32> to vector<2x128xf32>
    %424 = math.tanh %423 : vector<2x128xf32>
    %425 = vector.broadcast %401 : vector<1x128xf32> to vector<2x128xf32>
    %426 = arith.mulf %422, %425 : vector<2x128xf32>
    %427 = arith.mulf %421, %424 : vector<2x128xf32>
    %428 = arith.addf %426, %427 : vector<2x128xf32>
    %c8_121 = arith.constant 8 : index
    %429 = memref.load %arg2[%c8_121] : memref<16xi32, #tpu.memory_space<smem>>
    %430 = vector.extract_strided_slice %428 {offsets = [0, 0], sizes = [1, 128], strides = [1, 1]} : vector<2x128xf32> to vector<1x128xf32>
    %431 = arith.index_cast %429 : i32 to index
    %c0_122 = arith.constant 0 : index
    %432 = vector.load %arg13[%431, %c0_122] : memref<72x128xf32, #tpu.memory_space<vmem>>, vector<1x128xf32>
    tpu.vector_store %arg13[%431, %c0_122], %430 {strides = array<i32>} : memref<72x128xf32, #tpu.memory_space<vmem>>, vector<1x128xf32>,
    %c9 = arith.constant 9 : index
    %433 = memref.load %arg2[%c9] : memref<16xi32, #tpu.memory_space<smem>>
    %434 = vector.extract_strided_slice %428 {offsets = [1, 0], sizes = [1, 128], strides = [1, 1]} : vector<2x128xf32> to vector<1x128xf32>
    %435 = arith.index_cast %433 : i32 to index
    %c0_123 = arith.constant 0 : index
    %436 = vector.load %arg13[%435, %c0_123] : memref<72x128xf32, #tpu.memory_space<vmem>>, vector<1x128xf32>
    tpu.vector_store %arg13[%435, %c0_123], %434 {strides = array<i32>} : memref<72x128xf32, #tpu.memory_space<vmem>>, vector<1x128xf32>,
    %437 = vector.extract_strided_slice %5 {offsets = [5, 0], sizes = [1, 640], strides = [1, 1]} : vector<8x640xf32> to vector<1x640xf32>
    %438 = vector.extract_strided_slice %437 {offsets = [0, 0], sizes = [1, 512], strides = [1, 1]} : vector<1x640xf32> to vector<1x512xf32>
    %439 = arith.addf %438, %410 : vector<1x512xf32>
    %440 = vector.extract_strided_slice %439 {offsets = [0, 0], sizes = [1, 384], strides = [1, 1]} : vector<1x512xf32> to vector<1x384xf32>
    %441 = arith.negf %440 : vector<1x384xf32>
    %442 = math.exp %441 : vector<1x384xf32>
    %cst_124 = arith.constant 1.000000e+00 : f32
    %443 = vector.broadcast %cst_124 : f32 to vector<1x384xf32>
    %444 = arith.addf %443, %442 : vector<1x384xf32>
    %445 = arith.divf %443, %444 : vector<1x384xf32>
    %446 = vector.extract_strided_slice %445 {offsets = [0, 0], sizes = [1, 128], strides = [1, 1]} : vector<1x384xf32> to vector<1x128xf32>
    %447 = vector.extract_strided_slice %445 {offsets = [0, 128], sizes = [1, 128], strides = [1, 1]} : vector<1x384xf32> to vector<1x128xf32>
    %448 = vector.extract_strided_slice %445 {offsets = [0, 256], sizes = [1, 128], strides = [1, 1]} : vector<1x384xf32> to vector<1x128xf32>
    %449 = vector.extract_strided_slice %439 {offsets = [0, 384], sizes = [1, 128], strides = [1, 1]} : vector<1x512xf32> to vector<1x128xf32>
    %450 = math.tanh %449 : vector<1x128xf32>
    %451 = vector.extract_strided_slice %437 {offsets = [0, 512], sizes = [1, 128], strides = [1, 1]} : vector<1x640xf32> to vector<1x128xf32>
    %c5_125 = arith.constant 5 : index
    %452 = memref.load %arg1[%c5_125] : memref<8xi32, #tpu.memory_space<smem>>
    %c40 = arith.constant 40 : index
    %c0_126 = arith.constant 0 : index
    %453 = vector.load %arg13[%c40, %c0_126] : memref<72x128xf32, #tpu.memory_space<vmem>>, vector<8x128xf32>
    %454 = vector.extract_strided_slice %453 {offsets = [0, 0], sizes = [8, 32], strides = [1, 1]} : vector<8x128xf32> to vector<8x32xf32>
    %455 = arith.truncf %454 : vector<8x32xf32> to vector<8x32xbf16>
    %c0_127 = arith.constant 0 : index
    %c0_128 = arith.constant 0 : index
    %456 = vector.load %arg10[%c0_127, %c0_128] : memref<32x128xbf16, #tpu.memory_space<vmem>>, vector<32x128xbf16>
    %cst_129 = arith.constant dense<0.000000e+00> : vector<8x128xf32>
    %457 = tpu.matmul %455, %456, %cst_129 {dimension_numbers = #tpu.dot_dimension_numbers<[1], [0], [0], [1], [0, 0, 1, 1], [], []>} : vector<8x32xbf16>, vector<32x128xbf16>, vector<8x128xf32> -> vector<8x128xf32>
    %458 = vector.broadcast %451 : vector<1x128xf32> to vector<8x128xf32>
    %459 = arith.addf %458, %457 : vector<8x128xf32>
    %460 = arith.negf %459 : vector<8x128xf32>
    %461 = math.exp %460 : vector<8x128xf32>
    %cst_130 = arith.constant 1.000000e+00 : f32
    %462 = vector.broadcast %cst_130 : f32 to vector<8x128xf32>
    %463 = arith.addf %462, %461 : vector<8x128xf32>
    %464 = arith.divf %462, %463 : vector<8x128xf32>
    %465 = vector.broadcast %452 : i32 to vector<8x128xi32>
    %466 = arith.cmpi slt, %14, %465 : vector<8x128xi32>
    %467 = math.exp %464 : vector<8x128xf32>
    %cst_131 = arith.constant 0.000000e+00 : f32
    %468 = vector.broadcast %cst_131 : f32 to vector<8x128xf32>
    %469 = arith.select %466, %467, %468 : vector<8x128xi1>, vector<8x128xf32>
    %470 = math.exp %446 : vector<1x128xf32>
    %cst_132 = arith.constant dense<0.000000e+00> : vector<128xf32>
    %471 = vector.multi_reduction <add>, %469, %cst_132 [0] : vector<8x128xf32> to vector<128xf32>
    %472 = vector.shape_cast %471 : vector<128xf32> to vector<1x128xf32>
    %473 = arith.addf %470, %472 : vector<1x128xf32>
    %474 = arith.mulf %470, %450 : vector<1x128xf32>
    %475 = arith.mulf %469, %453 : vector<8x128xf32>
    %cst_133 = arith.constant dense<0.000000e+00> : vector<128xf32>
    %476 = vector.multi_reduction <add>, %475, %cst_133 [0] : vector<8x128xf32> to vector<128xf32>
    %477 = vector.shape_cast %476 : vector<128xf32> to vector<1x128xf32>
    %478 = arith.addf %474, %477 : vector<1x128xf32>
    %479 = tpu.reciprocal %473 {approx = true} : vector<1x128xf32> -> vector<1x128xf32>
    %480 = arith.mulf %478, %479 : vector<1x128xf32>
    %481 = arith.mulf %447, %401 : vector<1x128xf32>
    %482 = arith.mulf %446, %450 : vector<1x128xf32>
    %483 = arith.addf %481, %482 : vector<1x128xf32>
    %c0_i32_134 = arith.constant 0 : i32
    %484 = arith.cmpi sgt, %452, %c0_i32_134 : i32
    %485 = arith.select %484, %480, %483 : vector<1x128xf32>
    %486 = math.tanh %485 : vector<1x128xf32>
    %487 = arith.mulf %448, %486 : vector<1x128xf32>
    %c5_135 = arith.constant 5 : index
    %c0_136 = arith.constant 0 : index
    %488 = vector.load %arg11[%c5_135, %c0_136] : memref<8x128xf32, #tpu.memory_space<vmem>>, vector<1x128xf32>
    tpu.vector_store %arg11[%c5_135, %c0_136], %487 {strides = array<i32>} : memref<8x128xf32, #tpu.memory_space<vmem>>, vector<1x128xf32>,
    %c5_137 = arith.constant 5 : index
    %c0_138 = arith.constant 0 : index
    %489 = vector.load %arg12[%c5_137, %c0_138] : memref<8x128xf32, #tpu.memory_space<vmem>>, vector<1x128xf32>
    tpu.vector_store %arg12[%c5_137, %c0_138], %485 {strides = array<i32>} : memref<8x128xf32, #tpu.memory_space<vmem>>, vector<1x128xf32>,
    %490 = vector.extract_strided_slice %487 {offsets = [0, 0], sizes = [1, 32], strides = [1, 1]} : vector<1x128xf32> to vector<1x32xf32>
    %491 = arith.truncf %490 : vector<1x32xf32> to vector<1x32xbf16>
    %c0_139 = arith.constant 0 : index
    %c0_140 = arith.constant 0 : index
    %492 = vector.load %arg9[%c0_139, %c0_140] : memref<32x896xbf16, #tpu.memory_space<vmem>>, vector<32x896xbf16>
    %cst_141 = arith.constant dense<0.000000e+00> : vector<1x896xf32>
    %493 = tpu.matmul %491, %492, %cst_141 {dimension_numbers = #tpu.dot_dimension_numbers<[1], [0], [0], [1], [0, 0, 1, 1], [], []>} : vector<1x32xbf16>, vector<32x896xbf16>, vector<1x896xf32> -> vector<1x896xf32>
    %494 = vector.extract_strided_slice %493 {offsets = [0, 0], sizes = [1, 512], strides = [1, 1]} : vector<1x896xf32> to vector<1x512xf32>
    %495 = vector.extract_strided_slice %11 {offsets = [10, 0], sizes = [2, 384], strides = [1, 1]} : vector<16x384xf32> to vector<2x384xf32>
    %496 = vector.extract_strided_slice %493 {offsets = [0, 512], sizes = [1, 384], strides = [1, 1]} : vector<1x896xf32> to vector<1x384xf32>
    %497 = vector.broadcast %496 : vector<1x384xf32> to vector<2x384xf32>
    %498 = arith.addf %495, %497 : vector<2x384xf32>
    %499 = vector.extract_strided_slice %498 {offsets = [0, 0], sizes = [2, 256], strides = [1, 1]} : vector<2x384xf32> to vector<2x256xf32>
    %500 = arith.negf %499 : vector<2x256xf32>
    %501 = math.exp %500 : vector<2x256xf32>
    %cst_142 = arith.constant 1.000000e+00 : f32
    %502 = vector.broadcast %cst_142 : f32 to vector<2x256xf32>
    %503 = arith.addf %502, %501 : vector<2x256xf32>
    %504 = arith.divf %502, %503 : vector<2x256xf32>
    %505 = vector.extract_strided_slice %504 {offsets = [0, 0], sizes = [2, 128], strides = [1, 1]} : vector<2x256xf32> to vector<2x128xf32>
    %506 = vector.extract_strided_slice %504 {offsets = [0, 128], sizes = [2, 128], strides = [1, 1]} : vector<2x256xf32> to vector<2x128xf32>
    %507 = vector.extract_strided_slice %498 {offsets = [0, 256], sizes = [2, 128], strides = [1, 1]} : vector<2x384xf32> to vector<2x128xf32>
    %508 = math.tanh %507 : vector<2x128xf32>
    %509 = vector.broadcast %485 : vector<1x128xf32> to vector<2x128xf32>
    %510 = arith.mulf %506, %509 : vector<2x128xf32>
    %511 = arith.mulf %505, %508 : vector<2x128xf32>
    %512 = arith.addf %510, %511 : vector<2x128xf32>
    %c10 = arith.constant 10 : index
    %513 = memref.load %arg2[%c10] : memref<16xi32, #tpu.memory_space<smem>>
    %514 = vector.extract_strided_slice %512 {offsets = [0, 0], sizes = [1, 128], strides = [1, 1]} : vector<2x128xf32> to vector<1x128xf32>
    %515 = arith.index_cast %513 : i32 to index
    %c0_143 = arith.constant 0 : index
    %516 = vector.load %arg13[%515, %c0_143] : memref<72x128xf32, #tpu.memory_space<vmem>>, vector<1x128xf32>
    tpu.vector_store %arg13[%515, %c0_143], %514 {strides = array<i32>} : memref<72x128xf32, #tpu.memory_space<vmem>>, vector<1x128xf32>,
    %c11 = arith.constant 11 : index
    %517 = memref.load %arg2[%c11] : memref<16xi32, #tpu.memory_space<smem>>
    %518 = vector.extract_strided_slice %512 {offsets = [1, 0], sizes = [1, 128], strides = [1, 1]} : vector<2x128xf32> to vector<1x128xf32>
    %519 = arith.index_cast %517 : i32 to index
    %c0_144 = arith.constant 0 : index
    %520 = vector.load %arg13[%519, %c0_144] : memref<72x128xf32, #tpu.memory_space<vmem>>, vector<1x128xf32>
    tpu.vector_store %arg13[%519, %c0_144], %518 {strides = array<i32>} : memref<72x128xf32, #tpu.memory_space<vmem>>, vector<1x128xf32>,
    %521 = vector.extract_strided_slice %5 {offsets = [6, 0], sizes = [1, 640], strides = [1, 1]} : vector<8x640xf32> to vector<1x640xf32>
    %522 = vector.extract_strided_slice %521 {offsets = [0, 0], sizes = [1, 512], strides = [1, 1]} : vector<1x640xf32> to vector<1x512xf32>
    %523 = arith.addf %522, %494 : vector<1x512xf32>
    %524 = vector.extract_strided_slice %523 {offsets = [0, 0], sizes = [1, 384], strides = [1, 1]} : vector<1x512xf32> to vector<1x384xf32>
    %525 = arith.negf %524 : vector<1x384xf32>
    %526 = math.exp %525 : vector<1x384xf32>
    %cst_145 = arith.constant 1.000000e+00 : f32
    %527 = vector.broadcast %cst_145 : f32 to vector<1x384xf32>
    %528 = arith.addf %527, %526 : vector<1x384xf32>
    %529 = arith.divf %527, %528 : vector<1x384xf32>
    %530 = vector.extract_strided_slice %529 {offsets = [0, 0], sizes = [1, 128], strides = [1, 1]} : vector<1x384xf32> to vector<1x128xf32>
    %531 = vector.extract_strided_slice %529 {offsets = [0, 128], sizes = [1, 128], strides = [1, 1]} : vector<1x384xf32> to vector<1x128xf32>
    %532 = vector.extract_strided_slice %529 {offsets = [0, 256], sizes = [1, 128], strides = [1, 1]} : vector<1x384xf32> to vector<1x128xf32>
    %533 = vector.extract_strided_slice %523 {offsets = [0, 384], sizes = [1, 128], strides = [1, 1]} : vector<1x512xf32> to vector<1x128xf32>
    %534 = math.tanh %533 : vector<1x128xf32>
    %535 = vector.extract_strided_slice %521 {offsets = [0, 512], sizes = [1, 128], strides = [1, 1]} : vector<1x640xf32> to vector<1x128xf32>
    %c6_146 = arith.constant 6 : index
    %536 = memref.load %arg1[%c6_146] : memref<8xi32, #tpu.memory_space<smem>>
    %c48 = arith.constant 48 : index
    %c0_147 = arith.constant 0 : index
    %537 = vector.load %arg13[%c48, %c0_147] : memref<72x128xf32, #tpu.memory_space<vmem>>, vector<8x128xf32>
    %538 = vector.extract_strided_slice %537 {offsets = [0, 0], sizes = [8, 32], strides = [1, 1]} : vector<8x128xf32> to vector<8x32xf32>
    %539 = arith.truncf %538 : vector<8x32xf32> to vector<8x32xbf16>
    %c0_148 = arith.constant 0 : index
    %c0_149 = arith.constant 0 : index
    %540 = vector.load %arg10[%c0_148, %c0_149] : memref<32x128xbf16, #tpu.memory_space<vmem>>, vector<32x128xbf16>
    %cst_150 = arith.constant dense<0.000000e+00> : vector<8x128xf32>
    %541 = tpu.matmul %539, %540, %cst_150 {dimension_numbers = #tpu.dot_dimension_numbers<[1], [0], [0], [1], [0, 0, 1, 1], [], []>} : vector<8x32xbf16>, vector<32x128xbf16>, vector<8x128xf32> -> vector<8x128xf32>
    %542 = vector.broadcast %535 : vector<1x128xf32> to vector<8x128xf32>
    %543 = arith.addf %542, %541 : vector<8x128xf32>
    %544 = arith.negf %543 : vector<8x128xf32>
    %545 = math.exp %544 : vector<8x128xf32>
    %cst_151 = arith.constant 1.000000e+00 : f32
    %546 = vector.broadcast %cst_151 : f32 to vector<8x128xf32>
    %547 = arith.addf %546, %545 : vector<8x128xf32>
    %548 = arith.divf %546, %547 : vector<8x128xf32>
    %549 = vector.broadcast %536 : i32 to vector<8x128xi32>
    %550 = arith.cmpi slt, %14, %549 : vector<8x128xi32>
    %551 = math.exp %548 : vector<8x128xf32>
    %cst_152 = arith.constant 0.000000e+00 : f32
    %552 = vector.broadcast %cst_152 : f32 to vector<8x128xf32>
    %553 = arith.select %550, %551, %552 : vector<8x128xi1>, vector<8x128xf32>
    %554 = math.exp %530 : vector<1x128xf32>
    %cst_153 = arith.constant dense<0.000000e+00> : vector<128xf32>
    %555 = vector.multi_reduction <add>, %553, %cst_153 [0] : vector<8x128xf32> to vector<128xf32>
    %556 = vector.shape_cast %555 : vector<128xf32> to vector<1x128xf32>
    %557 = arith.addf %554, %556 : vector<1x128xf32>
    %558 = arith.mulf %554, %534 : vector<1x128xf32>
    %559 = arith.mulf %553, %537 : vector<8x128xf32>
    %cst_154 = arith.constant dense<0.000000e+00> : vector<128xf32>
    %560 = vector.multi_reduction <add>, %559, %cst_154 [0] : vector<8x128xf32> to vector<128xf32>
    %561 = vector.shape_cast %560 : vector<128xf32> to vector<1x128xf32>
    %562 = arith.addf %558, %561 : vector<1x128xf32>
    %563 = tpu.reciprocal %557 {approx = true} : vector<1x128xf32> -> vector<1x128xf32>
    %564 = arith.mulf %562, %563 : vector<1x128xf32>
    %565 = arith.mulf %531, %485 : vector<1x128xf32>
    %566 = arith.mulf %530, %534 : vector<1x128xf32>
    %567 = arith.addf %565, %566 : vector<1x128xf32>
    %c0_i32_155 = arith.constant 0 : i32
    %568 = arith.cmpi sgt, %536, %c0_i32_155 : i32
    %569 = arith.select %568, %564, %567 : vector<1x128xf32>
    %570 = math.tanh %569 : vector<1x128xf32>
    %571 = arith.mulf %532, %570 : vector<1x128xf32>
    %c6_156 = arith.constant 6 : index
    %c0_157 = arith.constant 0 : index
    %572 = vector.load %arg11[%c6_156, %c0_157] : memref<8x128xf32, #tpu.memory_space<vmem>>, vector<1x128xf32>
    tpu.vector_store %arg11[%c6_156, %c0_157], %571 {strides = array<i32>} : memref<8x128xf32, #tpu.memory_space<vmem>>, vector<1x128xf32>,
    %c6_158 = arith.constant 6 : index
    %c0_159 = arith.constant 0 : index
    %573 = vector.load %arg12[%c6_158, %c0_159] : memref<8x128xf32, #tpu.memory_space<vmem>>, vector<1x128xf32>
    tpu.vector_store %arg12[%c6_158, %c0_159], %569 {strides = array<i32>} : memref<8x128xf32, #tpu.memory_space<vmem>>, vector<1x128xf32>,
    %574 = vector.extract_strided_slice %571 {offsets = [0, 0], sizes = [1, 32], strides = [1, 1]} : vector<1x128xf32> to vector<1x32xf32>
    %575 = arith.truncf %574 : vector<1x32xf32> to vector<1x32xbf16>
    %c0_160 = arith.constant 0 : index
    %c0_161 = arith.constant 0 : index
    %576 = vector.load %arg9[%c0_160, %c0_161] : memref<32x896xbf16, #tpu.memory_space<vmem>>, vector<32x896xbf16>
    %cst_162 = arith.constant dense<0.000000e+00> : vector<1x896xf32>
    %577 = tpu.matmul %575, %576, %cst_162 {dimension_numbers = #tpu.dot_dimension_numbers<[1], [0], [0], [1], [0, 0, 1, 1], [], []>} : vector<1x32xbf16>, vector<32x896xbf16>, vector<1x896xf32> -> vector<1x896xf32>
    %578 = vector.extract_strided_slice %577 {offsets = [0, 0], sizes = [1, 512], strides = [1, 1]} : vector<1x896xf32> to vector<1x512xf32>
    %579 = vector.extract_strided_slice %11 {offsets = [12, 0], sizes = [2, 384], strides = [1, 1]} : vector<16x384xf32> to vector<2x384xf32>
    %580 = vector.extract_strided_slice %577 {offsets = [0, 512], sizes = [1, 384], strides = [1, 1]} : vector<1x896xf32> to vector<1x384xf32>
    %581 = vector.broadcast %580 : vector<1x384xf32> to vector<2x384xf32>
    %582 = arith.addf %579, %581 : vector<2x384xf32>
    %583 = vector.extract_strided_slice %582 {offsets = [0, 0], sizes = [2, 256], strides = [1, 1]} : vector<2x384xf32> to vector<2x256xf32>
    %584 = arith.negf %583 : vector<2x256xf32>
    %585 = math.exp %584 : vector<2x256xf32>
    %cst_163 = arith.constant 1.000000e+00 : f32
    %586 = vector.broadcast %cst_163 : f32 to vector<2x256xf32>
    %587 = arith.addf %586, %585 : vector<2x256xf32>
    %588 = arith.divf %586, %587 : vector<2x256xf32>
    %589 = vector.extract_strided_slice %588 {offsets = [0, 0], sizes = [2, 128], strides = [1, 1]} : vector<2x256xf32> to vector<2x128xf32>
    %590 = vector.extract_strided_slice %588 {offsets = [0, 128], sizes = [2, 128], strides = [1, 1]} : vector<2x256xf32> to vector<2x128xf32>
    %591 = vector.extract_strided_slice %582 {offsets = [0, 256], sizes = [2, 128], strides = [1, 1]} : vector<2x384xf32> to vector<2x128xf32>
    %592 = math.tanh %591 : vector<2x128xf32>
    %593 = vector.broadcast %569 : vector<1x128xf32> to vector<2x128xf32>
    %594 = arith.mulf %590, %593 : vector<2x128xf32>
    %595 = arith.mulf %589, %592 : vector<2x128xf32>
    %596 = arith.addf %594, %595 : vector<2x128xf32>
    %c12 = arith.constant 12 : index
    %597 = memref.load %arg2[%c12] : memref<16xi32, #tpu.memory_space<smem>>
    %598 = vector.extract_strided_slice %596 {offsets = [0, 0], sizes = [1, 128], strides = [1, 1]} : vector<2x128xf32> to vector<1x128xf32>
    %599 = arith.index_cast %597 : i32 to index
    %c0_164 = arith.constant 0 : index
    %600 = vector.load %arg13[%599, %c0_164] : memref<72x128xf32, #tpu.memory_space<vmem>>, vector<1x128xf32>
    tpu.vector_store %arg13[%599, %c0_164], %598 {strides = array<i32>} : memref<72x128xf32, #tpu.memory_space<vmem>>, vector<1x128xf32>,
    %c13 = arith.constant 13 : index
    %601 = memref.load %arg2[%c13] : memref<16xi32, #tpu.memory_space<smem>>
    %602 = vector.extract_strided_slice %596 {offsets = [1, 0], sizes = [1, 128], strides = [1, 1]} : vector<2x128xf32> to vector<1x128xf32>
    %603 = arith.index_cast %601 : i32 to index
    %c0_165 = arith.constant 0 : index
    %604 = vector.load %arg13[%603, %c0_165] : memref<72x128xf32, #tpu.memory_space<vmem>>, vector<1x128xf32>
    tpu.vector_store %arg13[%603, %c0_165], %602 {strides = array<i32>} : memref<72x128xf32, #tpu.memory_space<vmem>>, vector<1x128xf32>,
    %605 = vector.extract_strided_slice %5 {offsets = [7, 0], sizes = [1, 640], strides = [1, 1]} : vector<8x640xf32> to vector<1x640xf32>
    %606 = vector.extract_strided_slice %605 {offsets = [0, 0], sizes = [1, 512], strides = [1, 1]} : vector<1x640xf32> to vector<1x512xf32>
    %607 = arith.addf %606, %578 : vector<1x512xf32>
    %608 = vector.extract_strided_slice %607 {offsets = [0, 0], sizes = [1, 384], strides = [1, 1]} : vector<1x512xf32> to vector<1x384xf32>
    %609 = arith.negf %608 : vector<1x384xf32>
    %610 = math.exp %609 : vector<1x384xf32>
    %cst_166 = arith.constant 1.000000e+00 : f32
    %611 = vector.broadcast %cst_166 : f32 to vector<1x384xf32>
    %612 = arith.addf %611, %610 : vector<1x384xf32>
    %613 = arith.divf %611, %612 : vector<1x384xf32>
    %614 = vector.extract_strided_slice %613 {offsets = [0, 0], sizes = [1, 128], strides = [1, 1]} : vector<1x384xf32> to vector<1x128xf32>
    %615 = vector.extract_strided_slice %613 {offsets = [0, 128], sizes = [1, 128], strides = [1, 1]} : vector<1x384xf32> to vector<1x128xf32>
    %616 = vector.extract_strided_slice %613 {offsets = [0, 256], sizes = [1, 128], strides = [1, 1]} : vector<1x384xf32> to vector<1x128xf32>
    %617 = vector.extract_strided_slice %607 {offsets = [0, 384], sizes = [1, 128], strides = [1, 1]} : vector<1x512xf32> to vector<1x128xf32>
    %618 = math.tanh %617 : vector<1x128xf32>
    %619 = vector.extract_strided_slice %605 {offsets = [0, 512], sizes = [1, 128], strides = [1, 1]} : vector<1x640xf32> to vector<1x128xf32>
    %c7_167 = arith.constant 7 : index
    %620 = memref.load %arg1[%c7_167] : memref<8xi32, #tpu.memory_space<smem>>
    %c56 = arith.constant 56 : index
    %c0_168 = arith.constant 0 : index
    %621 = vector.load %arg13[%c56, %c0_168] : memref<72x128xf32, #tpu.memory_space<vmem>>, vector<8x128xf32>
    %622 = vector.extract_strided_slice %621 {offsets = [0, 0], sizes = [8, 32], strides = [1, 1]} : vector<8x128xf32> to vector<8x32xf32>
    %623 = arith.truncf %622 : vector<8x32xf32> to vector<8x32xbf16>
    %c0_169 = arith.constant 0 : index
    %c0_170 = arith.constant 0 : index
    %624 = vector.load %arg10[%c0_169, %c0_170] : memref<32x128xbf16, #tpu.memory_space<vmem>>, vector<32x128xbf16>
    %cst_171 = arith.constant dense<0.000000e+00> : vector<8x128xf32>
    %625 = tpu.matmul %623, %624, %cst_171 {dimension_numbers = #tpu.dot_dimension_numbers<[1], [0], [0], [1], [0, 0, 1, 1], [], []>} : vector<8x32xbf16>, vector<32x128xbf16>, vector<8x128xf32> -> vector<8x128xf32>
    %626 = vector.broadcast %619 : vector<1x128xf32> to vector<8x128xf32>
    %627 = arith.addf %626, %625 : vector<8x128xf32>
    %628 = arith.negf %627 : vector<8x128xf32>
    %629 = math.exp %628 : vector<8x128xf32>
    %cst_172 = arith.constant 1.000000e+00 : f32
    %630 = vector.broadcast %cst_172 : f32 to vector<8x128xf32>
    %631 = arith.addf %630, %629 : vector<8x128xf32>
    %632 = arith.divf %630, %631 : vector<8x128xf32>
    %633 = vector.broadcast %620 : i32 to vector<8x128xi32>
    %634 = arith.cmpi slt, %14, %633 : vector<8x128xi32>
    %635 = math.exp %632 : vector<8x128xf32>
    %cst_173 = arith.constant 0.000000e+00 : f32
    %636 = vector.broadcast %cst_173 : f32 to vector<8x128xf32>
    %637 = arith.select %634, %635, %636 : vector<8x128xi1>, vector<8x128xf32>
    %638 = math.exp %614 : vector<1x128xf32>
    %cst_174 = arith.constant dense<0.000000e+00> : vector<128xf32>
    %639 = vector.multi_reduction <add>, %637, %cst_174 [0] : vector<8x128xf32> to vector<128xf32>
    %640 = vector.shape_cast %639 : vector<128xf32> to vector<1x128xf32>
    %641 = arith.addf %638, %640 : vector<1x128xf32>
    %642 = arith.mulf %638, %618 : vector<1x128xf32>
    %643 = arith.mulf %637, %621 : vector<8x128xf32>
    %cst_175 = arith.constant dense<0.000000e+00> : vector<128xf32>
    %644 = vector.multi_reduction <add>, %643, %cst_175 [0] : vector<8x128xf32> to vector<128xf32>
    %645 = vector.shape_cast %644 : vector<128xf32> to vector<1x128xf32>
    %646 = arith.addf %642, %645 : vector<1x128xf32>
    %647 = tpu.reciprocal %641 {approx = true} : vector<1x128xf32> -> vector<1x128xf32>
    %648 = arith.mulf %646, %647 : vector<1x128xf32>
    %649 = arith.mulf %615, %569 : vector<1x128xf32>
    %650 = arith.mulf %614, %618 : vector<1x128xf32>
    %651 = arith.addf %649, %650 : vector<1x128xf32>
    %c0_i32_176 = arith.constant 0 : i32
    %652 = arith.cmpi sgt, %620, %c0_i32_176 : i32
    %653 = arith.select %652, %648, %651 : vector<1x128xf32>
    %654 = math.tanh %653 : vector<1x128xf32>
    %655 = arith.mulf %616, %654 : vector<1x128xf32>
    %c7_177 = arith.constant 7 : index
    %c0_178 = arith.constant 0 : index
    %656 = vector.load %arg11[%c7_177, %c0_178] : memref<8x128xf32, #tpu.memory_space<vmem>>, vector<1x128xf32>
    tpu.vector_store %arg11[%c7_177, %c0_178], %655 {strides = array<i32>} : memref<8x128xf32, #tpu.memory_space<vmem>>, vector<1x128xf32>,
    %c7_179 = arith.constant 7 : index
    %c0_180 = arith.constant 0 : index
    %657 = vector.load %arg12[%c7_179, %c0_180] : memref<8x128xf32, #tpu.memory_space<vmem>>, vector<1x128xf32>
    tpu.vector_store %arg12[%c7_179, %c0_180], %653 {strides = array<i32>} : memref<8x128xf32, #tpu.memory_space<vmem>>, vector<1x128xf32>,
    %658 = vector.extract_strided_slice %655 {offsets = [0, 0], sizes = [1, 32], strides = [1, 1]} : vector<1x128xf32> to vector<1x32xf32>
    %659 = arith.truncf %658 : vector<1x32xf32> to vector<1x32xbf16>
    %c0_181 = arith.constant 0 : index
    %c0_182 = arith.constant 0 : index
    %660 = vector.load %arg9[%c0_181, %c0_182] : memref<32x896xbf16, #tpu.memory_space<vmem>>, vector<32x896xbf16>
    %cst_183 = arith.constant dense<0.000000e+00> : vector<1x896xf32>
    %661 = tpu.matmul %659, %660, %cst_183 {dimension_numbers = #tpu.dot_dimension_numbers<[1], [0], [0], [1], [0, 0, 1, 1], [], []>} : vector<1x32xbf16>, vector<32x896xbf16>, vector<1x896xf32> -> vector<1x896xf32>
    %662 = vector.extract_strided_slice %11 {offsets = [14, 0], sizes = [2, 384], strides = [1, 1]} : vector<16x384xf32> to vector<2x384xf32>
    %663 = vector.extract_strided_slice %661 {offsets = [0, 512], sizes = [1, 384], strides = [1, 1]} : vector<1x896xf32> to vector<1x384xf32>
    %664 = vector.broadcast %663 : vector<1x384xf32> to vector<2x384xf32>
    %665 = arith.addf %662, %664 : vector<2x384xf32>
    %666 = vector.extract_strided_slice %665 {offsets = [0, 0], sizes = [2, 256], strides = [1, 1]} : vector<2x384xf32> to vector<2x256xf32>
    %667 = arith.negf %666 : vector<2x256xf32>
    %668 = math.exp %667 : vector<2x256xf32>
    %cst_184 = arith.constant 1.000000e+00 : f32
    %669 = vector.broadcast %cst_184 : f32 to vector<2x256xf32>
    %670 = arith.addf %669, %668 : vector<2x256xf32>
    %671 = arith.divf %669, %670 : vector<2x256xf32>
    %672 = vector.extract_strided_slice %671 {offsets = [0, 0], sizes = [2, 128], strides = [1, 1]} : vector<2x256xf32> to vector<2x128xf32>
    %673 = vector.extract_strided_slice %671 {offsets = [0, 128], sizes = [2, 128], strides = [1, 1]} : vector<2x256xf32> to vector<2x128xf32>
    %674 = vector.extract_strided_slice %665 {offsets = [0, 256], sizes = [2, 128], strides = [1, 1]} : vector<2x384xf32> to vector<2x128xf32>
    %675 = math.tanh %674 : vector<2x128xf32>
    %676 = vector.broadcast %653 : vector<1x128xf32> to vector<2x128xf32>
    %677 = arith.mulf %673, %676 : vector<2x128xf32>
    %678 = arith.mulf %672, %675 : vector<2x128xf32>
    %679 = arith.addf %677, %678 : vector<2x128xf32>
    %c14 = arith.constant 14 : index
    %680 = memref.load %arg2[%c14] : memref<16xi32, #tpu.memory_space<smem>>
    %681 = vector.extract_strided_slice %679 {offsets = [0, 0], sizes = [1, 128], strides = [1, 1]} : vector<2x128xf32> to vector<1x128xf32>
    %682 = arith.index_cast %680 : i32 to index
    %c0_185 = arith.constant 0 : index
    %683 = vector.load %arg13[%682, %c0_185] : memref<72x128xf32, #tpu.memory_space<vmem>>, vector<1x128xf32>
    tpu.vector_store %arg13[%682, %c0_185], %681 {strides = array<i32>} : memref<72x128xf32, #tpu.memory_space<vmem>>, vector<1x128xf32>,
    %c15 = arith.constant 15 : index
    %684 = memref.load %arg2[%c15] : memref<16xi32, #tpu.memory_space<smem>>
    %685 = vector.extract_strided_slice %679 {offsets = [1, 0], sizes = [1, 128], strides = [1, 1]} : vector<2x128xf32> to vector<1x128xf32>
    %686 = arith.index_cast %684 : i32 to index
    %c0_186 = arith.constant 0 : index
    %687 = vector.load %arg13[%686, %c0_186] : memref<72x128xf32, #tpu.memory_space<vmem>>, vector<1x128xf32>
    tpu.vector_store %arg13[%686, %c0_186], %685 {strides = array<i32>} : memref<72x128xf32, #tpu.memory_space<vmem>>, vector<1x128xf32>,
    return
  }
  func.func @transform_0(%arg0: i32, %arg1: memref<8xi32, #tpu.memory_space<smem>>, %arg2: memref<16xi32, #tpu.memory_space<smem>>) -> (i32, i32) {
    %c0_i32 = arith.constant 0 : i32
    %c0_i32_0 = arith.constant 0 : i32
    %c0_i32_1 = arith.constant 0 : i32
    return %c0_i32, %c0_i32_0 : i32, i32
  }
  func.func @transform_1(%arg0: i32, %arg1: memref<8xi32, #tpu.memory_space<smem>>, %arg2: memref<16xi32, #tpu.memory_space<smem>>) -> (i32, i32) {
    %c0_i32 = arith.constant 0 : i32
    %c0_i32_0 = arith.constant 0 : i32
    %c0_i32_1 = arith.constant 0 : i32
    return %c0_i32, %c0_i32_0 : i32, i32
  }
  func.func @transform_2(%arg0: i32, %arg1: memref<8xi32, #tpu.memory_space<smem>>, %arg2: memref<16xi32, #tpu.memory_space<smem>>) -> (i32, i32) {
    %c0_i32 = arith.constant 0 : i32
    %c0_i32_0 = arith.constant 0 : i32
    %c0_i32_1 = arith.constant 0 : i32
    return %c0_i32, %c0_i32_0 : i32, i32
  }
  func.func @transform_3(%arg0: i32, %arg1: memref<8xi32, #tpu.memory_space<smem>>, %arg2: memref<16xi32, #tpu.memory_space<smem>>) -> (i32, i32) {
    %c0_i32 = arith.constant 0 : i32
    %c0_i32_0 = arith.constant 0 : i32
    %c0_i32_1 = arith.constant 0 : i32
    return %c0_i32, %c0_i32_0 : i32, i32
  }
  func.func @transform_4(%arg0: i32, %arg1: memref<8xi32, #tpu.memory_space<smem>>, %arg2: memref<16xi32, #tpu.memory_space<smem>>) -> (i32, i32) {
    %c0_i32 = arith.constant 0 : i32
    %c0_i32_0 = arith.constant 0 : i32
    %c0_i32_1 = arith.constant 0 : i32
    return %c0_i32, %c0_i32_0 : i32, i32
  }
  func.func @transform_5(%arg0: i32, %arg1: memref<8xi32, #tpu.memory_space<smem>>, %arg2: memref<16xi32, #tpu.memory_space<smem>>) -> (i32, i32) {
    %c0_i32 = arith.constant 0 : i32
    %c0_i32_0 = arith.constant 0 : i32
    %c0_i32_1 = arith.constant 0 : i32
    return %c0_i32, %c0_i32_0 : i32, i32
  }
  func.func @transform_6(%arg0: i32, %arg1: memref<8xi32, #tpu.memory_space<smem>>, %arg2: memref<16xi32, #tpu.memory_space<smem>>) -> (i32, i32) {
    %c0_i32 = arith.constant 0 : i32
    %c0_i32_0 = arith.constant 0 : i32
    %c0_i32_1 = arith.constant 0 : i32
    return %c0_i32, %c0_i32_0 : i32, i32
  }
  func.func @transform_7(%arg0: i32, %arg1: memref<8xi32, #tpu.memory_space<smem>>, %arg2: memref<16xi32, #tpu.memory_space<smem>>) -> (i32, i32) {
    %c0_i32 = arith.constant 0 : i32
    %c0_i32_0 = arith.constant 0 : i32
    %c0_i32_1 = arith.constant 0 : i32
    return %c0_i32, %c0_i32_0 : i32, i32
  }
  func.func @transform_8(%arg0: i32, %arg1: memref<8xi32, #tpu.memory_space<smem>>, %arg2: memref<16xi32, #tpu.memory_space<smem>>) -> (i32, i32) {
    %c0_i32 = arith.constant 0 : i32
    %c0_i32_0 = arith.constant 0 : i32
    %c0_i32_1 = arith.constant 0 : i32
    return %c0_i32, %c0_i32_0 : i32, i32
  }
  func.func @transform_9(%arg0: i32, %arg1: memref<8xi32, #tpu.memory_space<smem>>, %arg2: memref<16xi32, #tpu.memory_space<smem>>) -> (i32, i32) {
    %c0_i32 = arith.constant 0 : i32
    %c0_i32_0 = arith.constant 0 : i32
    %c0_i32_1 = arith.constant 0 : i32
    return %c0_i32, %c0_i32_0 : i32, i32
  }
}

</mosaic_0001>

<llo_original>
// kernel: _device_forward.1
$region0: #{_device_forward.1}
  #allocation0 [shape = 'u32[]', space=smem, size = 0x4, offset = 0x4, fixed_abs, tag = 'smem constant byte address 0x4 - core index']
  #allocation1 [shape = 'u32[144,128]{1,0:T(1,128)}', space=vmem, size = 0x12000, scoped, tag = 'internal scratch']
  #allocation2 [shape = 'f32[72,128]{1,0:T(8,128)}', space=vmem, size = 0x9000, scoped, tag = 'scratch operand']
  #allocation3 [shape = 's32[1]{0}', space=sflag, size = 0x4, scoped, tag = 'scoped memory for _device_forward.1']
  #allocation4 [shape = 'u8[512]{0}', space=smem, size = 0x200, scoped, tag = 'prefetched SMEM operand 0']
  #allocation5 [shape = 'u8[512]{0}', space=smem, size = 0x200, scoped, tag = 'prefetched SMEM operand 1']
  %s0 = inlined_call_operand.vmem [shape: s32[8], index: 0, kind: input, shape index: {}]
  %s1 = inlined_call_operand.vmem [shape: s32[16], index: 1, kind: input, shape index: {}]
  %s2 = inlined_call_operand.vmem [shape: f32[8,32], index: 2, kind: input, shape index: {}]
  %s3 = inlined_call_operand.vmem [shape: f32[16,32], index: 3, kind: input, shape index: {}]
  %s4 = inlined_call_operand.vmem [shape: f32[32,640], index: 4, kind: input, shape index: {}]
  %s5 = inlined_call_operand.vmem [shape: f32[1,640], index: 5, kind: input, shape index: {}]
  %s6 = inlined_call_operand.vmem [shape: f32[32,384], index: 6, kind: input, shape index: {}]
  %s7 = inlined_call_operand.vmem [shape: f32[1,384], index: 7, kind: input, shape index: {}]
  %s8 = inlined_call_operand.vmem [shape: bf16[32,896], index: 8, kind: input, shape index: {}]
  %s9 = inlined_call_operand.vmem [shape: bf16[32,128], index: 9, kind: input, shape index: {}]
  %s10 = inlined_call_operand.vmem [shape: f32[8,128], index: 10, kind: output, shape index: {0}]
  %s11 = inlined_call_operand.vmem [shape: f32[8,128], index: 11, kind: output, shape index: {1}]
  %12 = xla_tuple %s10, %s11
  %s13 = sld [smem:[#allocation0]]
  $region50: #{_device_forward.1} parent=0
    _
  %s15 = ssub.s32 1, %s13
  %s16 = scalar_select 0, %s15, %s13
  %s17 = sshll.u32 %s0, 4
  %s18 = int_to_ptr.vmem [resolvable:$true] %s17
  %20 = dma.vmem_to_smem %s18, 16, [#allocation4], [#allocation3]
  %s21 = sshll.u32 %s1, 4
  %s22 = int_to_ptr.vmem [resolvable:$true] %s21
  %24 = dma.vmem_to_smem %s22, 16, [#allocation5], [#allocation3]
  %25 = dma.done [#allocation3], 32
  %26 = sfence
  // Predicated region
  $region2: #{_device_forward.1} parent=0 // pred_check
    _
  $region3: #{_device_forward.1} parent=0 // pred_check_branch
    %28 = sbr.rel (0) target = $region5
  $region4: #{_device_forward.1} parent=0 // pred_region
    _
  $region5: #{_device_forward.1} parent=0 // pred_fallthru
    _
  // Predicated region
  $region6: #{_device_forward.1} parent=0 // pred_check
    _
  $region7: #{_device_forward.1} parent=0 // pred_check_branch
    %30 = sbr.rel (0) target = $region9
  $region8: #{_device_forward.1} parent=0 // pred_region
    _
  $region9: #{_device_forward.1} parent=0 // pred_fallthru
    _
  // Predicated region
  $region10: #{_device_forward.1} parent=0 // pred_check
    _
  $region11: #{_device_forward.1} parent=0 // pred_check_branch
    %32 = sbr.rel (0) target = $region13
  $region12: #{_device_forward.1} parent=0 // pred_region
    _
  $region13: #{_device_forward.1} parent=0 // pred_fallthru
    _
  // Predicated region
  $region14: #{_device_forward.1} parent=0 // pred_check
    _
  $region15: #{_device_forward.1} parent=0 // pred_check_branch
    %34 = sbr.rel (0) target = $region17
  $region16: #{_device_forward.1} parent=0 // pred_region
    _
  $region17: #{_device_forward.1} parent=0 // pred_fallthru
    _
  // Predicated region
  $region18: #{_device_forward.1} parent=0 // pred_check
    _
  $region19: #{_device_forward.1} parent=0 // pred_check_branch
    %36 = sbr.rel (0) target = $region21
  $region20: #{_device_forward.1} parent=0 // pred_region
    _
  $region21: #{_device_forward.1} parent=0 // pred_fallthru
    _
  // Predicated region
  $region22: #{_device_forward.1} parent=0 // pred_check
    _
  $region23: #{_device_forward.1} parent=0 // pred_check_branch
    %38 = sbr.rel (0) target = $region25
  $region24: #{_device_forward.1} parent=0 // pred_region
    _
  $region25: #{_device_forward.1} parent=0 // pred_fallthru
    _
  // Predicated region
  $region26: #{_device_forward.1} parent=0 // pred_check
    _
  $region27: #{_device_forward.1} parent=0 // pred_check_branch
    %40 = sbr.rel (0) target = $region29
  $region28: #{_device_forward.1} parent=0 // pred_region
    _
  $region29: #{_device_forward.1} parent=0 // pred_fallthru
    _
  // Predicated region
  $region30: #{_device_forward.1} parent=0 // pred_check
    _
  $region31: #{_device_forward.1} parent=0 // pred_check_branch
    %42 = sbr.rel (0) target = $region33
  $region32: #{_device_forward.1} parent=0 // pred_region
    _
  $region33: #{_device_forward.1} parent=0 // pred_fallthru
    _
  %v44 = vld [vmem:[%s2] sm:$0xff]
  %v45 = vld [vmem:[%s4] sm:$0xff]
  %v46 = vld [vmem:[%s4 + $0x8] sm:$0xff]
  %v47 = vld [vmem:[%s4 + $0x10] sm:$0xff]
  %v48 = vld [vmem:[%s4 + $0x18] sm:$0xff]
  %v49 = vld [vmem:[%s4 + $0x20] sm:$0xff]
  %v50 = vld [vmem:[%s4 + $0x28] sm:$0xff]
  %v51 = vld [vmem:[%s4 + $0x30] sm:$0xff]
  %v52 = vld [vmem:[%s4 + $0x38] sm:$0xff]
  %v53 = vld [vmem:[%s4 + $0x40] sm:$0xff]
  %v54 = vld [vmem:[%s4 + $0x48] sm:$0xff]
  %v55 = vld [vmem:[%s4 + $0x50] sm:$0xff]
  %v56 = vld [vmem:[%s4 + $0x58] sm:$0xff]
  %v57 = vld [vmem:[%s4 + $0x60] sm:$0xff]
  %v58 = vld [vmem:[%s4 + $0x68] sm:$0xff]
  %v59 = vld [vmem:[%s4 + $0x70] sm:$0xff]
  %v60 = vld [vmem:[%s4 + $0x78] sm:$0xff]
  %v61 = vld [vmem:[%s4 + $0x80] sm:$0xff]
  %v62 = vld [vmem:[%s4 + $0x88] sm:$0xff]
  %v63 = vld [vmem:[%s4 + $0x90] sm:$0xff]
  %v64 = vld [vmem:[%s4 + $0x98] sm:$0xff]
  %v65 = vld [vmem:[%s5] sm:$0x1f]
  %v67 = vlaneseq
  %v68 = vshrl.u32 %v67, 7
  %v69 = vsub.s32 0, %v68
  %v70 = vrot.slane %v65, %v69
  %v71 = vlaneseq
  %v72 = vshrl.u32 %v71, 7
  %v73 = vsub.s32 1, %v72
  %v74 = vrot.slane %v65, %v73
  %v75 = vlaneseq
  %v76 = vshrl.u32 %v75, 7
  %v77 = vsub.s32 2, %v76
  %v78 = vrot.slane %v65, %v77
  %v79 = vlaneseq
  %v80 = vshrl.u32 %v79, 7
  %v81 = vsub.s32 3, %v80
  %v82 = vrot.slane %v65, %v81
  %v83 = vlaneseq
  %v84 = vshrl.u32 %v83, 7
  %v85 = vsub.s32 4, %v84
  %v86 = vrot.slane %v65, %v85
  %vm92 = vcmask 261120
  %v94 = vsel %vm92, %v44, 0
  %96 = vmatprep.subr.mxu0 %v46
  %97 = vmatpush1.msra.mxu0 %v45
  %98 = vmatprep.subr.mxu0 %v51
  %99 = vmatpush1.msra.mxu0 %v50
  %100 = vmatprep.subr.mxu0 %v56
  %101 = vmatpush1.msra.mxu0 %v55
  %102 = vmatprep.subr.mxu0 %v61
  %103 = vmatpush1.msra.mxu0 %v60
  %104 = vmatprep.subr.mxu0 0.0
  %105 = vmatpush1.msra.mxu0 0.0
  %106 = vmatprep.subr.mxu0 0.0
  %107 = vmatpush1.msra.mxu0 0.0
  %108 = vmatprep.subr.mxu0 0.0
  %109 = vmatpush1.msra.mxu0 0.0
  %110 = vmatprep.subr.mxu0 0.0
  %111 = vmatpush1.msra.mxu0 0.0
  %112 = vmatprep.subr.mxu0 0.0
  %113 = vmatpush1.msra.mxu0 0.0
  %114 = vmatprep.subr.mxu0 0.0
  %115 = vmatpush1.msra.mxu0 0.0
  %116 = vmatprep.subr.mxu0 0.0
  %117 = vmatpush1.msra.mxu0 0.0
  %118 = vmatprep.subr.mxu0 0.0
  %119 = vmatpush1.msra.mxu0 0.0
  %120 = vmatprep.subr.mxu0 0.0
  %121 = vmatpush1.msra.mxu0 0.0
  %122 = vmatprep.subr.mxu0 0.0
  %123 = vmatpush1.msra.mxu0 0.0
  %124 = vmatprep.subr.mxu0 0.0
  %125 = vmatpush1.msra.mxu0 0.0
  %126 = vmatprep.subr.mxu0 0.0
  %127 = vmatpush1.msra.mxu0 0.0
  %128 = vmatprep.subr.mxu0 0.0
  %129 = vmatpush1.msra.mxu0 0.0
  %130 = vmatprep.subr.mxu0 0.0
  %131 = vmatpush1.msra.mxu0 0.0
  %132 = vmatprep.subr.mxu0 0.0
  %133 = vmatpush1.msra.mxu0 0.0
  %134 = vmatprep.subr.mxu0 0.0
  %135 = vmatpush1.msra.mxu0 0.0
  %136 = vmatprep.subr.mxu0 0.0
  %137 = vmatpush1.msra.mxu0 0.0
  %138 = vmatprep.subr.mxu0 0.0
  %139 = vmatpush1.msra.mxu0 0.0
  %140 = vmatprep.subr.mxu0 0.0
  %141 = vmatpush1.msra.mxu0 0.0
  %142 = vmatprep.subr.mxu0 0.0
  %143 = vmatpush1.msra.mxu0 0.0
  %144 = vmatprep.subr.mxu0 0.0
  %145 = vmatpush1.msra.mxu0 0.0
  %146 = vmatprep.subr.mxu0 0.0
  %147 = vmatpush1.msra.mxu0 0.0
  %148 = vmatprep.subr.mxu0 0.0
  %149 = vmatpush1.msra.mxu0 0.0
  %150 = vmatprep.subr.mxu0 0.0
  %151 = vmatpush1.msra.mxu0 0.0
  %152 = vmatprep.subr.mxu0 0.0
  %153 = vmatpush1.msra.mxu0 0.0
  %154 = vmatprep.subr.mxu0 0.0
  %155 = vmatpush1.msra.mxu0 0.0
  %156 = vmatprep.subr.mxu0 0.0
  %157 = vmatpush1.msra.mxu0 0.0
  %158 = vmatprep.subr.mxu0 0.0
  %159 = vmatpush1.msra.mxu0 0.0
  %160 = vmatprep.mubr.f32.mxu0 0.0
  %161 = vmatmul.mubr.f32.gmra.mrb[0].mxu0 %v94
  %v162 = vpop.f32.mrb[0].mxu0
  %v163 = vadd.f32 %v70, %v162
  %v164 = vpop.f32.mrb[0].mxu0
  %v165 = vadd.f32 %v74, %v164
  %166 = vdwg.mxu0
  %167 = vmatprep.subr.mxu0 %v48
  %168 = vmatpush1.msra.mxu0 %v47
  %169 = vmatprep.subr.mxu0 %v53
  %170 = vmatpush1.msra.mxu0 %v52
  %171 = vmatprep.subr.mxu0 %v58
  %172 = vmatpush1.msra.mxu0 %v57
  %173 = vmatprep.subr.mxu0 %v63
  %174 = vmatpush1.msra.mxu0 %v62
  %175 = vmatprep.subr.mxu0 0.0
  %176 = vmatpush1.msra.mxu0 0.0
  %177 = vmatprep.subr.mxu0 0.0
  %178 = vmatpush1.msra.mxu0 0.0
  %179 = vmatprep.subr.mxu0 0.0
  %180 = vmatpush1.msra.mxu0 0.0
  %181 = vmatprep.subr.mxu0 0.0
  %182 = vmatpush1.msra.mxu0 0.0
  %183 = vmatprep.subr.mxu0 0.0
  %184 = vmatpush1.msra.mxu0 0.0
  %185 = vmatprep.subr.mxu0 0.0
  %186 = vmatpush1.msra.mxu0 0.0
  %187 = vmatprep.subr.mxu0 0.0
  %188 = vmatpush1.msra.mxu0 0.0
  %189 = vmatprep.subr.mxu0 0.0
  %190 = vmatpush1.msra.mxu0 0.0
  %191 = vmatprep.subr.mxu0 0.0
  %192 = vmatpush1.msra.mxu0 0.0
  %193 = vmatprep.subr.mxu0 0.0
  %194 = vmatpush1.msra.mxu0 0.0
  %195 = vmatprep.subr.mxu0 0.0
  %196 = vmatpush1.msra.mxu0 0.0
  %197 = vmatprep.subr.mxu0 0.0
  %198 = vmatpush1.msra.mxu0 0.0
  %199 = vmatprep.subr.mxu0 0.0
  %200 = vmatpush1.msra.mxu0 0.0
  %201 = vmatprep.subr.mxu0 0.0
  %202 = vmatpush1.msra.mxu0 0.0
  %203 = vmatprep.subr.mxu0 0.0
  %204 = vmatpush1.msra.mxu0 0.0
  %205 = vmatprep.subr.mxu0 0.0
  %206 = vmatpush1.msra.mxu0 0.0
  %207 = vmatprep.subr.mxu0 0.0
  %208 = vmatpush1.msra.mxu0 0.0
  %209 = vmatprep.subr.mxu0 0.0
  %210 = vmatpush1.msra.mxu0 0.0
  %211 = vmatprep.subr.mxu0 0.0
  %212 = vmatpush1.msra.mxu0 0.0
  %213 = vmatprep.subr.mxu0 0.0
  %214 = vmatpush1.msra.mxu0 0.0
  %215 = vmatprep.subr.mxu0 0.0
  %216 = vmatpush1.msra.mxu0 0.0
  %217 = vmatprep.subr.mxu0 0.0
  %218 = vmatpush1.msra.mxu0 0.0
  %219 = vmatprep.subr.mxu0 0.0
  %220 = vmatpush1.msra.mxu0 0.0
  %221 = vmatprep.subr.mxu0 0.0
  %222 = vmatpush1.msra.mxu0 0.0
  %223 = vmatprep.subr.mxu0 0.0
  %224 = vmatpush1.msra.mxu0 0.0
  %225 = vmatprep.subr.mxu0 0.0
  %226 = vmatpush1.msra.mxu0 0.0
  %227 = vmatprep.subr.mxu0 0.0
  %228 = vmatpush1.msra.mxu0 0.0
  %229 = vmatprep.subr.mxu0 0.0
  %230 = vmatpush1.msra.mxu0 0.0
  %231 = vmatprep.mubr.f32.mxu0 0.0
  %232 = vmatmul.mubr.f32.gmra.mrb[0].mxu0 %v94
  %v233 = vpop.f32.mrb[0].mxu0
  %v234 = vadd.f32 %v78, %v233
  %v235 = vpop.f32.mrb[0].mxu0
  %v236 = vadd.f32 %v82, %v235
  %237 = vdwg.mxu0
  %238 = vmatprep.subr.mxu0 0.0
  %239 = vmatpush1.msra.mxu0 %v49
  %240 = vmatprep.subr.mxu0 0.0
  %241 = vmatpush1.msra.mxu0 %v54
  %242 = vmatprep.subr.mxu0 0.0
  %243 = vmatpush1.msra.mxu0 %v59
  %244 = vmatprep.subr.mxu0 0.0
  %245 = vmatpush1.msra.mxu0 %v64
  %246 = vmatprep.subr.mxu0 0.0
  %247 = vmatpush1.msra.mxu0 0.0
  %248 = vmatprep.subr.mxu0 0.0
  %249 = vmatpush1.msra.mxu0 0.0
  %250 = vmatprep.subr.mxu0 0.0
  %251 = vmatpush1.msra.mxu0 0.0
  %252 = vmatprep.subr.mxu0 0.0
  %253 = vmatpush1.msra.mxu0 0.0
  %254 = vmatprep.subr.mxu0 0.0
  %255 = vmatpush1.msra.mxu0 0.0
  %256 = vmatprep.subr.mxu0 0.0
  %257 = vmatpush1.msra.mxu0 0.0
  %258 = vmatprep.subr.mxu0 0.0
  %259 = vmatpush1.msra.mxu0 0.0
  %260 = vmatprep.subr.mxu0 0.0
  %261 = vmatpush1.msra.mxu0 0.0
  %262 = vmatprep.subr.mxu0 0.0
  %263 = vmatpush1.msra.mxu0 0.0
  %264 = vmatprep.subr.mxu0 0.0
  %265 = vmatpush1.msra.mxu0 0.0
  %266 = vmatprep.subr.mxu0 0.0
  %267 = vmatpush1.msra.mxu0 0.0
  %268 = vmatprep.subr.mxu0 0.0
  %269 = vmatpush1.msra.mxu0 0.0
  %270 = vmatprep.subr.mxu0 0.0
  %271 = vmatpush1.msra.mxu0 0.0
  %272 = vmatprep.subr.mxu0 0.0
  %273 = vmatpush1.msra.mxu0 0.0
  %274 = vmatprep.subr.mxu0 0.0
  %275 = vmatpush1.msra.mxu0 0.0
  %276 = vmatprep.subr.mxu0 0.0
  %277 = vmatpush1.msra.mxu0 0.0
  %278 = vmatprep.subr.mxu0 0.0
  %279 = vmatpush1.msra.mxu0 0.0
  %280 = vmatprep.subr.mxu0 0.0
  %281 = vmatpush1.msra.mxu0 0.0
  %282 = vmatprep.subr.mxu0 0.0
  %283 = vmatpush1.msra.mxu0 0.0
  %284 = vmatprep.subr.mxu0 0.0
  %285 = vmatpush1.msra.mxu0 0.0
  %286 = vmatprep.subr.mxu0 0.0
  %287 = vmatpush1.msra.mxu0 0.0
  %288 = vmatprep.subr.mxu0 0.0
  %289 = vmatpush1.msra.mxu0 0.0
  %290 = vmatprep.subr.mxu0 0.0
  %291 = vmatpush1.msra.mxu0 0.0
  %292 = vmatprep.subr.mxu0 0.0
  %293 = vmatpush1.msra.mxu0 0.0
  %294 = vmatprep.subr.mxu0 0.0
  %295 = vmatpush1.msra.mxu0 0.0
  %296 = vmatprep.subr.mxu0 0.0
  %297 = vmatpush1.msra.mxu0 0.0
  %298 = vmatprep.subr.mxu0 0.0
  %299 = vmatpush1.msra.mxu0 0.0
  %300 = vmatprep.subr.mxu0 0.0
  %301 = vmatpush1.msra.mxu0 0.0
  %302 = vmatprep.mubr.f32.mxu0 0.0
  %303 = vmatmul.mubr.f32.gmra.mrb[0].mxu0 %v94
  %v304 = vpop.f32.mrb[0].mxu0
  %v305 = vadd.f32 %v86, %v304
  %v306 = vpop.f32.mrb[0].mxu0
  %307 = vdwg.mxu0
  %v308 = vld [vmem:[%s3] sm:$0xff]
  %v309 = vld [vmem:[%s3 + $0x8] sm:$0xff]
  %v310 = vld [vmem:[%s6] sm:$0xff]
  %v311 = vld [vmem:[%s6 + $0x8] sm:$0xff]
  %v312 = vld [vmem:[%s6 + $0x10] sm:$0xff]
  %v313 = vld [vmem:[%s6 + $0x18] sm:$0xff]
  %v314 = vld [vmem:[%s6 + $0x20] sm:$0xff]
  %v315 = vld [vmem:[%s6 + $0x28] sm:$0xff]
  %v316 = vld [vmem:[%s6 + $0x30] sm:$0xff]
  %v317 = vld [vmem:[%s6 + $0x38] sm:$0xff]
  %v318 = vld [vmem:[%s6 + $0x40] sm:$0xff]
  %v319 = vld [vmem:[%s6 + $0x48] sm:$0xff]
  %v320 = vld [vmem:[%s6 + $0x50] sm:$0xff]
  %v321 = vld [vmem:[%s6 + $0x58] sm:$0xff]
  %v322 = vld [vmem:[%s7] sm:$0x7]
  %v324 = vlaneseq
  %v325 = vshrl.u32 %v324, 7
  %v326 = vsub.s32 0, %v325
  %v327 = vrot.slane %v322, %v326
  %v328 = vlaneseq
  %v329 = vshrl.u32 %v328, 7
  %v330 = vsub.s32 1, %v329
  %v331 = vrot.slane %v322, %v330
  %v332 = vlaneseq
  %v333 = vshrl.u32 %v332, 7
  %v334 = vsub.s32 2, %v333
  %v335 = vrot.slane %v322, %v334
  %v340 = vsel %vm92, %v308, 0
  %v343 = vsel %vm92, %v309, 0
  %345 = vmatprep.subr.mxu0 %v311
  %346 = vmatpush1.msra.mxu0 %v310
  %347 = vmatprep.subr.mxu0 %v314
  %348 = vmatpush1.msra.mxu0 %v313
  %349 = vmatprep.subr.mxu0 %v317
  %350 = vmatpush1.msra.mxu0 %v316
  %351 = vmatprep.subr.mxu0 %v320
  %352 = vmatpush1.msra.mxu0 %v319
  %353 = vmatprep.subr.mxu0 0.0
  %354 = vmatpush1.msra.mxu0 0.0
  %355 = vmatprep.subr.mxu0 0.0
  %356 = vmatpush1.msra.mxu0 0.0
  %357 = vmatprep.subr.mxu0 0.0
  %358 = vmatpush1.msra.mxu0 0.0
  %359 = vmatprep.subr.mxu0 0.0
  %360 = vmatpush1.msra.mxu0 0.0
  %361 = vmatprep.subr.mxu0 0.0
  %362 = vmatpush1.msra.mxu0 0.0
  %363 = vmatprep.subr.mxu0 0.0
  %364 = vmatpush1.msra.mxu0 0.0
  %365 = vmatprep.subr.mxu0 0.0
  %366 = vmatpush1.msra.mxu0 0.0
  %367 = vmatprep.subr.mxu0 0.0
  %368 = vmatpush1.msra.mxu0 0.0
  %369 = vmatprep.subr.mxu0 0.0
  %370 = vmatpush1.msra.mxu0 0.0
  %371 = vmatprep.subr.mxu0 0.0
  %372 = vmatpush1.msra.mxu0 0.0
  %373 = vmatprep.subr.mxu0 0.0
  %374 = vmatpush1.msra.mxu0 0.0
  %375 = vmatprep.subr.mxu0 0.0
  %376 = vmatpush1.msra.mxu0 0.0
  %377 = vmatprep.subr.mxu0 0.0
  %378 = vmatpush1.msra.mxu0 0.0
  %379 = vmatprep.subr.mxu0 0.0
  %380 = vmatpush1.msra.mxu0 0.0
  %381 = vmatprep.subr.mxu0 0.0
  %382 = vmatpush1.msra.mxu0 0.0
  %383 = vmatprep.subr.mxu0 0.0
  %384 = vmatpush1.msra.mxu0 0.0
  %385 = vmatprep.subr.mxu0 0.0
  %386 = vmatpush1.msra.mxu0 0.0
  %387 = vmatprep.subr.mxu0 0.0
  %388 = vmatpush1.msra.mxu0 0.0
  %389 = vmatprep.subr.mxu0 0.0
  %390 = vmatpush1.msra.mxu0 0.0
  %391 = vmatprep.subr.mxu0 0.0
  %392 = vmatpush1.msra.mxu0 0.0
  %393 = vmatprep.subr.mxu0 0.0
  %394 = vmatpush1.msra.mxu0 0.0
  %395 = vmatprep.subr.mxu0 0.0
  %396 = vmatpush1.msra.mxu0 0.0
  %397 = vmatprep.subr.mxu0 0.0
  %398 = vmatpush1.msra.mxu0 0.0
  %399 = vmatprep.subr.mxu0 0.0
  %400 = vmatpush1.msra.mxu0 0.0
  %401 = vmatprep.subr.mxu0 0.0
  %402 = vmatpush1.msra.mxu0 0.0
  %403 = vmatprep.subr.mxu0 0.0
  %404 = vmatpush1.msra.mxu0 0.0
  %405 = vmatprep.subr.mxu0 0.0
  %406 = vmatpush1.msra.mxu0 0.0
  %407 = vmatprep.subr.mxu0 0.0
  %408 = vmatpush1.msra.mxu0 0.0
  %409 = vmatprep.mubr.f32.mxu0 0.0
  %410 = vmatmul.mubr.f32.gmra.mrb[0].mxu0 %v340
  %v411 = vpop.f32.mrb[0].mxu0
  %v412 = vadd.f32 %v327, %v411
  %v413 = vpop.f32.mrb[0].mxu0
  %v414 = vadd.f32 %v331, %v413
  %415 = vmatprep.mubr.f32.mxu0 0.0
  %416 = vmatmul.mubr.f32.gmra.mrb[0].mxu0 %v343
  %v417 = vpop.f32.mrb[0].mxu0
  %v418 = vadd.f32 %v327, %v417
  %v419 = vpop.f32.mrb[0].mxu0
  %v420 = vadd.f32 %v331, %v419
  %421 = vdwg.mxu0
  %422 = vmatprep.subr.mxu0 0.0
  %423 = vmatpush1.msra.mxu0 %v312
  %424 = vmatprep.subr.mxu0 0.0
  %425 = vmatpush1.msra.mxu0 %v315
  %426 = vmatprep.subr.mxu0 0.0
  %427 = vmatpush1.msra.mxu0 %v318
  %428 = vmatprep.subr.mxu0 0.0
  %429 = vmatpush1.msra.mxu0 %v321
  %430 = vmatprep.subr.mxu0 0.0
  %431 = vmatpush1.msra.mxu0 0.0
  %432 = vmatprep.subr.mxu0 0.0
  %433 = vmatpush1.msra.mxu0 0.0
  %434 = vmatprep.subr.mxu0 0.0
  %435 = vmatpush1.msra.mxu0 0.0
  %436 = vmatprep.subr.mxu0 0.0
  %437 = vmatpush1.msra.mxu0 0.0
  %438 = vmatprep.subr.mxu0 0.0
  %439 = vmatpush1.msra.mxu0 0.0
  %440 = vmatprep.subr.mxu0 0.0
  %441 = vmatpush1.msra.mxu0 0.0
  %442 = vmatprep.subr.mxu0 0.0
  %443 = vmatpush1.msra.mxu0 0.0
  %444 = vmatprep.subr.mxu0 0.0
  %445 = vmatpush1.msra.mxu0 0.0
  %446 = vmatprep.subr.mxu0 0.0
  %447 = vmatpush1.msra.mxu0 0.0
  %448 = vmatprep.subr.mxu0 0.0
  %449 = vmatpush1.msra.mxu0 0.0
  %450 = vmatprep.subr.mxu0 0.0
  %451 = vmatpush1.msra.mxu0 0.0
  %452 = vmatprep.subr.mxu0 0.0
  %453 = vmatpush1.msra.mxu0 0.0
  %454 = vmatprep.subr.mxu0 0.0
  %455 = vmatpush1.msra.mxu0 0.0
  %456 = vmatprep.subr.mxu0 0.0
  %457 = vmatpush1.msra.mxu0 0.0
  %458 = vmatprep.subr.mxu0 0.0
  %459 = vmatpush1.msra.mxu0 0.0
  %460 = vmatprep.subr.mxu0 0.0
  %461 = vmatpush1.msra.mxu0 0.0
  %462 = vmatprep.subr.mxu0 0.0
  %463 = vmatpush1.msra.mxu0 0.0
  %464 = vmatprep.subr.mxu0 0.0
  %465 = vmatpush1.msra.mxu0 0.0
  %466 = vmatprep.subr.mxu0 0.0
  %467 = vmatpush1.msra.mxu0 0.0
  %468 = vmatprep.subr.mxu0 0.0
  %469 = vmatpush1.msra.mxu0 0.0
  %470 = vmatprep.subr.mxu0 0.0
  %471 = vmatpush1.msra.mxu0 0.0
  %472 = vmatprep.subr.mxu0 0.0
  %473 = vmatpush1.msra.mxu0 0.0
  %474 = vmatprep.subr.mxu0 0.0
  %475 = vmatpush1.msra.mxu0 0.0
  %476 = vmatprep.subr.mxu0 0.0
  %477 = vmatpush1.msra.mxu0 0.0
  %478 = vmatprep.subr.mxu0 0.0
  %479 = vmatpush1.msra.mxu0 0.0
  %480 = vmatprep.subr.mxu0 0.0
  %481 = vmatpush1.msra.mxu0 0.0
  %482 = vmatprep.subr.mxu0 0.0
  %483 = vmatpush1.msra.mxu0 0.0
  %484 = vmatprep.subr.mxu0 0.0
  %485 = vmatpush1.msra.mxu0 0.0
  %486 = vmatprep.mubr.f32.mxu0 0.0
  %487 = vmatmul.mubr.f32.gmra.mrb[0].mxu0 %v340
  %v488 = vpop.f32.mrb[0].mxu0
  %v489 = vadd.f32 %v335, %v488
  %v490 = vpop.f32.mrb[0].mxu0
  %491 = vmatprep.mubr.f32.mxu0 0.0
  %492 = vmatmul.mubr.f32.gmra.mrb[0].mxu0 %v343
  %v493 = vpop.f32.mrb[0].mxu0
  %v494 = vadd.f32 %v335, %v493
  %v495 = vpop.f32.mrb[0].mxu0
  %496 = vdwg.mxu0
  %497 = vst [vmem:[#allocation2] sm:$0xff] 0.0
  %498 = vst [vmem:[#allocation2 + $0x8] sm:$0xff] 0.0
  %499 = vst [vmem:[#allocation2 + $0x10] sm:$0xff] 0.0
  %500 = vst [vmem:[#allocation2 + $0x18] sm:$0xff] 0.0
  %501 = vst [vmem:[#allocation2 + $0x20] sm:$0xff] 0.0
  %502 = vst [vmem:[#allocation2 + $0x28] sm:$0xff] 0.0
  %503 = vst [vmem:[#allocation2 + $0x30] sm:$0xff] 0.0
  %504 = vst [vmem:[#allocation2 + $0x38] sm:$0xff] 0.0
  %505 = vst [vmem:[#allocation2 + $0x40] sm:$0xff] 0.0
  %v506 = vlaneseq
  %v507 = vshrl.u32 %v506, 7
  %v508 = vadd.f32 %v163, 0.0
  %v509 = vadd.f32 %v165, 0.0
  %v510 = vadd.f32 %v234, 0.0
  %v511 = vadd.f32 %v236, 0.0
  %v512 = vxor.u32 %v508, 2147483648
  %v513 = vxor.u32 %v509, 2147483648
  %v514 = vxor.u32 %v510, 2147483648
  %v515 = vmul.f32 %v512, 1.442695
  %v516 = vpow.pop %v515
  %v517 = vmul.f32 %v513, 1.442695
  %v518 = vpow.pop %v517
  %v519 = vmul.f32 %v514, 1.442695
  %v520 = vpow.pop %v519
  %v521 = vadd.f32 %v516, 1.0
  %v522 = vadd.f32 %v518, 1.0
  %v523 = vadd.f32 %v520, 1.0
  %v524 = vrcp.pop %v521
  %v525 = vmul.f32 1.0, %v524
  %v526 = vrcp.pop %v522
  %v527 = vmul.f32 1.0, %v526
  %v528 = vrcp.pop %v523
  %v529 = vmul.f32 1.0, %v528
  %v530 = vtanh.pop %v511
  %s531 = sld [smem:[#allocation4]]
  %v532 = vld [vmem:[#allocation2] sm:$0xff]
  %v533 = vpack.c.bf16 %v532, %v532
  %v534 = vld [vmem:[%s9] sm:$0xf]
  %v535 = vld [vmem:[%s9 + $0x4] sm:$0xf]
  %v536 = vld [vmem:[%s9 + $0x8] sm:$0xf]
  %v537 = vld [vmem:[%s9 + $0xc] sm:$0xf]
  %v542 = vunpack.c.l.b16 %v534
  %v543 = vunpack.c.l.b16 %v535
  %v544 = vunpack.c.l.b16 %v536
  %v545 = vunpack.c.l.b16 %v537
  %v546 = vpack.c.b16 %v543, %v542
  %v547 = vpack.c.b16 %v545, %v544
  %v551 = vsel %vm92, %v533, 0
  %553 = vmatprep.subr.bf16.mxu0 0
  %554 = vmatpush1.bf16.msra.mxu0 %v546
  %555 = vmatprep.subr.bf16.mxu0 0
  %556 = vmatpush1.bf16.msra.mxu0 %v547
  %557 = vmatprep.subr.bf16.mxu0 0
  %558 = vmatpush1.bf16.msra.mxu0 0
  %559 = vmatprep.subr.bf16.mxu0 0
  %560 = vmatpush1.bf16.msra.mxu0 0
  %561 = vmatprep.subr.bf16.mxu0 0
  %562 = vmatpush1.bf16.msra.mxu0 0
  %563 = vmatprep.subr.bf16.mxu0 0
  %564 = vmatpush1.bf16.msra.mxu0 0
  %565 = vmatprep.subr.bf16.mxu0 0
  %566 = vmatpush1.bf16.msra.mxu0 0
  %567 = vmatprep.subr.bf16.mxu0 0
  %568 = vmatpush1.bf16.msra.mxu0 0
  %569 = vmatprep.subr.bf16.mxu0 0
  %570 = vmatpush1.bf16.msra.mxu0 0
  %571 = vmatprep.subr.bf16.mxu0 0
  %572 = vmatpush1.bf16.msra.mxu0 0
  %573 = vmatprep.subr.bf16.mxu0 0
  %574 = vmatpush1.bf16.msra.mxu0 0
  %575 = vmatprep.subr.bf16.mxu0 0
  %576 = vmatpush1.bf16.msra.mxu0 0
  %577 = vmatprep.subr.bf16.mxu0 0
  %578 = vmatpush1.bf16.msra.mxu0 0
  %579 = vmatprep.subr.bf16.mxu0 0
  %580 = vmatpush1.bf16.msra.mxu0 0
  %581 = vmatprep.subr.bf16.mxu0 0
  %582 = vmatpush1.bf16.msra.mxu0 0
  %583 = vmatprep.subr.bf16.mxu0 0
  %584 = vmatpush1.bf16.msra.mxu0 0
  %585 = vmatprep.mubr.bf16.mxu0 0
  %586 = vmatmul.mubr.bf16.gmra.mrb[0].mxu0 %v551
  %v587 = vpop.f32.mrb[0].mxu0
  %v588 = vadd.f32 0.0, %v587
  %v589 = vpop.f32.mrb[0].mxu0
  %v590 = vpop.f32.mrb[0].mxu0
  %v591 = vpop.f32.mrb[0].mxu0
  %592 = vdwg.mxu0
  %v593 = vlaneseq
  %v594 = vshrl.u32 %v593, 7
  %v595 = vsub.s32 0, %v594
  %v596 = vrot.slane %v305, %v595
  %v597 = vadd.f32 %v596, %v588
  %v598 = vxor.u32 %v597, 2147483648
  %v599 = vmul.f32 %v598, 1.442695
  %v600 = vpow.pop %v599
  %v601 = vadd.f32 %v600, 1.0
  %v602 = vrcp.pop %v601
  %v603 = vmul.f32 1.0, %v602
  %v604 = vstv %s531
  %vm605 = vcmp.lt.s32.totalorder %v507, %v604
  %v606 = vmul.f32 %v603, 1.442695
  %v607 = vpow.pop %v606
  %v608 = vsel %vm605, %v607, 0.0
  %v609 = vmul.f32 %v525, 1.442695
  %v610 = vpow.pop %v609
  %v611 = vrot.slane %v608, 4
  %v612 = vadd.f32 %v608, %v611
  %v613 = vrot.slane %v612, 2
  %v614 = vadd.f32 %v612, %v613
  %v615 = vrot.slane %v614, 1
  %v616 = vadd.f32 %v614, %v615
  %v617 = vadd.f32 %v610, %v616
  %v618 = vmul.f32 %v610, %v530
  %v619 = vmul.f32 %v608, %v532
  %v620 = vrot.slane %v619, 4
  %v621 = vadd.f32 %v619, %v620
  %v622 = vrot.slane %v621, 2
  %v623 = vadd.f32 %v621, %v622
  %v624 = vrot.slane %v623, 1
  %v625 = vadd.f32 %v623, %v624
  %v626 = vadd.f32 %v618, %v625
  %v627 = vrcp.pop %v617
  %v628 = vmul.f32 %v626, %v627
  %v629 = vmul.f32 %v527, 0.0
  %v630 = vmul.f32 %v525, %v530
  %v631 = vadd.f32 %v629, %v630
  %p632 = scmp.gt.s32.totalorder %s531, 0
  %s633 = scalar_select %p632, 1, 0
  %v634 = vstv %s633
  %vm635 = vcmp.eq.s32.totalorder %v634, 1
  %v636 = vsel %vm635, %v628, %v631
  %v637 = vtanh.pop %v636
  %v638 = vmul.f32 %v529, %v637
  %639 = vst [vmem:[%s10] sm:$0x1] %v638
  %640 = vst [vmem:[%s11] sm:$0x1] %v636
  %v641 = vpack.c.bf16 %v638, %v638
  %v642 = vld [vmem:[%s8] sm:$0xff]
  %v643 = vld [vmem:[%s8 + $0x8] sm:$0xff]
  %v644 = vld [vmem:[%s8 + $0x10] sm:$0xff]
  %v645 = vld [vmem:[%s8 + $0x18] sm:$0xf]
  %v646 = vld [vmem:[%s8 + $0x1c] sm:$0xff]
  %v647 = vld [vmem:[%s8 + $0x24] sm:$0xff]
  %v648 = vld [vmem:[%s8 + $0x2c] sm:$0xff]
  %v649 = vld [vmem:[%s8 + $0x34] sm:$0xf]
  %v650 = vld [vmem:[%s8 + $0x38] sm:$0xff]
  %v651 = vld [vmem:[%s8 + $0x40] sm:$0xff]
  %v652 = vld [vmem:[%s8 + $0x48] sm:$0xff]
  %v653 = vld [vmem:[%s8 + $0x50] sm:$0xf]
  %v654 = vld [vmem:[%s8 + $0x54] sm:$0xff]
  %v655 = vld [vmem:[%s8 + $0x5c] sm:$0xff]
  %v656 = vld [vmem:[%s8 + $0x64] sm:$0xff]
  %v657 = vld [vmem:[%s8 + $0x6c] sm:$0xf]
  %v674 = vunpack.c.l.b16 %v642
  %v675 = vunpack.c.h.b16 %v642
  %v676 = vunpack.c.l.b16 %v643
  %v677 = vunpack.c.h.b16 %v643
  %v678 = vunpack.c.l.b16 %v644
  %v679 = vunpack.c.h.b16 %v644
  %v680 = vunpack.c.l.b16 %v645
  %v681 = vunpack.c.l.b16 %v646
  %v682 = vunpack.c.h.b16 %v646
  %v683 = vunpack.c.l.b16 %v647
  %v684 = vunpack.c.h.b16 %v647
  %v685 = vunpack.c.l.b16 %v648
  %v686 = vunpack.c.h.b16 %v648
  %v687 = vunpack.c.l.b16 %v649
  %v688 = vunpack.c.l.b16 %v650
  %v689 = vunpack.c.h.b16 %v650
  %v690 = vunpack.c.l.b16 %v651
  %v691 = vunpack.c.h.b16 %v651
  %v692 = vunpack.c.l.b16 %v652
  %v693 = vunpack.c.h.b16 %v652
  %v694 = vunpack.c.l.b16 %v653
  %v695 = vunpack.c.l.b16 %v654
  %v696 = vunpack.c.h.b16 %v654
  %v697 = vunpack.c.l.b16 %v655
  %v698 = vunpack.c.h.b16 %v655
  %v699 = vunpack.c.l.b16 %v656
  %v700 = vunpack.c.h.b16 %v656
  %v701 = vunpack.c.l.b16 %v657
  %v702 = vpack.c.b16 %v681, %v674
  %v703 = vpack.c.b16 %v682, %v675
  %v704 = vpack.c.b16 %v683, %v676
  %v705 = vpack.c.b16 %v684, %v677
  %v706 = vpack.c.b16 %v685, %v678
  %v707 = vpack.c.b16 %v686, %v679
  %v708 = vpack.c.b16 %v687, %v680
  %v709 = vpack.c.b16 %v695, %v688
  %v710 = vpack.c.b16 %v696, %v689
  %v711 = vpack.c.b16 %v697, %v690
  %v712 = vpack.c.b16 %v698, %v691
  %v713 = vpack.c.b16 %v699, %v692
  %v714 = vpack.c.b16 %v700, %v693
  %v715 = vpack.c.b16 %v701, %v694
  %v731 = vsel %vm92, %v641, 0
  %733 = vmatprep.subr.bf16.mxu0 %v703
  %734 = vmatpush1.bf16.msra.mxu0 %v702
  %735 = vmatprep.subr.bf16.mxu0 %v710
  %736 = vmatpush1.bf16.msra.mxu0 %v709
  %737 = vmatprep.subr.bf16.mxu0 0
  %738 = vmatpush1.bf16.msra.mxu0 0
  %739 = vmatprep.subr.bf16.mxu0 0
  %740 = vmatpush1.bf16.msra.mxu0 0
  %741 = vmatprep.subr.bf16.mxu0 0
  %742 = vmatpush1.bf16.msra.mxu0 0
  %743 = vmatprep.subr.bf16.mxu0 0
  %744 = vmatpush1.bf16.msra.mxu0 0
  %745 = vmatprep.subr.bf16.mxu0 0
  %746 = vmatpush1.bf16.msra.mxu0 0
  %747 = vmatprep.subr.bf16.mxu0 0
  %748 = vmatpush1.bf16.msra.mxu0 0
  %749 = vmatprep.subr.bf16.mxu0 0
  %750 = vmatpush1.bf16.msra.mxu0 0
  %751 = vmatprep.subr.bf16.mxu0 0
  %752 = vmatpush1.bf16.msra.mxu0 0
  %753 = vmatprep.subr.bf16.mxu0 0
  %754 = vmatpush1.bf16.msra.mxu0 0
  %755 = vmatprep.subr.bf16.mxu0 0
  %756 = vmatpush1.bf16.msra.mxu0 0
  %757 = vmatprep.subr.bf16.mxu0 0
  %758 = vmatpush1.bf16.msra.mxu0 0
  %759 = vmatprep.subr.bf16.mxu0 0
  %760 = vmatpush1.bf16.msra.mxu0 0
  %761 = vmatprep.subr.bf16.mxu0 0
  %762 = vmatpush1.bf16.msra.mxu0 0
  %763 = vmatprep.subr.bf16.mxu0 0
  %764 = vmatpush1.bf16.msra.mxu0 0
  %765 = vmatprep.mubr.bf16.mxu0 0
  %766 = vmatmul.mubr.bf16.gmra.mrb[0].mxu0 %v731
  %v767 = vpop.f32.mrb[0].mxu0
  %v768 = vadd.f32 0.0, %v767
  %v769 = vpop.f32.mrb[0].mxu0
  %v770 = vadd.f32 0.0, %v769
  %v771 = vpop.f32.mrb[0].mxu0
  %v772 = vpop.f32.mrb[0].mxu0
  %773 = vdwg.mxu0
  %774 = vmatprep.subr.bf16.mxu0 %v705
  %775 = vmatpush1.bf16.msra.mxu0 %v704
  %776 = vmatprep.subr.bf16.mxu0 %v712
  %777 = vmatpush1.bf16.msra.mxu0 %v711
  %778 = vmatprep.subr.bf16.mxu0 0
  %779 = vmatpush1.bf16.msra.mxu0 0
  %780 = vmatprep.subr.bf16.mxu0 0
  %781 = vmatpush1.bf16.msra.mxu0 0
  %782 = vmatprep.subr.bf16.mxu0 0
  %783 = vmatpush1.bf16.msra.mxu0 0
  %784 = vmatprep.subr.bf16.mxu0 0
  %785 = vmatpush1.bf16.msra.mxu0 0
  %786 = vmatprep.subr.bf16.mxu0 0
  %787 = vmatpush1.bf16.msra.mxu0 0
  %788 = vmatprep.subr.bf16.mxu0 0
  %789 = vmatpush1.bf16.msra.mxu0 0
  %790 = vmatprep.subr.bf16.mxu0 0
  %791 = vmatpush1.bf16.msra.mxu0 0
  %792 = vmatprep.subr.bf16.mxu0 0
  %793 = vmatpush1.bf16.msra.mxu0 0
  %794 = vmatprep.subr.bf16.mxu0 0
  %795 = vmatpush1.bf16.msra.mxu0 0
  %796 = vmatprep.subr.bf16.mxu0 0
  %797 = vmatpush1.bf16.msra.mxu0 0
  %798 = vmatprep.subr.bf16.mxu0 0
  %799 = vmatpush1.bf16.msra.mxu0 0
  %800 = vmatprep.subr.bf16.mxu0 0
  %801 = vmatpush1.bf16.msra.mxu0 0
  %802 = vmatprep.subr.bf16.mxu0 0
  %803 = vmatpush1.bf16.msra.mxu0 0
  %804 = vmatprep.subr.bf16.mxu0 0
  %805 = vmatpush1.bf16.msra.mxu0 0
  %806 = vmatprep.mubr.bf16.mxu0 0
  %807 = vmatmul.mubr.bf16.gmra.mrb[0].mxu0 %v731
  %v808 = vpop.f32.mrb[0].mxu0
  %v809 = vadd.f32 0.0, %v808
  %v810 = vpop.f32.mrb[0].mxu0
  %v811 = vadd.f32 0.0, %v810
  %v812 = vpop.f32.mrb[0].mxu0
  %v813 = vpop.f32.mrb[0].mxu0
  %814 = vdwg.mxu0
  %815 = vmatprep.subr.bf16.mxu0 %v707
  %816 = vmatpush1.bf16.msra.mxu0 %v706
  %817 = vmatprep.subr.bf16.mxu0 %v714
  %818 = vmatpush1.bf16.msra.mxu0 %v713
  %819 = vmatprep.subr.bf16.mxu0 0
  %820 = vmatpush1.bf16.msra.mxu0 0
  %821 = vmatprep.subr.bf16.mxu0 0
  %822 = vmatpush1.bf16.msra.mxu0 0
  %823 = vmatprep.subr.bf16.mxu0 0
  %824 = vmatpush1.bf16.msra.mxu0 0
  %825 = vmatprep.subr.bf16.mxu0 0
  %826 = vmatpush1.bf16.msra.mxu0 0
  %827 = vmatprep.subr.bf16.mxu0 0
  %828 = vmatpush1.bf16.msra.mxu0 0
  %829 = vmatprep.subr.bf16.mxu0 0
  %830 = vmatpush1.bf16.msra.mxu0 0
  %831 = vmatprep.subr.bf16.mxu0 0
  %832 = vmatpush1.bf16.msra.mxu0 0
  %833 = vmatprep.subr.bf16.mxu0 0
  %834 = vmatpush1.bf16.msra.mxu0 0
  %835 = vmatprep.subr.bf16.mxu0 0
  %836 = vmatpush1.bf16.msra.mxu0 0
  %837 = vmatprep.subr.bf16.mxu0 0
  %838 = vmatpush1.bf16.msra.mxu0 0
  %839 = vmatprep.subr.bf16.mxu0 0
  %840 = vmatpush1.bf16.msra.mxu0 0
  %841 = vmatprep.subr.bf16.mxu0 0
  %842 = vmatpush1.bf16.msra.mxu0 0
  %843 = vmatprep.subr.bf16.mxu0 0
  %844 = vmatpush1.bf16.msra.mxu0 0
  %845 = vmatprep.subr.bf16.mxu0 0
  %846 = vmatpush1.bf16.msra.mxu0 0
  %847 = vmatprep.mubr.bf16.mxu0 0
  %848 = vmatmul.mubr.bf16.gmra.mrb[0].mxu0 %v731
  %v849 = vpop.f32.mrb[0].mxu0
  %v850 = vadd.f32 0.0, %v849
  %v851 = vpop.f32.mrb[0].mxu0
  %v852 = vadd.f32 0.0, %v851
  %v853 = vpop.f32.mrb[0].mxu0
  %v854 = vpop.f32.mrb[0].mxu0
  %855 = vdwg.mxu0
  %856 = vmatprep.subr.bf16.mxu0 0
  %857 = vmatpush1.bf16.msra.mxu0 %v708
  %858 = vmatprep.subr.bf16.mxu0 0
  %859 = vmatpush1.bf16.msra.mxu0 %v715
  %860 = vmatprep.subr.bf16.mxu0 0
  %861 = vmatpush1.bf16.msra.mxu0 0
  %862 = vmatprep.subr.bf16.mxu0 0
  %863 = vmatpush1.bf16.msra.mxu0 0
  %864 = vmatprep.subr.bf16.mxu0 0
  %865 = vmatpush1.bf16.msra.mxu0 0
  %866 = vmatprep.subr.bf16.mxu0 0
  %867 = vmatpush1.bf16.msra.mxu0 0
  %868 = vmatprep.subr.bf16.mxu0 0
  %869 = vmatpush1.bf16.msra.mxu0 0
  %870 = vmatprep.subr.bf16.mxu0 0
  %871 = vmatpush1.bf16.msra.mxu0 0
  %872 = vmatprep.subr.bf16.mxu0 0
  %873 = vmatpush1.bf16.msra.mxu0 0
  %874 = vmatprep.subr.bf16.mxu0 0
  %875 = vmatpush1.bf16.msra.mxu0 0
  %876 = vmatprep.subr.bf16.mxu0 0
  %877 = vmatpush1.bf16.msra.mxu0 0
  %878 = vmatprep.subr.bf16.mxu0 0
  %879 = vmatpush1.bf16.msra.mxu0 0
  %880 = vmatprep.subr.bf16.mxu0 0
  %881 = vmatpush1.bf16.msra.mxu0 0
  %882 = vmatprep.subr.bf16.mxu0 0
  %883 = vmatpush1.bf16.msra.mxu0 0
  %884 = vmatprep.subr.bf16.mxu0 0
  %885 = vmatpush1.bf16.msra.mxu0 0
  %886 = vmatprep.subr.bf16.mxu0 0
  %887 = vmatpush1.bf16.msra.mxu0 0
  %888 = vmatprep.mubr.bf16.mxu0 0
  %889 = vmatmul.mubr.bf16.gmra.mrb[0].mxu0 %v731
  %v890 = vpop.f32.mrb[0].mxu0
  %v891 = vadd.f32 0.0, %v890
  %v892 = vpop.f32.mrb[0].mxu0
  %v893 = vpop.f32.mrb[0].mxu0
  %v894 = vpop.f32.mrb[0].mxu0
  %895 = vdwg.mxu0
  %v896 = vlaneseq
  %v897 = vshrl.u32 %v896, 7
  %v898 = vsub.s32 0, %v897
  %v899 = vrot.slane %v850, %v898
  %v900 = vlaneseq
  %v901 = vshrl.u32 %v900, 7
  %v902 = vsub.s32 0, %v901
  %v903 = vrot.slane %v852, %v902
  %v904 = vlaneseq
  %v905 = vshrl.u32 %v904, 7
  %v906 = vsub.s32 0, %v905
  %v907 = vrot.slane %v891, %v906
  %v908 = vadd.f32 %v412, %v899
  %v909 = vadd.f32 %v414, %v903
  %v910 = vadd.f32 %v489, %v907
  %v911 = vxor.u32 %v908, 2147483648
  %v912 = vxor.u32 %v909, 2147483648
  %v913 = vmul.f32 %v911, 1.442695
  %v914 = vpow.pop %v913
  %v915 = vmul.f32 %v912, 1.442695
  %v916 = vpow.pop %v915
  %v917 = vadd.f32 %v914, 1.0
  %v918 = vadd.f32 %v916, 1.0
  %v919 = vrcp.pop %v917
  %v920 = vmul.f32 1.0, %v919
  %v921 = vrcp.pop %v918
  %v922 = vmul.f32 1.0, %v921
  %v923 = vtanh.pop %v910
  %v924 = vlaneseq
  %v925 = vshrl.u32 %v924, 7
  %v926 = vsub.s32 0, %v925
  %v927 = vrot.slane %v636, %v926
  %v928 = vmul.f32 %v922, %v927
  %v929 = vmul.f32 %v920, %v923
  %v930 = vadd.f32 %v928, %v929
  %s931 = sld [smem:[#allocation5]]
  %s932 = scalar_lea.vmem [#allocation2], %s931
  %933 = vst [vmem:[%s932] sm:$0x1] %v930
  %s934 = sld [smem:[#allocation5 + $0x1]]
  %s935 = scalar_lea.vmem [#allocation2], %s934
  %936 = vst [vmem:[%s935 - $0x1] sm:$0x2] %v930
  %v941 = vrot.slane %v768, 7
  %v942 = vrot.slane %v770, 7
  %v943 = vrot.slane %v809, 7
  %v944 = vrot.slane %v811, 7
  %v949 = vadd.f32 %v163, %v941
  %v950 = vadd.f32 %v165, %v942
  %v951 = vadd.f32 %v234, %v943
  %v952 = vadd.f32 %v236, %v944
  %v953 = vxor.u32 %v949, 2147483648
  %v954 = vxor.u32 %v950, 2147483648
  %v955 = vxor.u32 %v951, 2147483648
  %v956 = vmul.f32 %v953, 1.442695
  %v957 = vpow.pop %v956
  %v958 = vmul.f32 %v954, 1.442695
  %v959 = vpow.pop %v958
  %v960 = vmul.f32 %v955, 1.442695
  %v961 = vpow.pop %v960
  %v962 = vadd.f32 %v957, 1.0
  %v963 = vadd.f32 %v959, 1.0
  %v964 = vadd.f32 %v961, 1.0
  %v965 = vrcp.pop %v962
  %v966 = vmul.f32 1.0, %v965
  %v967 = vrcp.pop %v963
  %v968 = vmul.f32 1.0, %v967
  %v969 = vrcp.pop %v964
  %v970 = vmul.f32 1.0, %v969
  %v971 = vtanh.pop %v952
  %s972 = sld [smem:[#allocation4 + $0x1]]
  %v973 = vld [vmem:[#allocation2 + $0x8] sm:$0xff]
  %v974 = vpack.c.bf16 %v973, %v973
  %v975 = vld [vmem:[%s9] sm:$0xf]
  %v976 = vld [vmem:[%s9 + $0x4] sm:$0xf]
  %v977 = vld [vmem:[%s9 + $0x8] sm:$0xf]
  %v978 = vld [vmem:[%s9 + $0xc] sm:$0xf]
  %v983 = vunpack.c.l.b16 %v975
  %v984 = vunpack.c.l.b16 %v976
  %v985 = vunpack.c.l.b16 %v977
  %v986 = vunpack.c.l.b16 %v978
  %v987 = vpack.c.b16 %v984, %v983
  %v988 = vpack.c.b16 %v986, %v985
  %v992 = vsel %vm92, %v974, 0
  %994 = vmatprep.subr.bf16.mxu0 0
  %995 = vmatpush1.bf16.msra.mxu0 %v987
  %996 = vmatprep.subr.bf16.mxu0 0
  %997 = vmatpush1.bf16.msra.mxu0 %v988
  %998 = vmatprep.subr.bf16.mxu0 0
  %999 = vmatpush1.bf16.msra.mxu0 0
  %1000 = vmatprep.subr.bf16.mxu0 0
  %1001 = vmatpush1.bf16.msra.mxu0 0
  %1002 = vmatprep.subr.bf16.mxu0 0
  %1003 = vmatpush1.bf16.msra.mxu0 0
  %1004 = vmatprep.subr.bf16.mxu0 0
  %1005 = vmatpush1.bf16.msra.mxu0 0
  %1006 = vmatprep.subr.bf16.mxu0 0
  %1007 = vmatpush1.bf16.msra.mxu0 0
  %1008 = vmatprep.subr.bf16.mxu0 0
  %1009 = vmatpush1.bf16.msra.mxu0 0
  %1010 = vmatprep.subr.bf16.mxu0 0
  %1011 = vmatpush1.bf16.msra.mxu0 0
  %1012 = vmatprep.subr.bf16.mxu0 0
  %1013 = vmatpush1.bf16.msra.mxu0 0
  %1014 = vmatprep.subr.bf16.mxu0 0
  %1015 = vmatpush1.bf16.msra.mxu0 0
  %1016 = vmatprep.subr.bf16.mxu0 0
  %1017 = vmatpush1.bf16.msra.mxu0 0
  %1018 = vmatprep.subr.bf16.mxu0 0
  %1019 = vmatpush1.bf16.msra.mxu0 0
  %1020 = vmatprep.subr.bf16.mxu0 0
  %1021 = vmatpush1.bf16.msra.mxu0 0
  %1022 = vmatprep.subr.bf16.mxu0 0
  %1023 = vmatpush1.bf16.msra.mxu0 0
  %1024 = vmatprep.subr.bf16.mxu0 0
  %1025 = vmatpush1.bf16.msra.mxu0 0
  %1026 = vmatprep.mubr.bf16.mxu0 0
  %1027 = vmatmul.mubr.bf16.gmra.mrb[0].mxu0 %v992
  %v1028 = vpop.f32.mrb[0].mxu0
  %v1029 = vadd.f32 0.0, %v1028
  %v1030 = vpop.f32.mrb[0].mxu0
  %v1031 = vpop.f32.mrb[0].mxu0
  %v1032 = vpop.f32.mrb[0].mxu0
  %1033 = vdwg.mxu0
  %v1034 = vlaneseq
  %v1035 = vshrl.u32 %v1034, 7
  %v1036 = vsub.s32 1, %v1035
  %v1037 = vrot.slane %v305, %v1036
  %v1038 = vadd.f32 %v1037, %v1029
  %v1039 = vxor.u32 %v1038, 2147483648
  %v1040 = vmul.f32 %v1039, 1.442695
  %v1041 = vpow.pop %v1040
  %v1042 = vadd.f32 %v1041, 1.0
  %v1043 = vrcp.pop %v1042
  %v1044 = vmul.f32 1.0, %v1043
  %v1045 = vstv %s972
  %vm1046 = vcmp.lt.s32.totalorder %v507, %v1045
  %v1047 = vmul.f32 %v1044, 1.442695
  %v1048 = vpow.pop %v1047
  %v1049 = vsel %vm1046, %v1048, 0.0
  %v1050 = vmul.f32 %v966, 1.442695
  %v1051 = vpow.pop %v1050
  %v1052 = vrot.slane %v1049, 4
  %v1053 = vadd.f32 %v1049, %v1052
  %v1054 = vrot.slane %v1053, 2
  %v1055 = vadd.f32 %v1053, %v1054
  %v1056 = vrot.slane %v1055, 1
  %v1057 = vadd.f32 %v1055, %v1056
  %v1058 = vadd.f32 %v1051, %v1057
  %v1059 = vmul.f32 %v1051, %v971
  %v1060 = vmul.f32 %v1049, %v973
  %v1061 = vrot.slane %v1060, 4
  %v1062 = vadd.f32 %v1060, %v1061
  %v1063 = vrot.slane %v1062, 2
  %v1064 = vadd.f32 %v1062, %v1063
  %v1065 = vrot.slane %v1064, 1
  %v1066 = vadd.f32 %v1064, %v1065
  %v1067 = vadd.f32 %v1059, %v1066
  %v1068 = vrcp.pop %v1058
  %v1069 = vmul.f32 %v1067, %v1068
  %v1071 = vrot.slane %v636, 7
  %v1073 = vmul.f32 %v968, %v1071
  %v1074 = vmul.f32 %v966, %v971
  %v1075 = vadd.f32 %v1073, %v1074
  %p1076 = scmp.gt.s32.totalorder %s972, 0
  %s1077 = scalar_select %p1076, 1, 0
  %v1078 = vstv %s1077
  %vm1079 = vcmp.eq.s32.totalorder %v1078, 1
  %v1080 = vsel %vm1079, %v1069, %v1075
  %v1081 = vtanh.pop %v1080
  %v1082 = vmul.f32 %v970, %v1081
  %1083 = vst [vmem:[%s10] sm:$0x2] %v1082
  %1084 = vst [vmem:[%s11] sm:$0x2] %v1080
  %v1085 = vpack.c.bf16 %v1082, %v1082
  %v1086 = vld [vmem:[%s8] sm:$0xff]
  %v1087 = vld [vmem:[%s8 + $0x8] sm:$0xff]
  %v1088 = vld [vmem:[%s8 + $0x10] sm:$0xff]
  %v1089 = vld [vmem:[%s8 + $0x18] sm:$0xf]
  %v1090 = vld [vmem:[%s8 + $0x1c] sm:$0xff]
  %v1091 = vld [vmem:[%s8 + $0x24] sm:$0xff]
  %v1092 = vld [vmem:[%s8 + $0x2c] sm:$0xff]
  %v1093 = vld [vmem:[%s8 + $0x34] sm:$0xf]
  %v1094 = vld [vmem:[%s8 + $0x38] sm:$0xff]
  %v1095 = vld [vmem:[%s8 + $0x40] sm:$0xff]
  %v1096 = vld [vmem:[%s8 + $0x48] sm:$0xff]
  %v1097 = vld [vmem:[%s8 + $0x50] sm:$0xf]
  %v1098 = vld [vmem:[%s8 + $0x54] sm:$0xff]
  %v1099 = vld [vmem:[%s8 + $0x5c] sm:$0xff]
  %v1100 = vld [vmem:[%s8 + $0x64] sm:$0xff]
  %v1101 = vld [vmem:[%s8 + $0x6c] sm:$0xf]
  %v1103 = vshrl.u32 %v1085, 16
  %v1121 = vunpack.c.l.b16 %v1086
  %v1122 = vunpack.c.h.b16 %v1086
  %v1123 = vunpack.c.l.b16 %v1087
  %v1124 = vunpack.c.h.b16 %v1087
  %v1125 = vunpack.c.l.b16 %v1088
  %v1126 = vunpack.c.h.b16 %v1088
  %v1127 = vunpack.c.l.b16 %v1089
  %v1128 = vunpack.c.l.b16 %v1090
  %v1129 = vunpack.c.h.b16 %v1090
  %v1130 = vunpack.c.l.b16 %v1091
  %v1131 = vunpack.c.h.b16 %v1091
  %v1132 = vunpack.c.l.b16 %v1092
  %v1133 = vunpack.c.h.b16 %v1092
  %v1134 = vunpack.c.l.b16 %v1093
  %v1135 = vunpack.c.l.b16 %v1094
  %v1136 = vunpack.c.h.b16 %v1094
  %v1137 = vunpack.c.l.b16 %v1095
  %v1138 = vunpack.c.h.b16 %v1095
  %v1139 = vunpack.c.l.b16 %v1096
  %v1140 = vunpack.c.h.b16 %v1096
  %v1141 = vunpack.c.l.b16 %v1097
  %v1142 = vunpack.c.l.b16 %v1098
  %v1143 = vunpack.c.h.b16 %v1098
  %v1144 = vunpack.c.l.b16 %v1099
  %v1145 = vunpack.c.h.b16 %v1099
  %v1146 = vunpack.c.l.b16 %v1100
  %v1147 = vunpack.c.h.b16 %v1100
  %v1148 = vunpack.c.l.b16 %v1101
  %v1149 = vpack.c.b16 %v1128, %v1121
  %v1150 = vpack.c.b16 %v1129, %v1122
  %v1151 = vpack.c.b16 %v1130, %v1123
  %v1152 = vpack.c.b16 %v1131, %v1124
  %v1153 = vpack.c.b16 %v1132, %v1125
  %v1154 = vpack.c.b16 %v1133, %v1126
  %v1155 = vpack.c.b16 %v1134, %v1127
  %v1156 = vpack.c.b16 %v1142, %v1135
  %v1157 = vpack.c.b16 %v1143, %v1136
  %v1158 = vpack.c.b16 %v1144, %v1137
  %v1159 = vpack.c.b16 %v1145, %v1138
  %v1160 = vpack.c.b16 %v1146, %v1139
  %v1161 = vpack.c.b16 %v1147, %v1140
  %v1162 = vpack.c.b16 %v1148, %v1141
  %v1178 = vsel %vm92, %v1103, 0
  %1180 = vmatprep.subr.bf16.mxu0 %v1150
  %1181 = vmatpush1.bf16.msra.mxu0 %v1149
  %1182 = vmatprep.subr.bf16.mxu0 %v1157
  %1183 = vmatpush1.bf16.msra.mxu0 %v1156
  %1184 = vmatprep.subr.bf16.mxu0 0
  %1185 = vmatpush1.bf16.msra.mxu0 0
  %1186 = vmatprep.subr.bf16.mxu0 0
  %1187 = vmatpush1.bf16.msra.mxu0 0
  %1188 = vmatprep.subr.bf16.mxu0 0
  %1189 = vmatpush1.bf16.msra.mxu0 0
  %1190 = vmatprep.subr.bf16.mxu0 0
  %1191 = vmatpush1.bf16.msra.mxu0 0
  %1192 = vmatprep.subr.bf16.mxu0 0
  %1193 = vmatpush1.bf16.msra.mxu0 0
  %1194 = vmatprep.subr.bf16.mxu0 0
  %1195 = vmatpush1.bf16.msra.mxu0 0
  %1196 = vmatprep.subr.bf16.mxu0 0
  %1197 = vmatpush1.bf16.msra.mxu0 0
  %1198 = vmatprep.subr.bf16.mxu0 0
  %1199 = vmatpush1.bf16.msra.mxu0 0
  %1200 = vmatprep.subr.bf16.mxu0 0
  %1201 = vmatpush1.bf16.msra.mxu0 0
  %1202 = vmatprep.subr.bf16.mxu0 0
  %1203 = vmatpush1.bf16.msra.mxu0 0
  %1204 = vmatprep.subr.bf16.mxu0 0
  %1205 = vmatpush1.bf16.msra.mxu0 0
  %1206 = vmatprep.subr.bf16.mxu0 0
  %1207 = vmatpush1.bf16.msra.mxu0 0
  %1208 = vmatprep.subr.bf16.mxu0 0
  %1209 = vmatpush1.bf16.msra.mxu0 0
  %1210 = vmatprep.subr.bf16.mxu0 0
  %1211 = vmatpush1.bf16.msra.mxu0 0
  %1212 = vmatprep.mubr.bf16.mxu0 0
  %1213 = vmatmul.mubr.bf16.gmra.mrb[0].mxu0 %v1178
  %v1214 = vpop.f32.mrb[0].mxu0
  %v1215 = vadd.f32 0.0, %v1214
  %v1216 = vpop.f32.mrb[0].mxu0
  %v1217 = vadd.f32 0.0, %v1216
  %v1218 = vpop.f32.mrb[0].mxu0
  %v1219 = vpop.f32.mrb[0].mxu0
  %1220 = vdwg.mxu0
  %1221 = vmatprep.subr.bf16.mxu0 %v1152
  %1222 = vmatpush1.bf16.msra.mxu0 %v1151
  %1223 = vmatprep.subr.bf16.mxu0 %v1159
  %1224 = vmatpush1.bf16.msra.mxu0 %v1158
  %1225 = vmatprep.subr.bf16.mxu0 0
  %1226 = vmatpush1.bf16.msra.mxu0 0
  %1227 = vmatprep.subr.bf16.mxu0 0
  %1228 = vmatpush1.bf16.msra.mxu0 0
  %1229 = vmatprep.subr.bf16.mxu0 0
  %1230 = vmatpush1.bf16.msra.mxu0 0
  %1231 = vmatprep.subr.bf16.mxu0 0
  %1232 = vmatpush1.bf16.msra.mxu0 0
  %1233 = vmatprep.subr.bf16.mxu0 0
  %1234 = vmatpush1.bf16.msra.mxu0 0
  %1235 = vmatprep.subr.bf16.mxu0 0
  %1236 = vmatpush1.bf16.msra.mxu0 0
  %1237 = vmatprep.subr.bf16.mxu0 0
  %1238 = vmatpush1.bf16.msra.mxu0 0
  %1239 = vmatprep.subr.bf16.mxu0 0
  %1240 = vmatpush1.bf16.msra.mxu0 0
  %1241 = vmatprep.subr.bf16.mxu0 0
  %1242 = vmatpush1.bf16.msra.mxu0 0
  %1243 = vmatprep.subr.bf16.mxu0 0
  %1244 = vmatpush1.bf16.msra.mxu0 0
  %1245 = vmatprep.subr.bf16.mxu0 0
  %1246 = vmatpush1.bf16.msra.mxu0 0
  %1247 = vmatprep.subr.bf16.mxu0 0
  %1248 = vmatpush1.bf16.msra.mxu0 0
  %1249 = vmatprep.subr.bf16.mxu0 0
  %1250 = vmatpush1.bf16.msra.mxu0 0
  %1251 = vmatprep.subr.bf16.mxu0 0
  %1252 = vmatpush1.bf16.msra.mxu0 0
  %1253 = vmatprep.mubr.bf16.mxu0 0
  %1254 = vmatmul.mubr.bf16.gmra.mrb[0].mxu0 %v1178
  %v1255 = vpop.f32.mrb[0].mxu0
  %v1256 = vadd.f32 0.0, %v1255
  %v1257 = vpop.f32.mrb[0].mxu0
  %v1258 = vadd.f32 0.0, %v1257
  %v1259 = vpop.f32.mrb[0].mxu0
  %v1260 = vpop.f32.mrb[0].mxu0
  %1261 = vdwg.mxu0
  %1262 = vmatprep.subr.bf16.mxu0 %v1154
  %1263 = vmatpush1.bf16.msra.mxu0 %v1153
  %1264 = vmatprep.subr.bf16.mxu0 %v1161
  %1265 = vmatpush1.bf16.msra.mxu0 %v1160
  %1266 = vmatprep.subr.bf16.mxu0 0
  %1267 = vmatpush1.bf16.msra.mxu0 0
  %1268 = vmatprep.subr.bf16.mxu0 0
  %1269 = vmatpush1.bf16.msra.mxu0 0
  %1270 = vmatprep.subr.bf16.mxu0 0
  %1271 = vmatpush1.bf16.msra.mxu0 0
  %1272 = vmatprep.subr.bf16.mxu0 0
  %1273 = vmatpush1.bf16.msra.mxu0 0
  %1274 = vmatprep.subr.bf16.mxu0 0
  %1275 = vmatpush1.bf16.msra.mxu0 0
  %1276 = vmatprep.subr.bf16.mxu0 0
  %1277 = vmatpush1.bf16.msra.mxu0 0
  %1278 = vmatprep.subr.bf16.mxu0 0
  %1279 = vmatpush1.bf16.msra.mxu0 0
  %1280 = vmatprep.subr.bf16.mxu0 0
  %1281 = vmatpush1.bf16.msra.mxu0 0
  %1282 = vmatprep.subr.bf16.mxu0 0
  %1283 = vmatpush1.bf16.msra.mxu0 0
  %1284 = vmatprep.subr.bf16.mxu0 0
  %1285 = vmatpush1.bf16.msra.mxu0 0
  %1286 = vmatprep.subr.bf16.mxu0 0
  %1287 = vmatpush1.bf16.msra.mxu0 0
  %1288 = vmatprep.subr.bf16.mxu0 0
  %1289 = vmatpush1.bf16.msra.mxu0 0
  %1290 = vmatprep.subr.bf16.mxu0 0
  %1291 = vmatpush1.bf16.msra.mxu0 0
  %1292 = vmatprep.subr.bf16.mxu0 0
  %1293 = vmatpush1.bf16.msra.mxu0 0
  %1294 = vmatprep.mubr.bf16.mxu0 0
  %1295 = vmatmul.mubr.bf16.gmra.mrb[0].mxu0 %v1178
  %v1296 = vpop.f32.mrb[0].mxu0
  %v1297 = vadd.f32 0.0, %v1296
  %v1298 = vpop.f32.mrb[0].mxu0
  %v1299 = vadd.f32 0.0, %v1298
  %v1300 = vpop.f32.mrb[0].mxu0
  %v1301 = vpop.f32.mrb[0].mxu0
  %1302 = vdwg.mxu0
  %1303 = vmatprep.subr.bf16.mxu0 0
  %1304 = vmatpush1.bf16.msra.mxu0 %v1155
  %1305 = vmatprep.subr.bf16.mxu0 0
  %1306 = vmatpush1.bf16.msra.mxu0 %v1162
  %1307 = vmatprep.subr.bf16.mxu0 0
  %1308 = vmatpush1.bf16.msra.mxu0 0
  %1309 = vmatprep.subr.bf16.mxu0 0
  %1310 = vmatpush1.bf16.msra.mxu0 0
  %1311 = vmatprep.subr.bf16.mxu0 0
  %1312 = vmatpush1.bf16.msra.mxu0 0
  %1313 = vmatprep.subr.bf16.mxu0 0
  %1314 = vmatpush1.bf16.msra.mxu0 0
  %1315 = vmatprep.subr.bf16.mxu0 0
  %1316 = vmatpush1.bf16.msra.mxu0 0
  %1317 = vmatprep.subr.bf16.mxu0 0
  %1318 = vmatpush1.bf16.msra.mxu0 0
  %1319 = vmatprep.subr.bf16.mxu0 0
  %1320 = vmatpush1.bf16.msra.mxu0 0
  %1321 = vmatprep.subr.bf16.mxu0 0
  %1322 = vmatpush1.bf16.msra.mxu0 0
  %1323 = vmatprep.subr.bf16.mxu0 0
  %1324 = vmatpush1.bf16.msra.mxu0 0
  %1325 = vmatprep.subr.bf16.mxu0 0
  %1326 = vmatpush1.bf16.msra.mxu0 0
  %1327 = vmatprep.subr.bf16.mxu0 0
  %1328 = vmatpush1.bf16.msra.mxu0 0
  %1329 = vmatprep.subr.bf16.mxu0 0
  %1330 = vmatpush1.bf16.msra.mxu0 0
  %1331 = vmatprep.subr.bf16.mxu0 0
  %1332 = vmatpush1.bf16.msra.mxu0 0
  %1333 = vmatprep.subr.bf16.mxu0 0
  %1334 = vmatpush1.bf16.msra.mxu0 0
  %1335 = vmatprep.mubr.bf16.mxu0 0
  %1336 = vmatmul.mubr.bf16.gmra.mrb[0].mxu0 %v1178
  %v1337 = vpop.f32.mrb[0].mxu0
  %v1338 = vadd.f32 0.0, %v1337
  %v1339 = vpop.f32.mrb[0].mxu0
  %v1340 = vpop.f32.mrb[0].mxu0
  %v1341 = vpop.f32.mrb[0].mxu0
  %1342 = vdwg.mxu0
  %v1343 = vlaneseq
  %v1344 = vshrl.u32 %v1343, 7
  %v1345 = vsub.s32 0, %v1344
  %v1346 = vrot.slane %v1297, %v1345
  %v1347 = vlaneseq
  %v1348 = vshrl.u32 %v1347, 7
  %v1349 = vsub.s32 0, %v1348
  %v1350 = vrot.slane %v1299, %v1349
  %v1351 = vlaneseq
  %v1352 = vshrl.u32 %v1351, 7
  %v1353 = vsub.s32 0, %v1352
  %v1354 = vrot.slane %v1338, %v1353
  %v1355 = vadd.f32 %v412, %v1346
  %v1356 = vadd.f32 %v414, %v1350
  %v1357 = vadd.f32 %v489, %v1354
  %v1358 = vxor.u32 %v1355, 2147483648
  %v1359 = vxor.u32 %v1356, 2147483648
  %v1360 = vmul.f32 %v1358, 1.442695
  %v1361 = vpow.pop %v1360
  %v1362 = vmul.f32 %v1359, 1.442695
  %v1363 = vpow.pop %v1362
  %v1364 = vadd.f32 %v1361, 1.0
  %v1365 = vadd.f32 %v1363, 1.0
  %v1366 = vrcp.pop %v1364
  %v1367 = vmul.f32 1.0, %v1366
  %v1368 = vrcp.pop %v1365
  %v1369 = vmul.f32 1.0, %v1368
  %v1370 = vtanh.pop %v1357
  %v1371 = vlaneseq
  %v1372 = vshrl.u32 %v1371, 7
  %v1373 = vsub.s32 1, %v1372
  %v1374 = vrot.slane %v1080, %v1373
  %v1375 = vmul.f32 %v1369, %v1374
  %v1376 = vmul.f32 %v1367, %v1370
  %v1377 = vadd.f32 %v1375, %v1376
  %s1378 = sld [smem:[#allocation5 + $0x2]]
  %s1379 = scalar_lea.vmem [#allocation2], %s1378
  %1380 = vst [vmem:[%s1379 - $0x2] sm:$0x4] %v1377
  %s1381 = sld [smem:[#allocation5 + $0x3]]
  %s1382 = scalar_lea.vmem [#allocation2], %s1381
  %1383 = vst [vmem:[%s1382 - $0x3] sm:$0x8] %v1377
  %v1388 = vrot.slane %v1215, 6
  %v1389 = vrot.slane %v1217, 6
  %v1390 = vrot.slane %v1256, 6
  %v1391 = vrot.slane %v1258, 6
  %v1396 = vadd.f32 %v163, %v1388
  %v1397 = vadd.f32 %v165, %v1389
  %v1398 = vadd.f32 %v234, %v1390
  %v1399 = vadd.f32 %v236, %v1391
  %v1400 = vxor.u32 %v1396, 2147483648
  %v1401 = vxor.u32 %v1397, 2147483648
  %v1402 = vxor.u32 %v1398, 2147483648
  %v1403 = vmul.f32 %v1400, 1.442695
  %v1404 = vpow.pop %v1403
  %v1405 = vmul.f32 %v1401, 1.442695
  %v1406 = vpow.pop %v1405
  %v1407 = vmul.f32 %v1402, 1.442695
  %v1408 = vpow.pop %v1407
  %v1409 = vadd.f32 %v1404, 1.0
  %v1410 = vadd.f32 %v1406, 1.0
  %v1411 = vadd.f32 %v1408, 1.0
  %v1412 = vrcp.pop %v1409
  %v1413 = vmul.f32 1.0, %v1412
  %v1414 = vrcp.pop %v1410
  %v1415 = vmul.f32 1.0, %v1414
  %v1416 = vrcp.pop %v1411
  %v1417 = vmul.f32 1.0, %v1416
  %v1418 = vtanh.pop %v1399
  %s1419 = sld [smem:[#allocation4 + $0x2]]
  %v1420 = vld [vmem:[#allocation2 + $0x10] sm:$0xff]
  %v1421 = vpack.c.bf16 %v1420, %v1420
  %v1422 = vld [vmem:[%s9] sm:$0xf]
  %v1423 = vld [vmem:[%s9 + $0x4] sm:$0xf]
  %v1424 = vld [vmem:[%s9 + $0x8] sm:$0xf]
  %v1425 = vld [vmem:[%s9 + $0xc] sm:$0xf]
  %v1430 = vunpack.c.l.b16 %v1422
  %v1431 = vunpack.c.l.b16 %v1423
  %v1432 = vunpack.c.l.b16 %v1424
  %v1433 = vunpack.c.l.b16 %v1425
  %v1434 = vpack.c.b16 %v1431, %v1430
  %v1435 = vpack.c.b16 %v1433, %v1432
  %v1439 = vsel %vm92, %v1421, 0
  %1441 = vmatprep.subr.bf16.mxu0 0
  %1442 = vmatpush1.bf16.msra.mxu0 %v1434
  %1443 = vmatprep.subr.bf16.mxu0 0
  %1444 = vmatpush1.bf16.msra.mxu0 %v1435
  %1445 = vmatprep.subr.bf16.mxu0 0
  %1446 = vmatpush1.bf16.msra.mxu0 0
  %1447 = vmatprep.subr.bf16.mxu0 0
  %1448 = vmatpush1.bf16.msra.mxu0 0
  %1449 = vmatprep.subr.bf16.mxu0 0
  %1450 = vmatpush1.bf16.msra.mxu0 0
  %1451 = vmatprep.subr.bf16.mxu0 0
  %1452 = vmatpush1.bf16.msra.mxu0 0
  %1453 = vmatprep.subr.bf16.mxu0 0
  %1454 = vmatpush1.bf16.msra.mxu0 0
  %1455 = vmatprep.subr.bf16.mxu0 0
  %1456 = vmatpush1.bf16.msra.mxu0 0
  %1457 = vmatprep.subr.bf16.mxu0 0
  %1458 = vmatpush1.bf16.msra.mxu0 0
  %1459 = vmatprep.subr.bf16.mxu0 0
  %1460 = vmatpush1.bf16.msra.mxu0 0
  %1461 = vmatprep.subr.bf16.mxu0 0
  %1462 = vmatpush1.bf16.msra.mxu0 0
  %1463 = vmatprep.subr.bf16.mxu0 0
  %1464 = vmatpush1.bf16.msra.mxu0 0
  %1465 = vmatprep.subr.bf16.mxu0 0
  %1466 = vmatpush1.bf16.msra.mxu0 0
  %1467 = vmatprep.subr.bf16.mxu0 0
  %1468 = vmatpush1.bf16.msra.mxu0 0
  %1469 = vmatprep.subr.bf16.mxu0 0
  %1470 = vmatpush1.bf16.msra.mxu0 0
  %1471 = vmatprep.subr.bf16.mxu0 0
  %1472 = vmatpush1.bf16.msra.mxu0 0
  %1473 = vmatprep.mubr.bf16.mxu0 0
  %1474 = vmatmul.mubr.bf16.gmra.mrb[0].mxu0 %v1439
  %v1475 = vpop.f32.mrb[0].mxu0
  %v1476 = vadd.f32 0.0, %v1475
  %v1477 = vpop.f32.mrb[0].mxu0
  %v1478 = vpop.f32.mrb[0].mxu0
  %v1479 = vpop.f32.mrb[0].mxu0
  %1480 = vdwg.mxu0
  %v1481 = vlaneseq
  %v1482 = vshrl.u32 %v1481, 7
  %v1483 = vsub.s32 2, %v1482
  %v1484 = vrot.slane %v305, %v1483
  %v1485 = vadd.f32 %v1484, %v1476
  %v1486 = vxor.u32 %v1485, 2147483648
  %v1487 = vmul.f32 %v1486, 1.442695
  %v1488 = vpow.pop %v1487
  %v1489 = vadd.f32 %v1488, 1.0
  %v1490 = vrcp.pop %v1489
  %v1491 = vmul.f32 1.0, %v1490
  %v1492 = vstv %s1419
  %vm1493 = vcmp.lt.s32.totalorder %v507, %v1492
  %v1494 = vmul.f32 %v1491, 1.442695
  %v1495 = vpow.pop %v1494
  %v1496 = vsel %vm1493, %v1495, 0.0
  %v1497 = vmul.f32 %v1413, 1.442695
  %v1498 = vpow.pop %v1497
  %v1499 = vrot.slane %v1496, 4
  %v1500 = vadd.f32 %v1496, %v1499
  %v1501 = vrot.slane %v1500, 2
  %v1502 = vadd.f32 %v1500, %v1501
  %v1503 = vrot.slane %v1502, 1
  %v1504 = vadd.f32 %v1502, %v1503
  %v1505 = vadd.f32 %v1498, %v1504
  %v1506 = vmul.f32 %v1498, %v1418
  %v1507 = vmul.f32 %v1496, %v1420
  %v1508 = vrot.slane %v1507, 4
  %v1509 = vadd.f32 %v1507, %v1508
  %v1510 = vrot.slane %v1509, 2
  %v1511 = vadd.f32 %v1509, %v1510
  %v1512 = vrot.slane %v1511, 1
  %v1513 = vadd.f32 %v1511, %v1512
  %v1514 = vadd.f32 %v1506, %v1513
  %v1515 = vrcp.pop %v1505
  %v1516 = vmul.f32 %v1514, %v1515
  %v1518 = vrot.slane %v1080, 7
  %v1520 = vmul.f32 %v1415, %v1518
  %v1521 = vmul.f32 %v1413, %v1418
  %v1522 = vadd.f32 %v1520, %v1521
  %p1523 = scmp.gt.s32.totalorder %s1419, 0
  %s1524 = scalar_select %p1523, 1, 0
  %v1525 = vstv %s1524
  %vm1526 = vcmp.eq.s32.totalorder %v1525, 1
  %v1527 = vsel %vm1526, %v1516, %v1522
  %v1528 = vtanh.pop %v1527
  %v1529 = vmul.f32 %v1417, %v1528
  %1530 = vst [vmem:[%s10] sm:$0x4] %v1529
  %1531 = vst [vmem:[%s11] sm:$0x4] %v1527
  %v1532 = vpack.c.bf16 %v1529, %v1529
  %v1533 = vld [vmem:[%s8] sm:$0xff]
  %v1534 = vld [vmem:[%s8 + $0x8] sm:$0xff]
  %v1535 = vld [vmem:[%s8 + $0x10] sm:$0xff]
  %v1536 = vld [vmem:[%s8 + $0x18] sm:$0xf]
  %v1537 = vld [vmem:[%s8 + $0x1c] sm:$0xff]
  %v1538 = vld [vmem:[%s8 + $0x24] sm:$0xff]
  %v1539 = vld [vmem:[%s8 + $0x2c] sm:$0xff]
  %v1540 = vld [vmem:[%s8 + $0x34] sm:$0xf]
  %v1541 = vld [vmem:[%s8 + $0x38] sm:$0xff]
  %v1542 = vld [vmem:[%s8 + $0x40] sm:$0xff]
  %v1543 = vld [vmem:[%s8 + $0x48] sm:$0xff]
  %v1544 = vld [vmem:[%s8 + $0x50] sm:$0xf]
  %v1545 = vld [vmem:[%s8 + $0x54] sm:$0xff]
  %v1546 = vld [vmem:[%s8 + $0x5c] sm:$0xff]
  %v1547 = vld [vmem:[%s8 + $0x64] sm:$0xff]
  %v1548 = vld [vmem:[%s8 + $0x6c] sm:$0xf]
  %v1550 = vrot.slane %v1532, 1
  %v1567 = vunpack.c.l.b16 %v1533
  %v1568 = vunpack.c.h.b16 %v1533
  %v1569 = vunpack.c.l.b16 %v1534
  %v1570 = vunpack.c.h.b16 %v1534
  %v1571 = vunpack.c.l.b16 %v1535
  %v1572 = vunpack.c.h.b16 %v1535
  %v1573 = vunpack.c.l.b16 %v1536
  %v1574 = vunpack.c.l.b16 %v1537
  %v1575 = vunpack.c.h.b16 %v1537
  %v1576 = vunpack.c.l.b16 %v1538
  %v1577 = vunpack.c.h.b16 %v1538
  %v1578 = vunpack.c.l.b16 %v1539
  %v1579 = vunpack.c.h.b16 %v1539
  %v1580 = vunpack.c.l.b16 %v1540
  %v1581 = vunpack.c.l.b16 %v1541
  %v1582 = vunpack.c.h.b16 %v1541
  %v1583 = vunpack.c.l.b16 %v1542
  %v1584 = vunpack.c.h.b16 %v1542
  %v1585 = vunpack.c.l.b16 %v1543
  %v1586 = vunpack.c.h.b16 %v1543
  %v1587 = vunpack.c.l.b16 %v1544
  %v1588 = vunpack.c.l.b16 %v1545
  %v1589 = vunpack.c.h.b16 %v1545
  %v1590 = vunpack.c.l.b16 %v1546
  %v1591 = vunpack.c.h.b16 %v1546
  %v1592 = vunpack.c.l.b16 %v1547
  %v1593 = vunpack.c.h.b16 %v1547
  %v1594 = vunpack.c.l.b16 %v1548
  %v1595 = vpack.c.b16 %v1574, %v1567
  %v1596 = vpack.c.b16 %v1575, %v1568
  %v1597 = vpack.c.b16 %v1576, %v1569
  %v1598 = vpack.c.b16 %v1577, %v1570
  %v1599 = vpack.c.b16 %v1578, %v1571
  %v1600 = vpack.c.b16 %v1579, %v1572
  %v1601 = vpack.c.b16 %v1580, %v1573
  %v1602 = vpack.c.b16 %v1588, %v1581
  %v1603 = vpack.c.b16 %v1589, %v1582
  %v1604 = vpack.c.b16 %v1590, %v1583
  %v1605 = vpack.c.b16 %v1591, %v1584
  %v1606 = vpack.c.b16 %v1592, %v1585
  %v1607 = vpack.c.b16 %v1593, %v1586
  %v1608 = vpack.c.b16 %v1594, %v1587
  %v1624 = vsel %vm92, %v1550, 0
  %1626 = vmatprep.subr.bf16.mxu0 %v1596
  %1627 = vmatpush1.bf16.msra.mxu0 %v1595
  %1628 = vmatprep.subr.bf16.mxu0 %v1603
  %1629 = vmatpush1.bf16.msra.mxu0 %v1602
  %1630 = vmatprep.subr.bf16.mxu0 0
  %1631 = vmatpush1.bf16.msra.mxu0 0
  %1632 = vmatprep.subr.bf16.mxu0 0
  %1633 = vmatpush1.bf16.msra.mxu0 0
  %1634 = vmatprep.subr.bf16.mxu0 0
  %1635 = vmatpush1.bf16.msra.mxu0 0
  %1636 = vmatprep.subr.bf16.mxu0 0
  %1637 = vmatpush1.bf16.msra.mxu0 0
  %1638 = vmatprep.subr.bf16.mxu0 0
  %1639 = vmatpush1.bf16.msra.mxu0 0
  %1640 = vmatprep.subr.bf16.mxu0 0
  %1641 = vmatpush1.bf16.msra.mxu0 0
  %1642 = vmatprep.subr.bf16.mxu0 0
  %1643 = vmatpush1.bf16.msra.mxu0 0
  %1644 = vmatprep.subr.bf16.mxu0 0
  %1645 = vmatpush1.bf16.msra.mxu0 0
  %1646 = vmatprep.subr.bf16.mxu0 0
  %1647 = vmatpush1.bf16.msra.mxu0 0
  %1648 = vmatprep.subr.bf16.mxu0 0
  %1649 = vmatpush1.bf16.msra.mxu0 0
  %1650 = vmatprep.subr.bf16.mxu0 0
  %1651 = vmatpush1.bf16.msra.mxu0 0
  %1652 = vmatprep.subr.bf16.mxu0 0
  %1653 = vmatpush1.bf16.msra.mxu0 0
  %1654 = vmatprep.subr.bf16.mxu0 0
  %1655 = vmatpush1.bf16.msra.mxu0 0
  %1656 = vmatprep.subr.bf16.mxu0 0
  %1657 = vmatpush1.bf16.msra.mxu0 0
  %1658 = vmatprep.mubr.bf16.mxu0 0
  %1659 = vmatmul.mubr.bf16.gmra.mrb[0].mxu0 %v1624
  %v1660 = vpop.f32.mrb[0].mxu0
  %v1661 = vadd.f32 0.0, %v1660
  %v1662 = vpop.f32.mrb[0].mxu0
  %v1663 = vadd.f32 0.0, %v1662
  %v1664 = vpop.f32.mrb[0].mxu0
  %v1665 = vpop.f32.mrb[0].mxu0
  %1666 = vdwg.mxu0
  %1667 = vmatprep.subr.bf16.mxu0 %v1598
  %1668 = vmatpush1.bf16.msra.mxu0 %v1597
  %1669 = vmatprep.subr.bf16.mxu0 %v1605
  %1670 = vmatpush1.bf16.msra.mxu0 %v1604
  %1671 = vmatprep.subr.bf16.mxu0 0
  %1672 = vmatpush1.bf16.msra.mxu0 0
  %1673 = vmatprep.subr.bf16.mxu0 0
  %1674 = vmatpush1.bf16.msra.mxu0 0
  %1675 = vmatprep.subr.bf16.mxu0 0
  %1676 = vmatpush1.bf16.msra.mxu0 0
  %1677 = vmatprep.subr.bf16.mxu0 0
  %1678 = vmatpush1.bf16.msra.mxu0 0
  %1679 = vmatprep.subr.bf16.mxu0 0
  %1680 = vmatpush1.bf16.msra.mxu0 0
  %1681 = vmatprep.subr.bf16.mxu0 0
  %1682 = vmatpush1.bf16.msra.mxu0 0
  %1683 = vmatprep.subr.bf16.mxu0 0
  %1684 = vmatpush1.bf16.msra.mxu0 0
  %1685 = vmatprep.subr.bf16.mxu0 0
  %1686 = vmatpush1.bf16.msra.mxu0 0
  %1687 = vmatprep.subr.bf16.mxu0 0
  %1688 = vmatpush1.bf16.msra.mxu0 0
  %1689 = vmatprep.subr.bf16.mxu0 0
  %1690 = vmatpush1.bf16.msra.mxu0 0
  %1691 = vmatprep.subr.bf16.mxu0 0
  %1692 = vmatpush1.bf16.msra.mxu0 0
  %1693 = vmatprep.subr.bf16.mxu0 0
  %1694 = vmatpush1.bf16.msra.mxu0 0
  %1695 = vmatprep.subr.bf16.mxu0 0
  %1696 = vmatpush1.bf16.msra.mxu0 0
  %1697 = vmatprep.subr.bf16.mxu0 0
  %1698 = vmatpush1.bf16.msra.mxu0 0
  %1699 = vmatprep.mubr.bf16.mxu0 0
  %1700 = vmatmul.mubr.bf16.gmra.mrb[0].mxu0 %v1624
  %v1701 = vpop.f32.mrb[0].mxu0
  %v1702 = vadd.f32 0.0, %v1701
  %v1703 = vpop.f32.mrb[0].mxu0
  %v1704 = vadd.f32 0.0, %v1703
  %v1705 = vpop.f32.mrb[0].mxu0
  %v1706 = vpop.f32.mrb[0].mxu0
  %1707 = vdwg.mxu0
  %1708 = vmatprep.subr.bf16.mxu0 %v1600
  %1709 = vmatpush1.bf16.msra.mxu0 %v1599
  %1710 = vmatprep.subr.bf16.mxu0 %v1607
  %1711 = vmatpush1.bf16.msra.mxu0 %v1606
  %1712 = vmatprep.subr.bf16.mxu0 0
  %1713 = vmatpush1.bf16.msra.mxu0 0
  %1714 = vmatprep.subr.bf16.mxu0 0
  %1715 = vmatpush1.bf16.msra.mxu0 0
  %1716 = vmatprep.subr.bf16.mxu0 0
  %1717 = vmatpush1.bf16.msra.mxu0 0
  %1718 = vmatprep.subr.bf16.mxu0 0
  %1719 = vmatpush1.bf16.msra.mxu0 0
  %1720 = vmatprep.subr.bf16.mxu0 0
  %1721 = vmatpush1.bf16.msra.mxu0 0
  %1722 = vmatprep.subr.bf16.mxu0 0
  %1723 = vmatpush1.bf16.msra.mxu0 0
  %1724 = vmatprep.subr.bf16.mxu0 0
  %1725 = vmatpush1.bf16.msra.mxu0 0
  %1726 = vmatprep.subr.bf16.mxu0 0
  %1727 = vmatpush1.bf16.msra.mxu0 0
  %1728 = vmatprep.subr.bf16.mxu0 0
  %1729 = vmatpush1.bf16.msra.mxu0 0
  %1730 = vmatprep.subr.bf16.mxu0 0
  %1731 = vmatpush1.bf16.msra.mxu0 0
  %1732 = vmatprep.subr.bf16.mxu0 0
  %1733 = vmatpush1.bf16.msra.mxu0 0
  %1734 = vmatprep.subr.bf16.mxu0 0
  %1735 = vmatpush1.bf16.msra.mxu0 0
  %1736 = vmatprep.subr.bf16.mxu0 0
  %1737 = vmatpush1.bf16.msra.mxu0 0
  %1738 = vmatprep.subr.bf16.mxu0 0
  %1739 = vmatpush1.bf16.msra.mxu0 0
  %1740 = vmatprep.mubr.bf16.mxu0 0
  %1741 = vmatmul.mubr.bf16.gmra.mrb[0].mxu0 %v1624
  %v1742 = vpop.f32.mrb[0].mxu0
  %v1743 = vadd.f32 0.0, %v1742
  %v1744 = vpop.f32.mrb[0].mxu0
  %v1745 = vadd.f32 0.0, %v1744
  %v1746 = vpop.f32.mrb[0].mxu0
  %v1747 = vpop.f32.mrb[0].mxu0
  %1748 = vdwg.mxu0
  %1749 = vmatprep.subr.bf16.mxu0 0
  %1750 = vmatpush1.bf16.msra.mxu0 %v1601
  %1751 = vmatprep.subr.bf16.mxu0 0
  %1752 = vmatpush1.bf16.msra.mxu0 %v1608
  %1753 = vmatprep.subr.bf16.mxu0 0
  %1754 = vmatpush1.bf16.msra.mxu0 0
  %1755 = vmatprep.subr.bf16.mxu0 0
  %1756 = vmatpush1.bf16.msra.mxu0 0
  %1757 = vmatprep.subr.bf16.mxu0 0
  %1758 = vmatpush1.bf16.msra.mxu0 0
  %1759 = vmatprep.subr.bf16.mxu0 0
  %1760 = vmatpush1.bf16.msra.mxu0 0
  %1761 = vmatprep.subr.bf16.mxu0 0
  %1762 = vmatpush1.bf16.msra.mxu0 0
  %1763 = vmatprep.subr.bf16.mxu0 0
  %1764 = vmatpush1.bf16.msra.mxu0 0
  %1765 = vmatprep.subr.bf16.mxu0 0
  %1766 = vmatpush1.bf16.msra.mxu0 0
  %1767 = vmatprep.subr.bf16.mxu0 0
  %1768 = vmatpush1.bf16.msra.mxu0 0
  %1769 = vmatprep.subr.bf16.mxu0 0
  %1770 = vmatpush1.bf16.msra.mxu0 0
  %1771 = vmatprep.subr.bf16.mxu0 0
  %1772 = vmatpush1.bf16.msra.mxu0 0
  %1773 = vmatprep.subr.bf16.mxu0 0
  %1774 = vmatpush1.bf16.msra.mxu0 0
  %1775 = vmatprep.subr.bf16.mxu0 0
  %1776 = vmatpush1.bf16.msra.mxu0 0
  %1777 = vmatprep.subr.bf16.mxu0 0
  %1778 = vmatpush1.bf16.msra.mxu0 0
  %1779 = vmatprep.subr.bf16.mxu0 0
  %1780 = vmatpush1.bf16.msra.mxu0 0
  %1781 = vmatprep.mubr.bf16.mxu0 0
  %1782 = vmatmul.mubr.bf16.gmra.mrb[0].mxu0 %v1624
  %v1783 = vpop.f32.mrb[0].mxu0
  %v1784 = vadd.f32 0.0, %v1783
  %v1785 = vpop.f32.mrb[0].mxu0
  %v1786 = vpop.f32.mrb[0].mxu0
  %v1787 = vpop.f32.mrb[0].mxu0
  %1788 = vdwg.mxu0
  %v1789 = vlaneseq
  %v1790 = vshrl.u32 %v1789, 7
  %v1791 = vsub.s32 0, %v1790
  %v1792 = vrot.slane %v1743, %v1791
  %v1793 = vlaneseq
  %v1794 = vshrl.u32 %v1793, 7
  %v1795 = vsub.s32 0, %v1794
  %v1796 = vrot.slane %v1745, %v1795
  %v1797 = vlaneseq
  %v1798 = vshrl.u32 %v1797, 7
  %v1799 = vsub.s32 0, %v1798
  %v1800 = vrot.slane %v1784, %v1799
  %v1801 = vadd.f32 %v412, %v1792
  %v1802 = vadd.f32 %v414, %v1796
  %v1803 = vadd.f32 %v489, %v1800
  %v1804 = vxor.u32 %v1801, 2147483648
  %v1805 = vxor.u32 %v1802, 2147483648
  %v1806 = vmul.f32 %v1804, 1.442695
  %v1807 = vpow.pop %v1806
  %v1808 = vmul.f32 %v1805, 1.442695
  %v1809 = vpow.pop %v1808
  %v1810 = vadd.f32 %v1807, 1.0
  %v1811 = vadd.f32 %v1809, 1.0
  %v1812 = vrcp.pop %v1810
  %v1813 = vmul.f32 1.0, %v1812
  %v1814 = vrcp.pop %v1811
  %v1815 = vmul.f32 1.0, %v1814
  %v1816 = vtanh.pop %v1803
  %v1817 = vlaneseq
  %v1818 = vshrl.u32 %v1817, 7
  %v1819 = vsub.s32 2, %v1818
  %v1820 = vrot.slane %v1527, %v1819
  %v1821 = vmul.f32 %v1815, %v1820
  %v1822 = vmul.f32 %v1813, %v1816
  %v1823 = vadd.f32 %v1821, %v1822
  %s1824 = sld [smem:[#allocation5 + $0x4]]
  %s1825 = scalar_lea.vmem [#allocation2], %s1824
  %1826 = vst [vmem:[%s1825 - $0x4] sm:$0x10] %v1823
  %s1827 = sld [smem:[#allocation5 + $0x5]]
  %s1828 = scalar_lea.vmem [#allocation2], %s1827
  %1829 = vst [vmem:[%s1828 - $0x5] sm:$0x20] %v1823
  %v1834 = vrot.slane %v1661, 5
  %v1835 = vrot.slane %v1663, 5
  %v1836 = vrot.slane %v1702, 5
  %v1837 = vrot.slane %v1704, 5
  %v1842 = vadd.f32 %v163, %v1834
  %v1843 = vadd.f32 %v165, %v1835
  %v1844 = vadd.f32 %v234, %v1836
  %v1845 = vadd.f32 %v236, %v1837
  %v1846 = vxor.u32 %v1842, 2147483648
  %v1847 = vxor.u32 %v1843, 2147483648
  %v1848 = vxor.u32 %v1844, 2147483648
  %v1849 = vmul.f32 %v1846, 1.442695
  %v1850 = vpow.pop %v1849
  %v1851 = vmul.f32 %v1847, 1.442695
  %v1852 = vpow.pop %v1851
  %v1853 = vmul.f32 %v1848, 1.442695
  %v1854 = vpow.pop %v1853
  %v1855 = vadd.f32 %v1850, 1.0
  %v1856 = vadd.f32 %v1852, 1.0
  %v1857 = vadd.f32 %v1854, 1.0
  %v1858 = vrcp.pop %v1855
  %v1859 = vmul.f32 1.0, %v1858
  %v1860 = vrcp.pop %v1856
  %v1861 = vmul.f32 1.0, %v1860
  %v1862 = vrcp.pop %v1857
  %v1863 = vmul.f32 1.0, %v1862
  %v1864 = vtanh.pop %v1845
  %s1865 = sld [smem:[#allocation4 + $0x3]]
  %v1866 = vld [vmem:[#allocation2 + $0x18] sm:$0xff]
  %v1867 = vpack.c.bf16 %v1866, %v1866
  %v1868 = vld [vmem:[%s9] sm:$0xf]
  %v1869 = vld [vmem:[%s9 + $0x4] sm:$0xf]
  %v1870 = vld [vmem:[%s9 + $0x8] sm:$0xf]
  %v1871 = vld [vmem:[%s9 + $0xc] sm:$0xf]
  %v1876 = vunpack.c.l.b16 %v1868
  %v1877 = vunpack.c.l.b16 %v1869
  %v1878 = vunpack.c.l.b16 %v1870
  %v1879 = vunpack.c.l.b16 %v1871
  %v1880 = vpack.c.b16 %v1877, %v1876
  %v1881 = vpack.c.b16 %v1879, %v1878
  %v1885 = vsel %vm92, %v1867, 0
  %1887 = vmatprep.subr.bf16.mxu0 0
  %1888 = vmatpush1.bf16.msra.mxu0 %v1880
  %1889 = vmatprep.subr.bf16.mxu0 0
  %1890 = vmatpush1.bf16.msra.mxu0 %v1881
  %1891 = vmatprep.subr.bf16.mxu0 0
  %1892 = vmatpush1.bf16.msra.mxu0 0
  %1893 = vmatprep.subr.bf16.mxu0 0
  %1894 = vmatpush1.bf16.msra.mxu0 0
  %1895 = vmatprep.subr.bf16.mxu0 0
  %1896 = vmatpush1.bf16.msra.mxu0 0
  %1897 = vmatprep.subr.bf16.mxu0 0
  %1898 = vmatpush1.bf16.msra.mxu0 0
  %1899 = vmatprep.subr.bf16.mxu0 0
  %1900 = vmatpush1.bf16.msra.mxu0 0
  %1901 = vmatprep.subr.bf16.mxu0 0
  %1902 = vmatpush1.bf16.msra.mxu0 0
  %1903 = vmatprep.subr.bf16.mxu0 0
  %1904 = vmatpush1.bf16.msra.mxu0 0
  %1905 = vmatprep.subr.bf16.mxu0 0
  %1906 = vmatpush1.bf16.msra.mxu0 0
  %1907 = vmatprep.subr.bf16.mxu0 0
  %1908 = vmatpush1.bf16.msra.mxu0 0
  %1909 = vmatprep.subr.bf16.mxu0 0
  %1910 = vmatpush1.bf16.msra.mxu0 0
  %1911 = vmatprep.subr.bf16.mxu0 0
  %1912 = vmatpush1.bf16.msra.mxu0 0
  %1913 = vmatprep.subr.bf16.mxu0 0
  %1914 = vmatpush1.bf16.msra.mxu0 0
  %1915 = vmatprep.subr.bf16.mxu0 0
  %1916 = vmatpush1.bf16.msra.mxu0 0
  %1917 = vmatprep.subr.bf16.mxu0 0
  %1918 = vmatpush1.bf16.msra.mxu0 0
  %1919 = vmatprep.mubr.bf16.mxu0 0
  %1920 = vmatmul.mubr.bf16.gmra.mrb[0].mxu0 %v1885
  %v1921 = vpop.f32.mrb[0].mxu0
  %v1922 = vadd.f32 0.0, %v1921
  %v1923 = vpop.f32.mrb[0].mxu0
  %v1924 = vpop.f32.mrb[0].mxu0
  %v1925 = vpop.f32.mrb[0].mxu0
  %1926 = vdwg.mxu0
  %v1927 = vlaneseq
  %v1928 = vshrl.u32 %v1927, 7
  %v1929 = vsub.s32 3, %v1928
  %v1930 = vrot.slane %v305, %v1929
  %v1931 = vadd.f32 %v1930, %v1922
  %v1932 = vxor.u32 %v1931, 2147483648
  %v1933 = vmul.f32 %v1932, 1.442695
  %v1934 = vpow.pop %v1933
  %v1935 = vadd.f32 %v1934, 1.0
  %v1936 = vrcp.pop %v1935
  %v1937 = vmul.f32 1.0, %v1936
  %v1938 = vstv %s1865
  %vm1939 = vcmp.lt.s32.totalorder %v507, %v1938
  %v1940 = vmul.f32 %v1937, 1.442695
  %v1941 = vpow.pop %v1940
  %v1942 = vsel %vm1939, %v1941, 0.0
  %v1943 = vmul.f32 %v1859, 1.442695
  %v1944 = vpow.pop %v1943
  %v1945 = vrot.slane %v1942, 4
  %v1946 = vadd.f32 %v1942, %v1945
  %v1947 = vrot.slane %v1946, 2
  %v1948 = vadd.f32 %v1946, %v1947
  %v1949 = vrot.slane %v1948, 1
  %v1950 = vadd.f32 %v1948, %v1949
  %v1951 = vadd.f32 %v1944, %v1950
  %v1952 = vmul.f32 %v1944, %v1864
  %v1953 = vmul.f32 %v1942, %v1866
  %v1954 = vrot.slane %v1953, 4
  %v1955 = vadd.f32 %v1953, %v1954
  %v1956 = vrot.slane %v1955, 2
  %v1957 = vadd.f32 %v1955, %v1956
  %v1958 = vrot.slane %v1957, 1
  %v1959 = vadd.f32 %v1957, %v1958
  %v1960 = vadd.f32 %v1952, %v1959
  %v1961 = vrcp.pop %v1951
  %v1962 = vmul.f32 %v1960, %v1961
  %v1964 = vrot.slane %v1527, 7
  %v1966 = vmul.f32 %v1861, %v1964
  %v1967 = vmul.f32 %v1859, %v1864
  %v1968 = vadd.f32 %v1966, %v1967
  %p1969 = scmp.gt.s32.totalorder %s1865, 0
  %s1970 = scalar_select %p1969, 1, 0
  %v1971 = vstv %s1970
  %vm1972 = vcmp.eq.s32.totalorder %v1971, 1
  %v1973 = vsel %vm1972, %v1962, %v1968
  %v1974 = vtanh.pop %v1973
  %v1975 = vmul.f32 %v1863, %v1974
  %1976 = vst [vmem:[%s10] sm:$0x8] %v1975
  %1977 = vst [vmem:[%s11] sm:$0x8] %v1973
  %v1978 = vpack.c.bf16 %v1975, %v1975
  %v1979 = vld [vmem:[%s8] sm:$0xff]
  %v1980 = vld [vmem:[%s8 + $0x8] sm:$0xff]
  %v1981 = vld [vmem:[%s8 + $0x10] sm:$0xff]
  %v1982 = vld [vmem:[%s8 + $0x18] sm:$0xf]
  %v1983 = vld [vmem:[%s8 + $0x1c] sm:$0xff]
  %v1984 = vld [vmem:[%s8 + $0x24] sm:$0xff]
  %v1985 = vld [vmem:[%s8 + $0x2c] sm:$0xff]
  %v1986 = vld [vmem:[%s8 + $0x34] sm:$0xf]
  %v1987 = vld [vmem:[%s8 + $0x38] sm:$0xff]
  %v1988 = vld [vmem:[%s8 + $0x40] sm:$0xff]
  %v1989 = vld [vmem:[%s8 + $0x48] sm:$0xff]
  %v1990 = vld [vmem:[%s8 + $0x50] sm:$0xf]
  %v1991 = vld [vmem:[%s8 + $0x54] sm:$0xff]
  %v1992 = vld [vmem:[%s8 + $0x5c] sm:$0xff]
  %v1993 = vld [vmem:[%s8 + $0x64] sm:$0xff]
  %v1994 = vld [vmem:[%s8 + $0x6c] sm:$0xf]
  %v1996 = vshrl.u32 %v1978, 16
  %v1998 = vrot.slane %v1996, 1
  %v2015 = vunpack.c.l.b16 %v1979
  %v2016 = vunpack.c.h.b16 %v1979
  %v2017 = vunpack.c.l.b16 %v1980
  %v2018 = vunpack.c.h.b16 %v1980
  %v2019 = vunpack.c.l.b16 %v1981
  %v2020 = vunpack.c.h.b16 %v1981
  %v2021 = vunpack.c.l.b16 %v1982
  %v2022 = vunpack.c.l.b16 %v1983
  %v2023 = vunpack.c.h.b16 %v1983
  %v2024 = vunpack.c.l.b16 %v1984
  %v2025 = vunpack.c.h.b16 %v1984
  %v2026 = vunpack.c.l.b16 %v1985
  %v2027 = vunpack.c.h.b16 %v1985
  %v2028 = vunpack.c.l.b16 %v1986
  %v2029 = vunpack.c.l.b16 %v1987
  %v2030 = vunpack.c.h.b16 %v1987
  %v2031 = vunpack.c.l.b16 %v1988
  %v2032 = vunpack.c.h.b16 %v1988
  %v2033 = vunpack.c.l.b16 %v1989
  %v2034 = vunpack.c.h.b16 %v1989
  %v2035 = vunpack.c.l.b16 %v1990
  %v2036 = vunpack.c.l.b16 %v1991
  %v2037 = vunpack.c.h.b16 %v1991
  %v2038 = vunpack.c.l.b16 %v1992
  %v2039 = vunpack.c.h.b16 %v1992
  %v2040 = vunpack.c.l.b16 %v1993
  %v2041 = vunpack.c.h.b16 %v1993
  %v2042 = vunpack.c.l.b16 %v1994
  %v2043 = vpack.c.b16 %v2022, %v2015
  %v2044 = vpack.c.b16 %v2023, %v2016
  %v2045 = vpack.c.b16 %v2024, %v2017
  %v2046 = vpack.c.b16 %v2025, %v2018
  %v2047 = vpack.c.b16 %v2026, %v2019
  %v2048 = vpack.c.b16 %v2027, %v2020
  %v2049 = vpack.c.b16 %v2028, %v2021
  %v2050 = vpack.c.b16 %v2036, %v2029
  %v2051 = vpack.c.b16 %v2037, %v2030
  %v2052 = vpack.c.b16 %v2038, %v2031
  %v2053 = vpack.c.b16 %v2039, %v2032
  %v2054 = vpack.c.b16 %v2040, %v2033
  %v2055 = vpack.c.b16 %v2041, %v2034
  %v2056 = vpack.c.b16 %v2042, %v2035
  %v2072 = vsel %vm92, %v1998, 0
  %2074 = vmatprep.subr.bf16.mxu0 %v2044
  %2075 = vmatpush1.bf16.msra.mxu0 %v2043
  %2076 = vmatprep.subr.bf16.mxu0 %v2051
  %2077 = vmatpush1.bf16.msra.mxu0 %v2050
  %2078 = vmatprep.subr.bf16.mxu0 0
  %2079 = vmatpush1.bf16.msra.mxu0 0
  %2080 = vmatprep.subr.bf16.mxu0 0
  %2081 = vmatpush1.bf16.msra.mxu0 0
  %2082 = vmatprep.subr.bf16.mxu0 0
  %2083 = vmatpush1.bf16.msra.mxu0 0
  %2084 = vmatprep.subr.bf16.mxu0 0
  %2085 = vmatpush1.bf16.msra.mxu0 0
  %2086 = vmatprep.subr.bf16.mxu0 0
  %2087 = vmatpush1.bf16.msra.mxu0 0
  %2088 = vmatprep.subr.bf16.mxu0 0
  %2089 = vmatpush1.bf16.msra.mxu0 0
  %2090 = vmatprep.subr.bf16.mxu0 0
  %2091 = vmatpush1.bf16.msra.mxu0 0
  %2092 = vmatprep.subr.bf16.mxu0 0
  %2093 = vmatpush1.bf16.msra.mxu0 0
  %2094 = vmatprep.subr.bf16.mxu0 0
  %2095 = vmatpush1.bf16.msra.mxu0 0
  %2096 = vmatprep.subr.bf16.mxu0 0
  %2097 = vmatpush1.bf16.msra.mxu0 0
  %2098 = vmatprep.subr.bf16.mxu0 0
  %2099 = vmatpush1.bf16.msra.mxu0 0
  %2100 = vmatprep.subr.bf16.mxu0 0
  %2101 = vmatpush1.bf16.msra.mxu0 0
  %2102 = vmatprep.subr.bf16.mxu0 0
  %2103 = vmatpush1.bf16.msra.mxu0 0
  %2104 = vmatprep.subr.bf16.mxu0 0
  %2105 = vmatpush1.bf16.msra.mxu0 0
  %2106 = vmatprep.mubr.bf16.mxu0 0
  %2107 = vmatmul.mubr.bf16.gmra.mrb[0].mxu0 %v2072
  %v2108 = vpop.f32.mrb[0].mxu0
  %v2109 = vadd.f32 0.0, %v2108
  %v2110 = vpop.f32.mrb[0].mxu0
  %v2111 = vadd.f32 0.0, %v2110
  %v2112 = vpop.f32.mrb[0].mxu0
  %v2113 = vpop.f32.mrb[0].mxu0
  %2114 = vdwg.mxu0
  %2115 = vmatprep.subr.bf16.mxu0 %v2046
  %2116 = vmatpush1.bf16.msra.mxu0 %v2045
  %2117 = vmatprep.subr.bf16.mxu0 %v2053
  %2118 = vmatpush1.bf16.msra.mxu0 %v2052
  %2119 = vmatprep.subr.bf16.mxu0 0
  %2120 = vmatpush1.bf16.msra.mxu0 0
  %2121 = vmatprep.subr.bf16.mxu0 0
  %2122 = vmatpush1.bf16.msra.mxu0 0
  %2123 = vmatprep.subr.bf16.mxu0 0
  %2124 = vmatpush1.bf16.msra.mxu0 0
  %2125 = vmatprep.subr.bf16.mxu0 0
  %2126 = vmatpush1.bf16.msra.mxu0 0
  %2127 = vmatprep.subr.bf16.mxu0 0
  %2128 = vmatpush1.bf16.msra.mxu0 0
  %2129 = vmatprep.subr.bf16.mxu0 0
  %2130 = vmatpush1.bf16.msra.mxu0 0
  %2131 = vmatprep.subr.bf16.mxu0 0
  %2132 = vmatpush1.bf16.msra.mxu0 0
  %2133 = vmatprep.subr.bf16.mxu0 0
  %2134 = vmatpush1.bf16.msra.mxu0 0
  %2135 = vmatprep.subr.bf16.mxu0 0
  %2136 = vmatpush1.bf16.msra.mxu0 0
  %2137 = vmatprep.subr.bf16.mxu0 0
  %2138 = vmatpush1.bf16.msra.mxu0 0
  %2139 = vmatprep.subr.bf16.mxu0 0
  %2140 = vmatpush1.bf16.msra.mxu0 0
  %2141 = vmatprep.subr.bf16.mxu0 0
  %2142 = vmatpush1.bf16.msra.mxu0 0
  %2143 = vmatprep.subr.bf16.mxu0 0
  %2144 = vmatpush1.bf16.msra.mxu0 0
  %2145 = vmatprep.subr.bf16.mxu0 0
  %2146 = vmatpush1.bf16.msra.mxu0 0
  %2147 = vmatprep.mubr.bf16.mxu0 0
  %2148 = vmatmul.mubr.bf16.gmra.mrb[0].mxu0 %v2072
  %v2149 = vpop.f32.mrb[0].mxu0
  %v2150 = vadd.f32 0.0, %v2149
  %v2151 = vpop.f32.mrb[0].mxu0
  %v2152 = vadd.f32 0.0, %v2151
  %v2153 = vpop.f32.mrb[0].mxu0
  %v2154 = vpop.f32.mrb[0].mxu0
  %2155 = vdwg.mxu0
  %2156 = vmatprep.subr.bf16.mxu0 %v2048
  %2157 = vmatpush1.bf16.msra.mxu0 %v2047
  %2158 = vmatprep.subr.bf16.mxu0 %v2055
  %2159 = vmatpush1.bf16.msra.mxu0 %v2054
  %2160 = vmatprep.subr.bf16.mxu0 0
  %2161 = vmatpush1.bf16.msra.mxu0 0
  %2162 = vmatprep.subr.bf16.mxu0 0
  %2163 = vmatpush1.bf16.msra.mxu0 0
  %2164 = vmatprep.subr.bf16.mxu0 0
  %2165 = vmatpush1.bf16.msra.mxu0 0
  %2166 = vmatprep.subr.bf16.mxu0 0
  %2167 = vmatpush1.bf16.msra.mxu0 0
  %2168 = vmatprep.subr.bf16.mxu0 0
  %2169 = vmatpush1.bf16.msra.mxu0 0
  %2170 = vmatprep.subr.bf16.mxu0 0
  %2171 = vmatpush1.bf16.msra.mxu0 0
  %2172 = vmatprep.subr.bf16.mxu0 0
  %2173 = vmatpush1.bf16.msra.mxu0 0
  %2174 = vmatprep.subr.bf16.mxu0 0
  %2175 = vmatpush1.bf16.msra.mxu0 0
  %2176 = vmatprep.subr.bf16.mxu0 0
  %2177 = vmatpush1.bf16.msra.mxu0 0
  %2178 = vmatprep.subr.bf16.mxu0 0
  %2179 = vmatpush1.bf16.msra.mxu0 0
  %2180 = vmatprep.subr.bf16.mxu0 0
  %2181 = vmatpush1.bf16.msra.mxu0 0
  %2182 = vmatprep.subr.bf16.mxu0 0
  %2183 = vmatpush1.bf16.msra.mxu0 0
  %2184 = vmatprep.subr.bf16.mxu0 0
  %2185 = vmatpush1.bf16.msra.mxu0 0
  %2186 = vmatprep.subr.bf16.mxu0 0
  %2187 = vmatpush1.bf16.msra.mxu0 0
  %2188 = vmatprep.mubr.bf16.mxu0 0
  %2189 = vmatmul.mubr.bf16.gmra.mrb[0].mxu0 %v2072
  %v2190 = vpop.f32.mrb[0].mxu0
  %v2191 = vadd.f32 0.0, %v2190
  %v2192 = vpop.f32.mrb[0].mxu0
  %v2193 = vadd.f32 0.0, %v2192
  %v2194 = vpop.f32.mrb[0].mxu0
  %v2195 = vpop.f32.mrb[0].mxu0
  %2196 = vdwg.mxu0
  %2197 = vmatprep.subr.bf16.mxu0 0
  %2198 = vmatpush1.bf16.msra.mxu0 %v2049
  %2199 = vmatprep.subr.bf16.mxu0 0
  %2200 = vmatpush1.bf16.msra.mxu0 %v2056
  %2201 = vmatprep.subr.bf16.mxu0 0
  %2202 = vmatpush1.bf16.msra.mxu0 0
  %2203 = vmatprep.subr.bf16.mxu0 0
  %2204 = vmatpush1.bf16.msra.mxu0 0
  %2205 = vmatprep.subr.bf16.mxu0 0
  %2206 = vmatpush1.bf16.msra.mxu0 0
  %2207 = vmatprep.subr.bf16.mxu0 0
  %2208 = vmatpush1.bf16.msra.mxu0 0
  %2209 = vmatprep.subr.bf16.mxu0 0
  %2210 = vmatpush1.bf16.msra.mxu0 0
  %2211 = vmatprep.subr.bf16.mxu0 0
  %2212 = vmatpush1.bf16.msra.mxu0 0
  %2213 = vmatprep.subr.bf16.mxu0 0
  %2214 = vmatpush1.bf16.msra.mxu0 0
  %2215 = vmatprep.subr.bf16.mxu0 0
  %2216 = vmatpush1.bf16.msra.mxu0 0
  %2217 = vmatprep.subr.bf16.mxu0 0
  %2218 = vmatpush1.bf16.msra.mxu0 0
  %2219 = vmatprep.subr.bf16.mxu0 0
  %2220 = vmatpush1.bf16.msra.mxu0 0
  %2221 = vmatprep.subr.bf16.mxu0 0
  %2222 = vmatpush1.bf16.msra.mxu0 0
  %2223 = vmatprep.subr.bf16.mxu0 0
  %2224 = vmatpush1.bf16.msra.mxu0 0
  %2225 = vmatprep.subr.bf16.mxu0 0
  %2226 = vmatpush1.bf16.msra.mxu0 0
  %2227 = vmatprep.subr.bf16.mxu0 0
  %2228 = vmatpush1.bf16.msra.mxu0 0
  %2229 = vmatprep.mubr.bf16.mxu0 0
  %2230 = vmatmul.mubr.bf16.gmra.mrb[0].mxu0 %v2072
  %v2231 = vpop.f32.mrb[0].mxu0
  %v2232 = vadd.f32 0.0, %v2231
  %v2233 = vpop.f32.mrb[0].mxu0
  %v2234 = vpop.f32.mrb[0].mxu0
  %v2235 = vpop.f32.mrb[0].mxu0
  %2236 = vdwg.mxu0
  %v2237 = vlaneseq
  %v2238 = vshrl.u32 %v2237, 7
  %v2239 = vsub.s32 0, %v2238
  %v2240 = vrot.slane %v2191, %v2239
  %v2241 = vlaneseq
  %v2242 = vshrl.u32 %v2241, 7
  %v2243 = vsub.s32 0, %v2242
  %v2244 = vrot.slane %v2193, %v2243
  %v2245 = vlaneseq
  %v2246 = vshrl.u32 %v2245, 7
  %v2247 = vsub.s32 0, %v2246
  %v2248 = vrot.slane %v2232, %v2247
  %v2249 = vadd.f32 %v412, %v2240
  %v2250 = vadd.f32 %v414, %v2244
  %v2251 = vadd.f32 %v489, %v2248
  %v2252 = vxor.u32 %v2249, 2147483648
  %v2253 = vxor.u32 %v2250, 2147483648
  %v2254 = vmul.f32 %v2252, 1.442695
  %v2255 = vpow.pop %v2254
  %v2256 = vmul.f32 %v2253, 1.442695
  %v2257 = vpow.pop %v2256
  %v2258 = vadd.f32 %v2255, 1.0
  %v2259 = vadd.f32 %v2257, 1.0
  %v2260 = vrcp.pop %v2258
  %v2261 = vmul.f32 1.0, %v2260
  %v2262 = vrcp.pop %v2259
  %v2263 = vmul.f32 1.0, %v2262
  %v2264 = vtanh.pop %v2251
  %v2265 = vlaneseq
  %v2266 = vshrl.u32 %v2265, 7
  %v2267 = vsub.s32 3, %v2266
  %v2268 = vrot.slane %v1973, %v2267
  %v2269 = vmul.f32 %v2263, %v2268
  %v2270 = vmul.f32 %v2261, %v2264
  %v2271 = vadd.f32 %v2269, %v2270
  %s2272 = sld [smem:[#allocation5 + $0x6]]
  %s2273 = scalar_lea.vmem [#allocation2], %s2272
  %2274 = vst [vmem:[%s2273 - $0x6] sm:$0x40] %v2271
  %s2275 = sld [smem:[#allocation5 + $0x7]]
  %s2276 = scalar_lea.vmem [#allocation2], %s2275
  %2277 = vst [vmem:[%s2276 - $0x7] sm:$0x80] %v2271
  %v2282 = vrot.slane %v2109, 4
  %v2283 = vrot.slane %v2111, 4
  %v2284 = vrot.slane %v2150, 4
  %v2285 = vrot.slane %v2152, 4
  %v2290 = vadd.f32 %v163, %v2282
  %v2291 = vadd.f32 %v165, %v2283
  %v2292 = vadd.f32 %v234, %v2284
  %v2293 = vadd.f32 %v236, %v2285
  %v2294 = vxor.u32 %v2290, 2147483648
  %v2295 = vxor.u32 %v2291, 2147483648
  %v2296 = vxor.u32 %v2292, 2147483648
  %v2297 = vmul.f32 %v2294, 1.442695
  %v2298 = vpow.pop %v2297
  %v2299 = vmul.f32 %v2295, 1.442695
  %v2300 = vpow.pop %v2299
  %v2301 = vmul.f32 %v2296, 1.442695
  %v2302 = vpow.pop %v2301
  %v2303 = vadd.f32 %v2298, 1.0
  %v2304 = vadd.f32 %v2300, 1.0
  %v2305 = vadd.f32 %v2302, 1.0
  %v2306 = vrcp.pop %v2303
  %v2307 = vmul.f32 1.0, %v2306
  %v2308 = vrcp.pop %v2304
  %v2309 = vmul.f32 1.0, %v2308
  %v2310 = vrcp.pop %v2305
  %v2311 = vmul.f32 1.0, %v2310
  %v2312 = vtanh.pop %v2293
  %s2313 = sld [smem:[#allocation4 + $0x4]]
  %v2314 = vld [vmem:[#allocation2 + $0x20] sm:$0xff]
  %v2315 = vpack.c.bf16 %v2314, %v2314
  %v2316 = vld [vmem:[%s9] sm:$0xf]
  %v2317 = vld [vmem:[%s9 + $0x4] sm:$0xf]
  %v2318 = vld [vmem:[%s9 + $0x8] sm:$0xf]
  %v2319 = vld [vmem:[%s9 + $0xc] sm:$0xf]
  %v2324 = vunpack.c.l.b16 %v2316
  %v2325 = vunpack.c.l.b16 %v2317
  %v2326 = vunpack.c.l.b16 %v2318
  %v2327 = vunpack.c.l.b16 %v2319
  %v2328 = vpack.c.b16 %v2325, %v2324
  %v2329 = vpack.c.b16 %v2327, %v2326
  %v2333 = vsel %vm92, %v2315, 0
  %2335 = vmatprep.subr.bf16.mxu0 0
  %2336 = vmatpush1.bf16.msra.mxu0 %v2328
  %2337 = vmatprep.subr.bf16.mxu0 0
  %2338 = vmatpush1.bf16.msra.mxu0 %v2329
  %2339 = vmatprep.subr.bf16.mxu0 0
  %2340 = vmatpush1.bf16.msra.mxu0 0
  %2341 = vmatprep.subr.bf16.mxu0 0
  %2342 = vmatpush1.bf16.msra.mxu0 0
  %2343 = vmatprep.subr.bf16.mxu0 0
  %2344 = vmatpush1.bf16.msra.mxu0 0
  %2345 = vmatprep.subr.bf16.mxu0 0
  %2346 = vmatpush1.bf16.msra.mxu0 0
  %2347 = vmatprep.subr.bf16.mxu0 0
  %2348 = vmatpush1.bf16.msra.mxu0 0
  %2349 = vmatprep.subr.bf16.mxu0 0
  %2350 = vmatpush1.bf16.msra.mxu0 0
  %2351 = vmatprep.subr.bf16.mxu0 0
  %2352 = vmatpush1.bf16.msra.mxu0 0
  %2353 = vmatprep.subr.bf16.mxu0 0
  %2354 = vmatpush1.bf16.msra.mxu0 0
  %2355 = vmatprep.subr.bf16.mxu0 0
  %2356 = vmatpush1.bf16.msra.mxu0 0
  %2357 = vmatprep.subr.bf16.mxu0 0
  %2358 = vmatpush1.bf16.msra.mxu0 0
  %2359 = vmatprep.subr.bf16.mxu0 0
  %2360 = vmatpush1.bf16.msra.mxu0 0
  %2361 = vmatprep.subr.bf16.mxu0 0
  %2362 = vmatpush1.bf16.msra.mxu0 0
  %2363 = vmatprep.subr.bf16.mxu0 0
  %2364 = vmatpush1.bf16.msra.mxu0 0
  %2365 = vmatprep.subr.bf16.mxu0 0
  %2366 = vmatpush1.bf16.msra.mxu0 0
  %2367 = vmatprep.mubr.bf16.mxu0 0
  %2368 = vmatmul.mubr.bf16.gmra.mrb[0].mxu0 %v2333
  %v2369 = vpop.f32.mrb[0].mxu0
  %v2370 = vadd.f32 0.0, %v2369
  %v2371 = vpop.f32.mrb[0].mxu0
  %v2372 = vpop.f32.mrb[0].mxu0
  %v2373 = vpop.f32.mrb[0].mxu0
  %2374 = vdwg.mxu0
  %v2375 = vlaneseq
  %v2376 = vshrl.u32 %v2375, 7
  %v2377 = vsub.s32 4, %v2376
  %v2378 = vrot.slane %v305, %v2377
  %v2379 = vadd.f32 %v2378, %v2370
  %v2380 = vxor.u32 %v2379, 2147483648
  %v2381 = vmul.f32 %v2380, 1.442695
  %v2382 = vpow.pop %v2381
  %v2383 = vadd.f32 %v2382, 1.0
  %v2384 = vrcp.pop %v2383
  %v2385 = vmul.f32 1.0, %v2384
  %v2386 = vstv %s2313
  %vm2387 = vcmp.lt.s32.totalorder %v507, %v2386
  %v2388 = vmul.f32 %v2385, 1.442695
  %v2389 = vpow.pop %v2388
  %v2390 = vsel %vm2387, %v2389, 0.0
  %v2391 = vmul.f32 %v2307, 1.442695
  %v2392 = vpow.pop %v2391
  %v2393 = vrot.slane %v2390, 4
  %v2394 = vadd.f32 %v2390, %v2393
  %v2395 = vrot.slane %v2394, 2
  %v2396 = vadd.f32 %v2394, %v2395
  %v2397 = vrot.slane %v2396, 1
  %v2398 = vadd.f32 %v2396, %v2397
  %v2399 = vadd.f32 %v2392, %v2398
  %v2400 = vmul.f32 %v2392, %v2312
  %v2401 = vmul.f32 %v2390, %v2314
  %v2402 = vrot.slane %v2401, 4
  %v2403 = vadd.f32 %v2401, %v2402
  %v2404 = vrot.slane %v2403, 2
  %v2405 = vadd.f32 %v2403, %v2404
  %v2406 = vrot.slane %v2405, 1
  %v2407 = vadd.f32 %v2405, %v2406
  %v2408 = vadd.f32 %v2400, %v2407
  %v2409 = vrcp.pop %v2399
  %v2410 = vmul.f32 %v2408, %v2409
  %v2412 = vrot.slane %v1973, 7
  %v2414 = vmul.f32 %v2309, %v2412
  %v2415 = vmul.f32 %v2307, %v2312
  %v2416 = vadd.f32 %v2414, %v2415
  %p2417 = scmp.gt.s32.totalorder %s2313, 0
  %s2418 = scalar_select %p2417, 1, 0
  %v2419 = vstv %s2418
  %vm2420 = vcmp.eq.s32.totalorder %v2419, 1
  %v2421 = vsel %vm2420, %v2410, %v2416
  %v2422 = vtanh.pop %v2421
  %v2423 = vmul.f32 %v2311, %v2422
  %2424 = vst [vmem:[%s10] sm:$0x10] %v2423
  %2425 = vst [vmem:[%s11] sm:$0x10] %v2421
  %v2426 = vpack.c.bf16 %v2423, %v2423
  %v2427 = vld [vmem:[%s8] sm:$0xff]
  %v2428 = vld [vmem:[%s8 + $0x8] sm:$0xff]
  %v2429 = vld [vmem:[%s8 + $0x10] sm:$0xff]
  %v2430 = vld [vmem:[%s8 + $0x18] sm:$0xf]
  %v2431 = vld [vmem:[%s8 + $0x1c] sm:$0xff]
  %v2432 = vld [vmem:[%s8 + $0x24] sm:$0xff]
  %v2433 = vld [vmem:[%s8 + $0x2c] sm:$0xff]
  %v2434 = vld [vmem:[%s8 + $0x34] sm:$0xf]
  %v2435 = vld [vmem:[%s8 + $0x38] sm:$0xff]
  %v2436 = vld [vmem:[%s8 + $0x40] sm:$0xff]
  %v2437 = vld [vmem:[%s8 + $0x48] sm:$0xff]
  %v2438 = vld [vmem:[%s8 + $0x50] sm:$0xf]
  %v2439 = vld [vmem:[%s8 + $0x54] sm:$0xff]
  %v2440 = vld [vmem:[%s8 + $0x5c] sm:$0xff]
  %v2441 = vld [vmem:[%s8 + $0x64] sm:$0xff]
  %v2442 = vld [vmem:[%s8 + $0x6c] sm:$0xf]
  %v2444 = vrot.slane %v2426, 2
  %v2461 = vunpack.c.l.b16 %v2427
  %v2462 = vunpack.c.h.b16 %v2427
  %v2463 = vunpack.c.l.b16 %v2428
  %v2464 = vunpack.c.h.b16 %v2428
  %v2465 = vunpack.c.l.b16 %v2429
  %v2466 = vunpack.c.h.b16 %v2429
  %v2467 = vunpack.c.l.b16 %v2430
  %v2468 = vunpack.c.l.b16 %v2431
  %v2469 = vunpack.c.h.b16 %v2431
  %v2470 = vunpack.c.l.b16 %v2432
  %v2471 = vunpack.c.h.b16 %v2432
  %v2472 = vunpack.c.l.b16 %v2433
  %v2473 = vunpack.c.h.b16 %v2433
  %v2474 = vunpack.c.l.b16 %v2434
  %v2475 = vunpack.c.l.b16 %v2435
  %v2476 = vunpack.c.h.b16 %v2435
  %v2477 = vunpack.c.l.b16 %v2436
  %v2478 = vunpack.c.h.b16 %v2436
  %v2479 = vunpack.c.l.b16 %v2437
  %v2480 = vunpack.c.h.b16 %v2437
  %v2481 = vunpack.c.l.b16 %v2438
  %v2482 = vunpack.c.l.b16 %v2439
  %v2483 = vunpack.c.h.b16 %v2439
  %v2484 = vunpack.c.l.b16 %v2440
  %v2485 = vunpack.c.h.b16 %v2440
  %v2486 = vunpack.c.l.b16 %v2441
  %v2487 = vunpack.c.h.b16 %v2441
  %v2488 = vunpack.c.l.b16 %v2442
  %v2489 = vpack.c.b16 %v2468, %v2461
  %v2490 = vpack.c.b16 %v2469, %v2462
  %v2491 = vpack.c.b16 %v2470, %v2463
  %v2492 = vpack.c.b16 %v2471, %v2464
  %v2493 = vpack.c.b16 %v2472, %v2465
  %v2494 = vpack.c.b16 %v2473, %v2466
  %v2495 = vpack.c.b16 %v2474, %v2467
  %v2496 = vpack.c.b16 %v2482, %v2475
  %v2497 = vpack.c.b16 %v2483, %v2476
  %v2498 = vpack.c.b16 %v2484, %v2477
  %v2499 = vpack.c.b16 %v2485, %v2478
  %v2500 = vpack.c.b16 %v2486, %v2479
  %v2501 = vpack.c.b16 %v2487, %v2480
  %v2502 = vpack.c.b16 %v2488, %v2481
  %v2518 = vsel %vm92, %v2444, 0
  %2520 = vmatprep.subr.bf16.mxu0 %v2490
  %2521 = vmatpush1.bf16.msra.mxu0 %v2489
  %2522 = vmatprep.subr.bf16.mxu0 %v2497
  %2523 = vmatpush1.bf16.msra.mxu0 %v2496
  %2524 = vmatprep.subr.bf16.mxu0 0
  %2525 = vmatpush1.bf16.msra.mxu0 0
  %2526 = vmatprep.subr.bf16.mxu0 0
  %2527 = vmatpush1.bf16.msra.mxu0 0
  %2528 = vmatprep.subr.bf16.mxu0 0
  %2529 = vmatpush1.bf16.msra.mxu0 0
  %2530 = vmatprep.subr.bf16.mxu0 0
  %2531 = vmatpush1.bf16.msra.mxu0 0
  %2532 = vmatprep.subr.bf16.mxu0 0
  %2533 = vmatpush1.bf16.msra.mxu0 0
  %2534 = vmatprep.subr.bf16.mxu0 0
  %2535 = vmatpush1.bf16.msra.mxu0 0
  %2536 = vmatprep.subr.bf16.mxu0 0
  %2537 = vmatpush1.bf16.msra.mxu0 0
  %2538 = vmatprep.subr.bf16.mxu0 0
  %2539 = vmatpush1.bf16.msra.mxu0 0
  %2540 = vmatprep.subr.bf16.mxu0 0
  %2541 = vmatpush1.bf16.msra.mxu0 0
  %2542 = vmatprep.subr.bf16.mxu0 0
  %2543 = vmatpush1.bf16.msra.mxu0 0
  %2544 = vmatprep.subr.bf16.mxu0 0
  %2545 = vmatpush1.bf16.msra.mxu0 0
  %2546 = vmatprep.subr.bf16.mxu0 0
  %2547 = vmatpush1.bf16.msra.mxu0 0
  %2548 = vmatprep.subr.bf16.mxu0 0
  %2549 = vmatpush1.bf16.msra.mxu0 0
  %2550 = vmatprep.subr.bf16.mxu0 0
  %2551 = vmatpush1.bf16.msra.mxu0 0
  %2552 = vmatprep.mubr.bf16.mxu0 0
  %2553 = vmatmul.mubr.bf16.gmra.mrb[0].mxu0 %v2518
  %v2554 = vpop.f32.mrb[0].mxu0
  %v2555 = vadd.f32 0.0, %v2554
  %v2556 = vpop.f32.mrb[0].mxu0
  %v2557 = vadd.f32 0.0, %v2556
  %v2558 = vpop.f32.mrb[0].mxu0
  %v2559 = vpop.f32.mrb[0].mxu0
  %2560 = vdwg.mxu0
  %2561 = vmatprep.subr.bf16.mxu0 %v2492
  %2562 = vmatpush1.bf16.msra.mxu0 %v2491
  %2563 = vmatprep.subr.bf16.mxu0 %v2499
  %2564 = vmatpush1.bf16.msra.mxu0 %v2498
  %2565 = vmatprep.subr.bf16.mxu0 0
  %2566 = vmatpush1.bf16.msra.mxu0 0
  %2567 = vmatprep.subr.bf16.mxu0 0
  %2568 = vmatpush1.bf16.msra.mxu0 0
  %2569 = vmatprep.subr.bf16.mxu0 0
  %2570 = vmatpush1.bf16.msra.mxu0 0
  %2571 = vmatprep.subr.bf16.mxu0 0
  %2572 = vmatpush1.bf16.msra.mxu0 0
  %2573 = vmatprep.subr.bf16.mxu0 0
  %2574 = vmatpush1.bf16.msra.mxu0 0
  %2575 = vmatprep.subr.bf16.mxu0 0
  %2576 = vmatpush1.bf16.msra.mxu0 0
  %2577 = vmatprep.subr.bf16.mxu0 0
  %2578 = vmatpush1.bf16.msra.mxu0 0
  %2579 = vmatprep.subr.bf16.mxu0 0
  %2580 = vmatpush1.bf16.msra.mxu0 0
  %2581 = vmatprep.subr.bf16.mxu0 0
  %2582 = vmatpush1.bf16.msra.mxu0 0
  %2583 = vmatprep.subr.bf16.mxu0 0
  %2584 = vmatpush1.bf16.msra.mxu0 0
  %2585 = vmatprep.subr.bf16.mxu0 0
  %2586 = vmatpush1.bf16.msra.mxu0 0
  %2587 = vmatprep.subr.bf16.mxu0 0
  %2588 = vmatpush1.bf16.msra.mxu0 0
  %2589 = vmatprep.subr.bf16.mxu0 0
  %2590 = vmatpush1.bf16.msra.mxu0 0
  %2591 = vmatprep.subr.bf16.mxu0 0
  %2592 = vmatpush1.bf16.msra.mxu0 0
  %2593 = vmatprep.mubr.bf16.mxu0 0
  %2594 = vmatmul.mubr.bf16.gmra.mrb[0].mxu0 %v2518
  %v2595 = vpop.f32.mrb[0].mxu0
  %v2596 = vadd.f32 0.0, %v2595
  %v2597 = vpop.f32.mrb[0].mxu0
  %v2598 = vadd.f32 0.0, %v2597
  %v2599 = vpop.f32.mrb[0].mxu0
  %v2600 = vpop.f32.mrb[0].mxu0
  %2601 = vdwg.mxu0
  %2602 = vmatprep.subr.bf16.mxu0 %v2494
  %2603 = vmatpush1.bf16.msra.mxu0 %v2493
  %2604 = vmatprep.subr.bf16.mxu0 %v2501
  %2605 = vmatpush1.bf16.msra.mxu0 %v2500
  %2606 = vmatprep.subr.bf16.mxu0 0
  %2607 = vmatpush1.bf16.msra.mxu0 0
  %2608 = vmatprep.subr.bf16.mxu0 0
  %2609 = vmatpush1.bf16.msra.mxu0 0
  %2610 = vmatprep.subr.bf16.mxu0 0
  %2611 = vmatpush1.bf16.msra.mxu0 0
  %2612 = vmatprep.subr.bf16.mxu0 0
  %2613 = vmatpush1.bf16.msra.mxu0 0
  %2614 = vmatprep.subr.bf16.mxu0 0
  %2615 = vmatpush1.bf16.msra.mxu0 0
  %2616 = vmatprep.subr.bf16.mxu0 0
  %2617 = vmatpush1.bf16.msra.mxu0 0
  %2618 = vmatprep.subr.bf16.mxu0 0
  %2619 = vmatpush1.bf16.msra.mxu0 0
  %2620 = vmatprep.subr.bf16.mxu0 0
  %2621 = vmatpush1.bf16.msra.mxu0 0
  %2622 = vmatprep.subr.bf16.mxu0 0
  %2623 = vmatpush1.bf16.msra.mxu0 0
  %2624 = vmatprep.subr.bf16.mxu0 0
  %2625 = vmatpush1.bf16.msra.mxu0 0
  %2626 = vmatprep.subr.bf16.mxu0 0
  %2627 = vmatpush1.bf16.msra.mxu0 0
  %2628 = vmatprep.subr.bf16.mxu0 0
  %2629 = vmatpush1.bf16.msra.mxu0 0
  %2630 = vmatprep.subr.bf16.mxu0 0
  %2631 = vmatpush1.bf16.msra.mxu0 0
  %2632 = vmatprep.subr.bf16.mxu0 0
  %2633 = vmatpush1.bf16.msra.mxu0 0
  %2634 = vmatprep.mubr.bf16.mxu0 0
  %2635 = vmatmul.mubr.bf16.gmra.mrb[0].mxu0 %v2518
  %v2636 = vpop.f32.mrb[0].mxu0
  %v2637 = vadd.f32 0.0, %v2636
  %v2638 = vpop.f32.mrb[0].mxu0
  %v2639 = vadd.f32 0.0, %v2638
  %v2640 = vpop.f32.mrb[0].mxu0
  %v2641 = vpop.f32.mrb[0].mxu0
  %2642 = vdwg.mxu0
  %2643 = vmatprep.subr.bf16.mxu0 0
  %2644 = vmatpush1.bf16.msra.mxu0 %v2495
  %2645 = vmatprep.subr.bf16.mxu0 0
  %2646 = vmatpush1.bf16.msra.mxu0 %v2502
  %2647 = vmatprep.subr.bf16.mxu0 0
  %2648 = vmatpush1.bf16.msra.mxu0 0
  %2649 = vmatprep.subr.bf16.mxu0 0
  %2650 = vmatpush1.bf16.msra.mxu0 0
  %2651 = vmatprep.subr.bf16.mxu0 0
  %2652 = vmatpush1.bf16.msra.mxu0 0
  %2653 = vmatprep.subr.bf16.mxu0 0
  %2654 = vmatpush1.bf16.msra.mxu0 0
  %2655 = vmatprep.subr.bf16.mxu0 0
  %2656 = vmatpush1.bf16.msra.mxu0 0
  %2657 = vmatprep.subr.bf16.mxu0 0
  %2658 = vmatpush1.bf16.msra.mxu0 0
  %2659 = vmatprep.subr.bf16.mxu0 0
  %2660 = vmatpush1.bf16.msra.mxu0 0
  %2661 = vmatprep.subr.bf16.mxu0 0
  %2662 = vmatpush1.bf16.msra.mxu0 0
  %2663 = vmatprep.subr.bf16.mxu0 0
  %2664 = vmatpush1.bf16.msra.mxu0 0
  %2665 = vmatprep.subr.bf16.mxu0 0
  %2666 = vmatpush1.bf16.msra.mxu0 0
  %2667 = vmatprep.subr.bf16.mxu0 0
  %2668 = vmatpush1.bf16.msra.mxu0 0
  %2669 = vmatprep.subr.bf16.mxu0 0
  %2670 = vmatpush1.bf16.msra.mxu0 0
  %2671 = vmatprep.subr.bf16.mxu0 0
  %2672 = vmatpush1.bf16.msra.mxu0 0
  %2673 = vmatprep.subr.bf16.mxu0 0
  %2674 = vmatpush1.bf16.msra.mxu0 0
  %2675 = vmatprep.mubr.bf16.mxu0 0
  %2676 = vmatmul.mubr.bf16.gmra.mrb[0].mxu0 %v2518
  %v2677 = vpop.f32.mrb[0].mxu0
  %v2678 = vadd.f32 0.0, %v2677
  %v2679 = vpop.f32.mrb[0].mxu0
  %v2680 = vpop.f32.mrb[0].mxu0
  %v2681 = vpop.f32.mrb[0].mxu0
  %2682 = vdwg.mxu0
  %v2683 = vlaneseq
  %v2684 = vshrl.u32 %v2683, 7
  %v2685 = vsub.s32 0, %v2684
  %v2686 = vrot.slane %v2637, %v2685
  %v2687 = vlaneseq
  %v2688 = vshrl.u32 %v2687, 7
  %v2689 = vsub.s32 0, %v2688
  %v2690 = vrot.slane %v2639, %v2689
  %v2691 = vlaneseq
  %v2692 = vshrl.u32 %v2691, 7
  %v2693 = vsub.s32 0, %v2692
  %v2694 = vrot.slane %v2678, %v2693
  %v2695 = vadd.f32 %v418, %v2686
  %v2696 = vadd.f32 %v420, %v2690
  %v2697 = vadd.f32 %v494, %v2694
  %v2698 = vxor.u32 %v2695, 2147483648
  %v2699 = vxor.u32 %v2696, 2147483648
  %v2700 = vmul.f32 %v2698, 1.442695
  %v2701 = vpow.pop %v2700
  %v2702 = vmul.f32 %v2699, 1.442695
  %v2703 = vpow.pop %v2702
  %v2704 = vadd.f32 %v2701, 1.0
  %v2705 = vadd.f32 %v2703, 1.0
  %v2706 = vrcp.pop %v2704
  %v2707 = vmul.f32 1.0, %v2706
  %v2708 = vrcp.pop %v2705
  %v2709 = vmul.f32 1.0, %v2708
  %v2710 = vtanh.pop %v2697
  %v2711 = vlaneseq
  %v2712 = vshrl.u32 %v2711, 7
  %v2713 = vsub.s32 4, %v2712
  %v2714 = vrot.slane %v2421, %v2713
  %v2715 = vmul.f32 %v2709, %v2714
  %v2716 = vmul.f32 %v2707, %v2710
  %v2717 = vadd.f32 %v2715, %v2716
  %s2718 = sld [smem:[#allocation5 + $0x8]]
  %s2719 = scalar_lea.vmem [#allocation2], %s2718
  %2720 = vst [vmem:[%s2719] sm:$0x1] %v2717
  %s2721 = sld [smem:[#allocation5 + $0x9]]
  %s2722 = scalar_lea.vmem [#allocation2], %s2721
  %2723 = vst [vmem:[%s2722 - $0x1] sm:$0x2] %v2717
  %v2728 = vrot.slane %v2555, 3
  %v2729 = vrot.slane %v2557, 3
  %v2730 = vrot.slane %v2596, 3
  %v2731 = vrot.slane %v2598, 3
  %v2736 = vadd.f32 %v163, %v2728
  %v2737 = vadd.f32 %v165, %v2729
  %v2738 = vadd.f32 %v234, %v2730
  %v2739 = vadd.f32 %v236, %v2731
  %v2740 = vxor.u32 %v2736, 2147483648
  %v2741 = vxor.u32 %v2737, 2147483648
  %v2742 = vxor.u32 %v2738, 2147483648
  %v2743 = vmul.f32 %v2740, 1.442695
  %v2744 = vpow.pop %v2743
  %v2745 = vmul.f32 %v2741, 1.442695
  %v2746 = vpow.pop %v2745
  %v2747 = vmul.f32 %v2742, 1.442695
  %v2748 = vpow.pop %v2747
  %v2749 = vadd.f32 %v2744, 1.0
  %v2750 = vadd.f32 %v2746, 1.0
  %v2751 = vadd.f32 %v2748, 1.0
  %v2752 = vrcp.pop %v2749
  %v2753 = vmul.f32 1.0, %v2752
  %v2754 = vrcp.pop %v2750
  %v2755 = vmul.f32 1.0, %v2754
  %v2756 = vrcp.pop %v2751
  %v2757 = vmul.f32 1.0, %v2756
  %v2758 = vtanh.pop %v2739
  %s2759 = sld [smem:[#allocation4 + $0x5]]
  %v2760 = vld [vmem:[#allocation2 + $0x28] sm:$0xff]
  %v2761 = vpack.c.bf16 %v2760, %v2760
  %v2762 = vld [vmem:[%s9] sm:$0xf]
  %v2763 = vld [vmem:[%s9 + $0x4] sm:$0xf]
  %v2764 = vld [vmem:[%s9 + $0x8] sm:$0xf]
  %v2765 = vld [vmem:[%s9 + $0xc] sm:$0xf]
  %v2770 = vunpack.c.l.b16 %v2762
  %v2771 = vunpack.c.l.b16 %v2763
  %v2772 = vunpack.c.l.b16 %v2764
  %v2773 = vunpack.c.l.b16 %v2765
  %v2774 = vpack.c.b16 %v2771, %v2770
  %v2775 = vpack.c.b16 %v2773, %v2772
  %v2779 = vsel %vm92, %v2761, 0
  %2781 = vmatprep.subr.bf16.mxu0 0
  %2782 = vmatpush1.bf16.msra.mxu0 %v2774
  %2783 = vmatprep.subr.bf16.mxu0 0
  %2784 = vmatpush1.bf16.msra.mxu0 %v2775
  %2785 = vmatprep.subr.bf16.mxu0 0
  %2786 = vmatpush1.bf16.msra.mxu0 0
  %2787 = vmatprep.subr.bf16.mxu0 0
  %2788 = vmatpush1.bf16.msra.mxu0 0
  %2789 = vmatprep.subr.bf16.mxu0 0
  %2790 = vmatpush1.bf16.msra.mxu0 0
  %2791 = vmatprep.subr.bf16.mxu0 0
  %2792 = vmatpush1.bf16.msra.mxu0 0
  %2793 = vmatprep.subr.bf16.mxu0 0
  %2794 = vmatpush1.bf16.msra.mxu0 0
  %2795 = vmatprep.subr.bf16.mxu0 0
  %2796 = vmatpush1.bf16.msra.mxu0 0
  %2797 = vmatprep.subr.bf16.mxu0 0
  %2798 = vmatpush1.bf16.msra.mxu0 0
  %2799 = vmatprep.subr.bf16.mxu0 0
  %2800 = vmatpush1.bf16.msra.mxu0 0
  %2801 = vmatprep.subr.bf16.mxu0 0
  %2802 = vmatpush1.bf16.msra.mxu0 0
  %2803 = vmatprep.subr.bf16.mxu0 0
  %2804 = vmatpush1.bf16.msra.mxu0 0
  %2805 = vmatprep.subr.bf16.mxu0 0
  %2806 = vmatpush1.bf16.msra.mxu0 0
  %2807 = vmatprep.subr.bf16.mxu0 0
  %2808 = vmatpush1.bf16.msra.mxu0 0
  %2809 = vmatprep.subr.bf16.mxu0 0
  %2810 = vmatpush1.bf16.msra.mxu0 0
  %2811 = vmatprep.subr.bf16.mxu0 0
  %2812 = vmatpush1.bf16.msra.mxu0 0
  %2813 = vmatprep.mubr.bf16.mxu0 0
  %2814 = vmatmul.mubr.bf16.gmra.mrb[0].mxu0 %v2779
  %v2815 = vpop.f32.mrb[0].mxu0
  %v2816 = vadd.f32 0.0, %v2815
  %v2817 = vpop.f32.mrb[0].mxu0
  %v2818 = vpop.f32.mrb[0].mxu0
  %v2819 = vpop.f32.mrb[0].mxu0
  %2820 = vdwg.mxu0
  %v2821 = vlaneseq
  %v2822 = vshrl.u32 %v2821, 7
  %v2823 = vsub.s32 5, %v2822
  %v2824 = vrot.slane %v305, %v2823
  %v2825 = vadd.f32 %v2824, %v2816
  %v2826 = vxor.u32 %v2825, 2147483648
  %v2827 = vmul.f32 %v2826, 1.442695
  %v2828 = vpow.pop %v2827
  %v2829 = vadd.f32 %v2828, 1.0
  %v2830 = vrcp.pop %v2829
  %v2831 = vmul.f32 1.0, %v2830
  %v2832 = vstv %s2759
  %vm2833 = vcmp.lt.s32.totalorder %v507, %v2832
  %v2834 = vmul.f32 %v2831, 1.442695
  %v2835 = vpow.pop %v2834
  %v2836 = vsel %vm2833, %v2835, 0.0
  %v2837 = vmul.f32 %v2753, 1.442695
  %v2838 = vpow.pop %v2837
  %v2839 = vrot.slane %v2836, 4
  %v2840 = vadd.f32 %v2836, %v2839
  %v2841 = vrot.slane %v2840, 2
  %v2842 = vadd.f32 %v2840, %v2841
  %v2843 = vrot.slane %v2842, 1
  %v2844 = vadd.f32 %v2842, %v2843
  %v2845 = vadd.f32 %v2838, %v2844
  %v2846 = vmul.f32 %v2838, %v2758
  %v2847 = vmul.f32 %v2836, %v2760
  %v2848 = vrot.slane %v2847, 4
  %v2849 = vadd.f32 %v2847, %v2848
  %v2850 = vrot.slane %v2849, 2
  %v2851 = vadd.f32 %v2849, %v2850
  %v2852 = vrot.slane %v2851, 1
  %v2853 = vadd.f32 %v2851, %v2852
  %v2854 = vadd.f32 %v2846, %v2853
  %v2855 = vrcp.pop %v2845
  %v2856 = vmul.f32 %v2854, %v2855
  %v2858 = vrot.slane %v2421, 7
  %v2860 = vmul.f32 %v2755, %v2858
  %v2861 = vmul.f32 %v2753, %v2758
  %v2862 = vadd.f32 %v2860, %v2861
  %p2863 = scmp.gt.s32.totalorder %s2759, 0
  %s2864 = scalar_select %p2863, 1, 0
  %v2865 = vstv %s2864
  %vm2866 = vcmp.eq.s32.totalorder %v2865, 1
  %v2867 = vsel %vm2866, %v2856, %v2862
  %v2868 = vtanh.pop %v2867
  %v2869 = vmul.f32 %v2757, %v2868
  %2870 = vst [vmem:[%s10] sm:$0x20] %v2869
  %2871 = vst [vmem:[%s11] sm:$0x20] %v2867
  %v2872 = vpack.c.bf16 %v2869, %v2869
  %v2873 = vld [vmem:[%s8] sm:$0xff]
  %v2874 = vld [vmem:[%s8 + $0x8] sm:$0xff]
  %v2875 = vld [vmem:[%s8 + $0x10] sm:$0xff]
  %v2876 = vld [vmem:[%s8 + $0x18] sm:$0xf]
  %v2877 = vld [vmem:[%s8 + $0x1c] sm:$0xff]
  %v2878 = vld [vmem:[%s8 + $0x24] sm:$0xff]
  %v2879 = vld [vmem:[%s8 + $0x2c] sm:$0xff]
  %v2880 = vld [vmem:[%s8 + $0x34] sm:$0xf]
  %v2881 = vld [vmem:[%s8 + $0x38] sm:$0xff]
  %v2882 = vld [vmem:[%s8 + $0x40] sm:$0xff]
  %v2883 = vld [vmem:[%s8 + $0x48] sm:$0xff]
  %v2884 = vld [vmem:[%s8 + $0x50] sm:$0xf]
  %v2885 = vld [vmem:[%s8 + $0x54] sm:$0xff]
  %v2886 = vld [vmem:[%s8 + $0x5c] sm:$0xff]
  %v2887 = vld [vmem:[%s8 + $0x64] sm:$0xff]
  %v2888 = vld [vmem:[%s8 + $0x6c] sm:$0xf]
  %v2890 = vshrl.u32 %v2872, 16
  %v2892 = vrot.slane %v2890, 2
  %v2909 = vunpack.c.l.b16 %v2873
  %v2910 = vunpack.c.h.b16 %v2873
  %v2911 = vunpack.c.l.b16 %v2874
  %v2912 = vunpack.c.h.b16 %v2874
  %v2913 = vunpack.c.l.b16 %v2875
  %v2914 = vunpack.c.h.b16 %v2875
  %v2915 = vunpack.c.l.b16 %v2876
  %v2916 = vunpack.c.l.b16 %v2877
  %v2917 = vunpack.c.h.b16 %v2877
  %v2918 = vunpack.c.l.b16 %v2878
  %v2919 = vunpack.c.h.b16 %v2878
  %v2920 = vunpack.c.l.b16 %v2879
  %v2921 = vunpack.c.h.b16 %v2879
  %v2922 = vunpack.c.l.b16 %v2880
  %v2923 = vunpack.c.l.b16 %v2881
  %v2924 = vunpack.c.h.b16 %v2881
  %v2925 = vunpack.c.l.b16 %v2882
  %v2926 = vunpack.c.h.b16 %v2882
  %v2927 = vunpack.c.l.b16 %v2883
  %v2928 = vunpack.c.h.b16 %v2883
  %v2929 = vunpack.c.l.b16 %v2884
  %v2930 = vunpack.c.l.b16 %v2885
  %v2931 = vunpack.c.h.b16 %v2885
  %v2932 = vunpack.c.l.b16 %v2886
  %v2933 = vunpack.c.h.b16 %v2886
  %v2934 = vunpack.c.l.b16 %v2887
  %v2935 = vunpack.c.h.b16 %v2887
  %v2936 = vunpack.c.l.b16 %v2888
  %v2937 = vpack.c.b16 %v2916, %v2909
  %v2938 = vpack.c.b16 %v2917, %v2910
  %v2939 = vpack.c.b16 %v2918, %v2911
  %v2940 = vpack.c.b16 %v2919, %v2912
  %v2941 = vpack.c.b16 %v2920, %v2913
  %v2942 = vpack.c.b16 %v2921, %v2914
  %v2943 = vpack.c.b16 %v2922, %v2915
  %v2944 = vpack.c.b16 %v2930, %v2923
  %v2945 = vpack.c.b16 %v2931, %v2924
  %v2946 = vpack.c.b16 %v2932, %v2925
  %v2947 = vpack.c.b16 %v2933, %v2926
  %v2948 = vpack.c.b16 %v2934, %v2927
  %v2949 = vpack.c.b16 %v2935, %v2928
  %v2950 = vpack.c.b16 %v2936, %v2929
  %v2966 = vsel %vm92, %v2892, 0
  %2968 = vmatprep.subr.bf16.mxu0 %v2938
  %2969 = vmatpush1.bf16.msra.mxu0 %v2937
  %2970 = vmatprep.subr.bf16.mxu0 %v2945
  %2971 = vmatpush1.bf16.msra.mxu0 %v2944
  %2972 = vmatprep.subr.bf16.mxu0 0
  %2973 = vmatpush1.bf16.msra.mxu0 0
  %2974 = vmatprep.subr.bf16.mxu0 0
  %2975 = vmatpush1.bf16.msra.mxu0 0
  %2976 = vmatprep.subr.bf16.mxu0 0
  %2977 = vmatpush1.bf16.msra.mxu0 0
  %2978 = vmatprep.subr.bf16.mxu0 0
  %2979 = vmatpush1.bf16.msra.mxu0 0
  %2980 = vmatprep.subr.bf16.mxu0 0
  %2981 = vmatpush1.bf16.msra.mxu0 0
  %2982 = vmatprep.subr.bf16.mxu0 0
  %2983 = vmatpush1.bf16.msra.mxu0 0
  %2984 = vmatprep.subr.bf16.mxu0 0
  %2985 = vmatpush1.bf16.msra.mxu0 0
  %2986 = vmatprep.subr.bf16.mxu0 0
  %2987 = vmatpush1.bf16.msra.mxu0 0
  %2988 = vmatprep.subr.bf16.mxu0 0
  %2989 = vmatpush1.bf16.msra.mxu0 0
  %2990 = vmatprep.subr.bf16.mxu0 0
  %2991 = vmatpush1.bf16.msra.mxu0 0
  %2992 = vmatprep.subr.bf16.mxu0 0
  %2993 = vmatpush1.bf16.msra.mxu0 0
  %2994 = vmatprep.subr.bf16.mxu0 0
  %2995 = vmatpush1.bf16.msra.mxu0 0
  %2996 = vmatprep.subr.bf16.mxu0 0
  %2997 = vmatpush1.bf16.msra.mxu0 0
  %2998 = vmatprep.subr.bf16.mxu0 0
  %2999 = vmatpush1.bf16.msra.mxu0 0
  %3000 = vmatprep.mubr.bf16.mxu0 0
  %3001 = vmatmul.mubr.bf16.gmra.mrb[0].mxu0 %v2966
  %v3002 = vpop.f32.mrb[0].mxu0
  %v3003 = vadd.f32 0.0, %v3002
  %v3004 = vpop.f32.mrb[0].mxu0
  %v3005 = vadd.f32 0.0, %v3004
  %v3006 = vpop.f32.mrb[0].mxu0
  %v3007 = vpop.f32.mrb[0].mxu0
  %3008 = vdwg.mxu0
  %3009 = vmatprep.subr.bf16.mxu0 %v2940
  %3010 = vmatpush1.bf16.msra.mxu0 %v2939
  %3011 = vmatprep.subr.bf16.mxu0 %v2947
  %3012 = vmatpush1.bf16.msra.mxu0 %v2946
  %3013 = vmatprep.subr.bf16.mxu0 0
  %3014 = vmatpush1.bf16.msra.mxu0 0
  %3015 = vmatprep.subr.bf16.mxu0 0
  %3016 = vmatpush1.bf16.msra.mxu0 0
  %3017 = vmatprep.subr.bf16.mxu0 0
  %3018 = vmatpush1.bf16.msra.mxu0 0
  %3019 = vmatprep.subr.bf16.mxu0 0
  %3020 = vmatpush1.bf16.msra.mxu0 0
  %3021 = vmatprep.subr.bf16.mxu0 0
  %3022 = vmatpush1.bf16.msra.mxu0 0
  %3023 = vmatprep.subr.bf16.mxu0 0
  %3024 = vmatpush1.bf16.msra.mxu0 0
  %3025 = vmatprep.subr.bf16.mxu0 0
  %3026 = vmatpush1.bf16.msra.mxu0 0
  %3027 = vmatprep.subr.bf16.mxu0 0
  %3028 = vmatpush1.bf16.msra.mxu0 0
  %3029 = vmatprep.subr.bf16.mxu0 0
  %3030 = vmatpush1.bf16.msra.mxu0 0
  %3031 = vmatprep.subr.bf16.mxu0 0
  %3032 = vmatpush1.bf16.msra.mxu0 0
  %3033 = vmatprep.subr.bf16.mxu0 0
  %3034 = vmatpush1.bf16.msra.mxu0 0
  %3035 = vmatprep.subr.bf16.mxu0 0
  %3036 = vmatpush1.bf16.msra.mxu0 0
  %3037 = vmatprep.subr.bf16.mxu0 0
  %3038 = vmatpush1.bf16.msra.mxu0 0
  %3039 = vmatprep.subr.bf16.mxu0 0
  %3040 = vmatpush1.bf16.msra.mxu0 0
  %3041 = vmatprep.mubr.bf16.mxu0 0
  %3042 = vmatmul.mubr.bf16.gmra.mrb[0].mxu0 %v2966
  %v3043 = vpop.f32.mrb[0].mxu0
  %v3044 = vadd.f32 0.0, %v3043
  %v3045 = vpop.f32.mrb[0].mxu0
  %v3046 = vadd.f32 0.0, %v3045
  %v3047 = vpop.f32.mrb[0].mxu0
  %v3048 = vpop.f32.mrb[0].mxu0
  %3049 = vdwg.mxu0
  %3050 = vmatprep.subr.bf16.mxu0 %v2942
  %3051 = vmatpush1.bf16.msra.mxu0 %v2941
  %3052 = vmatprep.subr.bf16.mxu0 %v2949
  %3053 = vmatpush1.bf16.msra.mxu0 %v2948
  %3054 = vmatprep.subr.bf16.mxu0 0
  %3055 = vmatpush1.bf16.msra.mxu0 0
  %3056 = vmatprep.subr.bf16.mxu0 0
  %3057 = vmatpush1.bf16.msra.mxu0 0
  %3058 = vmatprep.subr.bf16.mxu0 0
  %3059 = vmatpush1.bf16.msra.mxu0 0
  %3060 = vmatprep.subr.bf16.mxu0 0
  %3061 = vmatpush1.bf16.msra.mxu0 0
  %3062 = vmatprep.subr.bf16.mxu0 0
  %3063 = vmatpush1.bf16.msra.mxu0 0
  %3064 = vmatprep.subr.bf16.mxu0 0
  %3065 = vmatpush1.bf16.msra.mxu0 0
  %3066 = vmatprep.subr.bf16.mxu0 0
  %3067 = vmatpush1.bf16.msra.mxu0 0
  %3068 = vmatprep.subr.bf16.mxu0 0
  %3069 = vmatpush1.bf16.msra.mxu0 0
  %3070 = vmatprep.subr.bf16.mxu0 0
  %3071 = vmatpush1.bf16.msra.mxu0 0
  %3072 = vmatprep.subr.bf16.mxu0 0
  %3073 = vmatpush1.bf16.msra.mxu0 0
  %3074 = vmatprep.subr.bf16.mxu0 0
  %3075 = vmatpush1.bf16.msra.mxu0 0
  %3076 = vmatprep.subr.bf16.mxu0 0
  %3077 = vmatpush1.bf16.msra.mxu0 0
  %3078 = vmatprep.subr.bf16.mxu0 0
  %3079 = vmatpush1.bf16.msra.mxu0 0
  %3080 = vmatprep.subr.bf16.mxu0 0
  %3081 = vmatpush1.bf16.msra.mxu0 0
  %3082 = vmatprep.mubr.bf16.mxu0 0
  %3083 = vmatmul.mubr.bf16.gmra.mrb[0].mxu0 %v2966
  %v3084 = vpop.f32.mrb[0].mxu0
  %v3085 = vadd.f32 0.0, %v3084
  %v3086 = vpop.f32.mrb[0].mxu0
  %v3087 = vadd.f32 0.0, %v3086
  %v3088 = vpop.f32.mrb[0].mxu0
  %v3089 = vpop.f32.mrb[0].mxu0
  %3090 = vdwg.mxu0
  %3091 = vmatprep.subr.bf16.mxu0 0
  %3092 = vmatpush1.bf16.msra.mxu0 %v2943
  %3093 = vmatprep.subr.bf16.mxu0 0
  %3094 = vmatpush1.bf16.msra.mxu0 %v2950
  %3095 = vmatprep.subr.bf16.mxu0 0
  %3096 = vmatpush1.bf16.msra.mxu0 0
  %3097 = vmatprep.subr.bf16.mxu0 0
  %3098 = vmatpush1.bf16.msra.mxu0 0
  %3099 = vmatprep.subr.bf16.mxu0 0
  %3100 = vmatpush1.bf16.msra.mxu0 0
  %3101 = vmatprep.subr.bf16.mxu0 0
  %3102 = vmatpush1.bf16.msra.mxu0 0
  %3103 = vmatprep.subr.bf16.mxu0 0
  %3104 = vmatpush1.bf16.msra.mxu0 0
  %3105 = vmatprep.subr.bf16.mxu0 0
  %3106 = vmatpush1.bf16.msra.mxu0 0
  %3107 = vmatprep.subr.bf16.mxu0 0
  %3108 = vmatpush1.bf16.msra.mxu0 0
  %3109 = vmatprep.subr.bf16.mxu0 0
  %3110 = vmatpush1.bf16.msra.mxu0 0
  %3111 = vmatprep.subr.bf16.mxu0 0
  %3112 = vmatpush1.bf16.msra.mxu0 0
  %3113 = vmatprep.subr.bf16.mxu0 0
  %3114 = vmatpush1.bf16.msra.mxu0 0
  %3115 = vmatprep.subr.bf16.mxu0 0
  %3116 = vmatpush1.bf16.msra.mxu0 0
  %3117 = vmatprep.subr.bf16.mxu0 0
  %3118 = vmatpush1.bf16.msra.mxu0 0
  %3119 = vmatprep.subr.bf16.mxu0 0
  %3120 = vmatpush1.bf16.msra.mxu0 0
  %3121 = vmatprep.subr.bf16.mxu0 0
  %3122 = vmatpush1.bf16.msra.mxu0 0
  %3123 = vmatprep.mubr.bf16.mxu0 0
  %3124 = vmatmul.mubr.bf16.gmra.mrb[0].mxu0 %v2966
  %v3125 = vpop.f32.mrb[0].mxu0
  %v3126 = vadd.f32 0.0, %v3125
  %v3127 = vpop.f32.mrb[0].mxu0
  %v3128 = vpop.f32.mrb[0].mxu0
  %v3129 = vpop.f32.mrb[0].mxu0
  %3130 = vdwg.mxu0
  %v3131 = vlaneseq
  %v3132 = vshrl.u32 %v3131, 7
  %v3133 = vsub.s32 0, %v3132
  %v3134 = vrot.slane %v3085, %v3133
  %v3135 = vlaneseq
  %v3136 = vshrl.u32 %v3135, 7
  %v3137 = vsub.s32 0, %v3136
  %v3138 = vrot.slane %v3087, %v3137
  %v3139 = vlaneseq
  %v3140 = vshrl.u32 %v3139, 7
  %v3141 = vsub.s32 0, %v3140
  %v3142 = vrot.slane %v3126, %v3141
  %v3143 = vadd.f32 %v418, %v3134
  %v3144 = vadd.f32 %v420, %v3138
  %v3145 = vadd.f32 %v494, %v3142
  %v3146 = vxor.u32 %v3143, 2147483648
  %v3147 = vxor.u32 %v3144, 2147483648
  %v3148 = vmul.f32 %v3146, 1.442695
  %v3149 = vpow.pop %v3148
  %v3150 = vmul.f32 %v3147, 1.442695
  %v3151 = vpow.pop %v3150
  %v3152 = vadd.f32 %v3149, 1.0
  %v3153 = vadd.f32 %v3151, 1.0
  %v3154 = vrcp.pop %v3152
  %v3155 = vmul.f32 1.0, %v3154
  %v3156 = vrcp.pop %v3153
  %v3157 = vmul.f32 1.0, %v3156
  %v3158 = vtanh.pop %v3145
  %v3159 = vlaneseq
  %v3160 = vshrl.u32 %v3159, 7
  %v3161 = vsub.s32 5, %v3160
  %v3162 = vrot.slane %v2867, %v3161
  %v3163 = vmul.f32 %v3157, %v3162
  %v3164 = vmul.f32 %v3155, %v3158
  %v3165 = vadd.f32 %v3163, %v3164
  %s3166 = sld [smem:[#allocation5 + $0xa]]
  %s3167 = scalar_lea.vmem [#allocation2], %s3166
  %3168 = vst [vmem:[%s3167 - $0x2] sm:$0x4] %v3165
  %s3169 = sld [smem:[#allocation5 + $0xb]]
  %s3170 = scalar_lea.vmem [#allocation2], %s3169
  %3171 = vst [vmem:[%s3170 - $0x3] sm:$0x8] %v3165
  %v3176 = vrot.slane %v3003, 2
  %v3177 = vrot.slane %v3005, 2
  %v3178 = vrot.slane %v3044, 2
  %v3179 = vrot.slane %v3046, 2
  %v3184 = vadd.f32 %v163, %v3176
  %v3185 = vadd.f32 %v165, %v3177
  %v3186 = vadd.f32 %v234, %v3178
  %v3187 = vadd.f32 %v236, %v3179
  %v3188 = vxor.u32 %v3184, 2147483648
  %v3189 = vxor.u32 %v3185, 2147483648
  %v3190 = vxor.u32 %v3186, 2147483648
  %v3191 = vmul.f32 %v3188, 1.442695
  %v3192 = vpow.pop %v3191
  %v3193 = vmul.f32 %v3189, 1.442695
  %v3194 = vpow.pop %v3193
  %v3195 = vmul.f32 %v3190, 1.442695
  %v3196 = vpow.pop %v3195
  %v3197 = vadd.f32 %v3192, 1.0
  %v3198 = vadd.f32 %v3194, 1.0
  %v3199 = vadd.f32 %v3196, 1.0
  %v3200 = vrcp.pop %v3197
  %v3201 = vmul.f32 1.0, %v3200
  %v3202 = vrcp.pop %v3198
  %v3203 = vmul.f32 1.0, %v3202
  %v3204 = vrcp.pop %v3199
  %v3205 = vmul.f32 1.0, %v3204
  %v3206 = vtanh.pop %v3187
  %s3207 = sld [smem:[#allocation4 + $0x6]]
  %v3208 = vld [vmem:[#allocation2 + $0x30] sm:$0xff]
  %v3209 = vpack.c.bf16 %v3208, %v3208
  %v3210 = vld [vmem:[%s9] sm:$0xf]
  %v3211 = vld [vmem:[%s9 + $0x4] sm:$0xf]
  %v3212 = vld [vmem:[%s9 + $0x8] sm:$0xf]
  %v3213 = vld [vmem:[%s9 + $0xc] sm:$0xf]
  %v3218 = vunpack.c.l.b16 %v3210
  %v3219 = vunpack.c.l.b16 %v3211
  %v3220 = vunpack.c.l.b16 %v3212
  %v3221 = vunpack.c.l.b16 %v3213
  %v3222 = vpack.c.b16 %v3219, %v3218
  %v3223 = vpack.c.b16 %v3221, %v3220
  %v3227 = vsel %vm92, %v3209, 0
  %3229 = vmatprep.subr.bf16.mxu0 0
  %3230 = vmatpush1.bf16.msra.mxu0 %v3222
  %3231 = vmatprep.subr.bf16.mxu0 0
  %3232 = vmatpush1.bf16.msra.mxu0 %v3223
  %3233 = vmatprep.subr.bf16.mxu0 0
  %3234 = vmatpush1.bf16.msra.mxu0 0
  %3235 = vmatprep.subr.bf16.mxu0 0
  %3236 = vmatpush1.bf16.msra.mxu0 0
  %3237 = vmatprep.subr.bf16.mxu0 0
  %3238 = vmatpush1.bf16.msra.mxu0 0
  %3239 = vmatprep.subr.bf16.mxu0 0
  %3240 = vmatpush1.bf16.msra.mxu0 0
  %3241 = vmatprep.subr.bf16.mxu0 0
  %3242 = vmatpush1.bf16.msra.mxu0 0
  %3243 = vmatprep.subr.bf16.mxu0 0
  %3244 = vmatpush1.bf16.msra.mxu0 0
  %3245 = vmatprep.subr.bf16.mxu0 0
  %3246 = vmatpush1.bf16.msra.mxu0 0
  %3247 = vmatprep.subr.bf16.mxu0 0
  %3248 = vmatpush1.bf16.msra.mxu0 0
  %3249 = vmatprep.subr.bf16.mxu0 0
  %3250 = vmatpush1.bf16.msra.mxu0 0
  %3251 = vmatprep.subr.bf16.mxu0 0
  %3252 = vmatpush1.bf16.msra.mxu0 0
  %3253 = vmatprep.subr.bf16.mxu0 0
  %3254 = vmatpush1.bf16.msra.mxu0 0
  %3255 = vmatprep.subr.bf16.mxu0 0
  %3256 = vmatpush1.bf16.msra.mxu0 0
  %3257 = vmatprep.subr.bf16.mxu0 0
  %3258 = vmatpush1.bf16.msra.mxu0 0
  %3259 = vmatprep.subr.bf16.mxu0 0
  %3260 = vmatpush1.bf16.msra.mxu0 0
  %3261 = vmatprep.mubr.bf16.mxu0 0
  %3262 = vmatmul.mubr.bf16.gmra.mrb[0].mxu0 %v3227
  %v3263 = vpop.f32.mrb[0].mxu0
  %v3264 = vadd.f32 0.0, %v3263
  %v3265 = vpop.f32.mrb[0].mxu0
  %v3266 = vpop.f32.mrb[0].mxu0
  %v3267 = vpop.f32.mrb[0].mxu0
  %3268 = vdwg.mxu0
  %v3269 = vlaneseq
  %v3270 = vshrl.u32 %v3269, 7
  %v3271 = vsub.s32 6, %v3270
  %v3272 = vrot.slane %v305, %v3271
  %v3273 = vadd.f32 %v3272, %v3264
  %v3274 = vxor.u32 %v3273, 2147483648
  %v3275 = vmul.f32 %v3274, 1.442695
  %v3276 = vpow.pop %v3275
  %v3277 = vadd.f32 %v3276, 1.0
  %v3278 = vrcp.pop %v3277
  %v3279 = vmul.f32 1.0, %v3278
  %v3280 = vstv %s3207
  %vm3281 = vcmp.lt.s32.totalorder %v507, %v3280
  %v3282 = vmul.f32 %v3279, 1.442695
  %v3283 = vpow.pop %v3282
  %v3284 = vsel %vm3281, %v3283, 0.0
  %v3285 = vmul.f32 %v3201, 1.442695
  %v3286 = vpow.pop %v3285
  %v3287 = vrot.slane %v3284, 4
  %v3288 = vadd.f32 %v3284, %v3287
  %v3289 = vrot.slane %v3288, 2
  %v3290 = vadd.f32 %v3288, %v3289
  %v3291 = vrot.slane %v3290, 1
  %v3292 = vadd.f32 %v3290, %v3291
  %v3293 = vadd.f32 %v3286, %v3292
  %v3294 = vmul.f32 %v3286, %v3206
  %v3295 = vmul.f32 %v3284, %v3208
  %v3296 = vrot.slane %v3295, 4
  %v3297 = vadd.f32 %v3295, %v3296
  %v3298 = vrot.slane %v3297, 2
  %v3299 = vadd.f32 %v3297, %v3298
  %v3300 = vrot.slane %v3299, 1
  %v3301 = vadd.f32 %v3299, %v3300
  %v3302 = vadd.f32 %v3294, %v3301
  %v3303 = vrcp.pop %v3293
  %v3304 = vmul.f32 %v3302, %v3303
  %v3306 = vrot.slane %v2867, 7
  %v3308 = vmul.f32 %v3203, %v3306
  %v3309 = vmul.f32 %v3201, %v3206
  %v3310 = vadd.f32 %v3308, %v3309
  %p3311 = scmp.gt.s32.totalorder %s3207, 0
  %s3312 = scalar_select %p3311, 1, 0
  %v3313 = vstv %s3312
  %vm3314 = vcmp.eq.s32.totalorder %v3313, 1
  %v3315 = vsel %vm3314, %v3304, %v3310
  %v3316 = vtanh.pop %v3315
  %v3317 = vmul.f32 %v3205, %v3316
  %3318 = vst [vmem:[%s10] sm:$0x40] %v3317
  %3319 = vst [vmem:[%s11] sm:$0x40] %v3315
  %v3320 = vpack.c.bf16 %v3317, %v3317
  %v3321 = vld [vmem:[%s8] sm:$0xff]
  %v3322 = vld [vmem:[%s8 + $0x8] sm:$0xff]
  %v3323 = vld [vmem:[%s8 + $0x10] sm:$0xff]
  %v3324 = vld [vmem:[%s8 + $0x18] sm:$0xf]
  %v3325 = vld [vmem:[%s8 + $0x1c] sm:$0xff]
  %v3326 = vld [vmem:[%s8 + $0x24] sm:$0xff]
  %v3327 = vld [vmem:[%s8 + $0x2c] sm:$0xff]
  %v3328 = vld [vmem:[%s8 + $0x34] sm:$0xf]
  %v3329 = vld [vmem:[%s8 + $0x38] sm:$0xff]
  %v3330 = vld [vmem:[%s8 + $0x40] sm:$0xff]
  %v3331 = vld [vmem:[%s8 + $0x48] sm:$0xff]
  %v3332 = vld [vmem:[%s8 + $0x50] sm:$0xf]
  %v3333 = vld [vmem:[%s8 + $0x54] sm:$0xff]
  %v3334 = vld [vmem:[%s8 + $0x5c] sm:$0xff]
  %v3335 = vld [vmem:[%s8 + $0x64] sm:$0xff]
  %v3336 = vld [vmem:[%s8 + $0x6c] sm:$0xf]
  %v3338 = vrot.slane %v3320, 3
  %v3355 = vunpack.c.l.b16 %v3321
  %v3356 = vunpack.c.h.b16 %v3321
  %v3357 = vunpack.c.l.b16 %v3322
  %v3358 = vunpack.c.h.b16 %v3322
  %v3359 = vunpack.c.l.b16 %v3323
  %v3360 = vunpack.c.h.b16 %v3323
  %v3361 = vunpack.c.l.b16 %v3324
  %v3362 = vunpack.c.l.b16 %v3325
  %v3363 = vunpack.c.h.b16 %v3325
  %v3364 = vunpack.c.l.b16 %v3326
  %v3365 = vunpack.c.h.b16 %v3326
  %v3366 = vunpack.c.l.b16 %v3327
  %v3367 = vunpack.c.h.b16 %v3327
  %v3368 = vunpack.c.l.b16 %v3328
  %v3369 = vunpack.c.l.b16 %v3329
  %v3370 = vunpack.c.h.b16 %v3329
  %v3371 = vunpack.c.l.b16 %v3330
  %v3372 = vunpack.c.h.b16 %v3330
  %v3373 = vunpack.c.l.b16 %v3331
  %v3374 = vunpack.c.h.b16 %v3331
  %v3375 = vunpack.c.l.b16 %v3332
  %v3376 = vunpack.c.l.b16 %v3333
  %v3377 = vunpack.c.h.b16 %v3333
  %v3378 = vunpack.c.l.b16 %v3334
  %v3379 = vunpack.c.h.b16 %v3334
  %v3380 = vunpack.c.l.b16 %v3335
  %v3381 = vunpack.c.h.b16 %v3335
  %v3382 = vunpack.c.l.b16 %v3336
  %v3383 = vpack.c.b16 %v3362, %v3355
  %v3384 = vpack.c.b16 %v3363, %v3356
  %v3385 = vpack.c.b16 %v3364, %v3357
  %v3386 = vpack.c.b16 %v3365, %v3358
  %v3387 = vpack.c.b16 %v3366, %v3359
  %v3388 = vpack.c.b16 %v3367, %v3360
  %v3389 = vpack.c.b16 %v3368, %v3361
  %v3390 = vpack.c.b16 %v3376, %v3369
  %v3391 = vpack.c.b16 %v3377, %v3370
  %v3392 = vpack.c.b16 %v3378, %v3371
  %v3393 = vpack.c.b16 %v3379, %v3372
  %v3394 = vpack.c.b16 %v3380, %v3373
  %v3395 = vpack.c.b16 %v3381, %v3374
  %v3396 = vpack.c.b16 %v3382, %v3375
  %v3412 = vsel %vm92, %v3338, 0
  %3414 = vmatprep.subr.bf16.mxu0 %v3384
  %3415 = vmatpush1.bf16.msra.mxu0 %v3383
  %3416 = vmatprep.subr.bf16.mxu0 %v3391
  %3417 = vmatpush1.bf16.msra.mxu0 %v3390
  %3418 = vmatprep.subr.bf16.mxu0 0
  %3419 = vmatpush1.bf16.msra.mxu0 0
  %3420 = vmatprep.subr.bf16.mxu0 0
  %3421 = vmatpush1.bf16.msra.mxu0 0
  %3422 = vmatprep.subr.bf16.mxu0 0
  %3423 = vmatpush1.bf16.msra.mxu0 0
  %3424 = vmatprep.subr.bf16.mxu0 0
  %3425 = vmatpush1.bf16.msra.mxu0 0
  %3426 = vmatprep.subr.bf16.mxu0 0
  %3427 = vmatpush1.bf16.msra.mxu0 0
  %3428 = vmatprep.subr.bf16.mxu0 0
  %3429 = vmatpush1.bf16.msra.mxu0 0
  %3430 = vmatprep.subr.bf16.mxu0 0
  %3431 = vmatpush1.bf16.msra.mxu0 0
  %3432 = vmatprep.subr.bf16.mxu0 0
  %3433 = vmatpush1.bf16.msra.mxu0 0
  %3434 = vmatprep.subr.bf16.mxu0 0
  %3435 = vmatpush1.bf16.msra.mxu0 0
  %3436 = vmatprep.subr.bf16.mxu0 0
  %3437 = vmatpush1.bf16.msra.mxu0 0
  %3438 = vmatprep.subr.bf16.mxu0 0
  %3439 = vmatpush1.bf16.msra.mxu0 0
  %3440 = vmatprep.subr.bf16.mxu0 0
  %3441 = vmatpush1.bf16.msra.mxu0 0
  %3442 = vmatprep.subr.bf16.mxu0 0
  %3443 = vmatpush1.bf16.msra.mxu0 0
  %3444 = vmatprep.subr.bf16.mxu0 0
  %3445 = vmatpush1.bf16.msra.mxu0 0
  %3446 = vmatprep.mubr.bf16.mxu0 0
  %3447 = vmatmul.mubr.bf16.gmra.mrb[0].mxu0 %v3412
  %v3448 = vpop.f32.mrb[0].mxu0
  %v3449 = vadd.f32 0.0, %v3448
  %v3450 = vpop.f32.mrb[0].mxu0
  %v3451 = vadd.f32 0.0, %v3450
  %v3452 = vpop.f32.mrb[0].mxu0
  %v3453 = vpop.f32.mrb[0].mxu0
  %3454 = vdwg.mxu0
  %3455 = vmatprep.subr.bf16.mxu0 %v3386
  %3456 = vmatpush1.bf16.msra.mxu0 %v3385
  %3457 = vmatprep.subr.bf16.mxu0 %v3393
  %3458 = vmatpush1.bf16.msra.mxu0 %v3392
  %3459 = vmatprep.subr.bf16.mxu0 0
  %3460 = vmatpush1.bf16.msra.mxu0 0
  %3461 = vmatprep.subr.bf16.mxu0 0
  %3462 = vmatpush1.bf16.msra.mxu0 0
  %3463 = vmatprep.subr.bf16.mxu0 0
  %3464 = vmatpush1.bf16.msra.mxu0 0
  %3465 = vmatprep.subr.bf16.mxu0 0
  %3466 = vmatpush1.bf16.msra.mxu0 0
  %3467 = vmatprep.subr.bf16.mxu0 0
  %3468 = vmatpush1.bf16.msra.mxu0 0
  %3469 = vmatprep.subr.bf16.mxu0 0
  %3470 = vmatpush1.bf16.msra.mxu0 0
  %3471 = vmatprep.subr.bf16.mxu0 0
  %3472 = vmatpush1.bf16.msra.mxu0 0
  %3473 = vmatprep.subr.bf16.mxu0 0
  %3474 = vmatpush1.bf16.msra.mxu0 0
  %3475 = vmatprep.subr.bf16.mxu0 0
  %3476 = vmatpush1.bf16.msra.mxu0 0
  %3477 = vmatprep.subr.bf16.mxu0 0
  %3478 = vmatpush1.bf16.msra.mxu0 0
  %3479 = vmatprep.subr.bf16.mxu0 0
  %3480 = vmatpush1.bf16.msra.mxu0 0
  %3481 = vmatprep.subr.bf16.mxu0 0
  %3482 = vmatpush1.bf16.msra.mxu0 0
  %3483 = vmatprep.subr.bf16.mxu0 0
  %3484 = vmatpush1.bf16.msra.mxu0 0
  %3485 = vmatprep.subr.bf16.mxu0 0
  %3486 = vmatpush1.bf16.msra.mxu0 0
  %3487 = vmatprep.mubr.bf16.mxu0 0
  %3488 = vmatmul.mubr.bf16.gmra.mrb[0].mxu0 %v3412
  %v3489 = vpop.f32.mrb[0].mxu0
  %v3490 = vadd.f32 0.0, %v3489
  %v3491 = vpop.f32.mrb[0].mxu0
  %v3492 = vadd.f32 0.0, %v3491
  %v3493 = vpop.f32.mrb[0].mxu0
  %v3494 = vpop.f32.mrb[0].mxu0
  %3495 = vdwg.mxu0
  %3496 = vmatprep.subr.bf16.mxu0 %v3388
  %3497 = vmatpush1.bf16.msra.mxu0 %v3387
  %3498 = vmatprep.subr.bf16.mxu0 %v3395
  %3499 = vmatpush1.bf16.msra.mxu0 %v3394
  %3500 = vmatprep.subr.bf16.mxu0 0
  %3501 = vmatpush1.bf16.msra.mxu0 0
  %3502 = vmatprep.subr.bf16.mxu0 0
  %3503 = vmatpush1.bf16.msra.mxu0 0
  %3504 = vmatprep.subr.bf16.mxu0 0
  %3505 = vmatpush1.bf16.msra.mxu0 0
  %3506 = vmatprep.subr.bf16.mxu0 0
  %3507 = vmatpush1.bf16.msra.mxu0 0
  %3508 = vmatprep.subr.bf16.mxu0 0
  %3509 = vmatpush1.bf16.msra.mxu0 0
  %3510 = vmatprep.subr.bf16.mxu0 0
  %3511 = vmatpush1.bf16.msra.mxu0 0
  %3512 = vmatprep.subr.bf16.mxu0 0
  %3513 = vmatpush1.bf16.msra.mxu0 0
  %3514 = vmatprep.subr.bf16.mxu0 0
  %3515 = vmatpush1.bf16.msra.mxu0 0
  %3516 = vmatprep.subr.bf16.mxu0 0
  %3517 = vmatpush1.bf16.msra.mxu0 0
  %3518 = vmatprep.subr.bf16.mxu0 0
  %3519 = vmatpush1.bf16.msra.mxu0 0
  %3520 = vmatprep.subr.bf16.mxu0 0
  %3521 = vmatpush1.bf16.msra.mxu0 0
  %3522 = vmatprep.subr.bf16.mxu0 0
  %3523 = vmatpush1.bf16.msra.mxu0 0
  %3524 = vmatprep.subr.bf16.mxu0 0
  %3525 = vmatpush1.bf16.msra.mxu0 0
  %3526 = vmatprep.subr.bf16.mxu0 0
  %3527 = vmatpush1.bf16.msra.mxu0 0
  %3528 = vmatprep.mubr.bf16.mxu0 0
  %3529 = vmatmul.mubr.bf16.gmra.mrb[0].mxu0 %v3412
  %v3530 = vpop.f32.mrb[0].mxu0
  %v3531 = vadd.f32 0.0, %v3530
  %v3532 = vpop.f32.mrb[0].mxu0
  %v3533 = vadd.f32 0.0, %v3532
  %v3534 = vpop.f32.mrb[0].mxu0
  %v3535 = vpop.f32.mrb[0].mxu0
  %3536 = vdwg.mxu0
  %3537 = vmatprep.subr.bf16.mxu0 0
  %3538 = vmatpush1.bf16.msra.mxu0 %v3389
  %3539 = vmatprep.subr.bf16.mxu0 0
  %3540 = vmatpush1.bf16.msra.mxu0 %v3396
  %3541 = vmatprep.subr.bf16.mxu0 0
  %3542 = vmatpush1.bf16.msra.mxu0 0
  %3543 = vmatprep.subr.bf16.mxu0 0
  %3544 = vmatpush1.bf16.msra.mxu0 0
  %3545 = vmatprep.subr.bf16.mxu0 0
  %3546 = vmatpush1.bf16.msra.mxu0 0
  %3547 = vmatprep.subr.bf16.mxu0 0
  %3548 = vmatpush1.bf16.msra.mxu0 0
  %3549 = vmatprep.subr.bf16.mxu0 0
  %3550 = vmatpush1.bf16.msra.mxu0 0
  %3551 = vmatprep.subr.bf16.mxu0 0
  %3552 = vmatpush1.bf16.msra.mxu0 0
  %3553 = vmatprep.subr.bf16.mxu0 0
  %3554 = vmatpush1.bf16.msra.mxu0 0
  %3555 = vmatprep.subr.bf16.mxu0 0
  %3556 = vmatpush1.bf16.msra.mxu0 0
  %3557 = vmatprep.subr.bf16.mxu0 0
  %3558 = vmatpush1.bf16.msra.mxu0 0
  %3559 = vmatprep.subr.bf16.mxu0 0
  %3560 = vmatpush1.bf16.msra.mxu0 0
  %3561 = vmatprep.subr.bf16.mxu0 0
  %3562 = vmatpush1.bf16.msra.mxu0 0
  %3563 = vmatprep.subr.bf16.mxu0 0
  %3564 = vmatpush1.bf16.msra.mxu0 0
  %3565 = vmatprep.subr.bf16.mxu0 0
  %3566 = vmatpush1.bf16.msra.mxu0 0
  %3567 = vmatprep.subr.bf16.mxu0 0
  %3568 = vmatpush1.bf16.msra.mxu0 0
  %3569 = vmatprep.mubr.bf16.mxu0 0
  %3570 = vmatmul.mubr.bf16.gmra.mrb[0].mxu0 %v3412
  %v3571 = vpop.f32.mrb[0].mxu0
  %v3572 = vadd.f32 0.0, %v3571
  %v3573 = vpop.f32.mrb[0].mxu0
  %v3574 = vpop.f32.mrb[0].mxu0
  %v3575 = vpop.f32.mrb[0].mxu0
  %3576 = vdwg.mxu0
  %v3577 = vlaneseq
  %v3578 = vshrl.u32 %v3577, 7
  %v3579 = vsub.s32 0, %v3578
  %v3580 = vrot.slane %v3531, %v3579
  %v3581 = vlaneseq
  %v3582 = vshrl.u32 %v3581, 7
  %v3583 = vsub.s32 0, %v3582
  %v3584 = vrot.slane %v3533, %v3583
  %v3585 = vlaneseq
  %v3586 = vshrl.u32 %v3585, 7
  %v3587 = vsub.s32 0, %v3586
  %v3588 = vrot.slane %v3572, %v3587
  %v3589 = vadd.f32 %v418, %v3580
  %v3590 = vadd.f32 %v420, %v3584
  %v3591 = vadd.f32 %v494, %v3588
  %v3592 = vxor.u32 %v3589, 2147483648
  %v3593 = vxor.u32 %v3590, 2147483648
  %v3594 = vmul.f32 %v3592, 1.442695
  %v3595 = vpow.pop %v3594
  %v3596 = vmul.f32 %v3593, 1.442695
  %v3597 = vpow.pop %v3596
  %v3598 = vadd.f32 %v3595, 1.0
  %v3599 = vadd.f32 %v3597, 1.0
  %v3600 = vrcp.pop %v3598
  %v3601 = vmul.f32 1.0, %v3600
  %v3602 = vrcp.pop %v3599
  %v3603 = vmul.f32 1.0, %v3602
  %v3604 = vtanh.pop %v3591
  %v3605 = vlaneseq
  %v3606 = vshrl.u32 %v3605, 7
  %v3607 = vsub.s32 6, %v3606
  %v3608 = vrot.slane %v3315, %v3607
  %v3609 = vmul.f32 %v3603, %v3608
  %v3610 = vmul.f32 %v3601, %v3604
  %v3611 = vadd.f32 %v3609, %v3610
  %s3612 = sld [smem:[#allocation5 + $0xc]]
  %s3613 = scalar_lea.vmem [#allocation2], %s3612
  %3614 = vst [vmem:[%s3613 - $0x4] sm:$0x10] %v3611
  %s3615 = sld [smem:[#allocation5 + $0xd]]
  %s3616 = scalar_lea.vmem [#allocation2], %s3615
  %3617 = vst [vmem:[%s3616 - $0x5] sm:$0x20] %v3611
  %v3622 = vrot.slane %v3449, 1
  %v3623 = vrot.slane %v3451, 1
  %v3624 = vrot.slane %v3490, 1
  %v3625 = vrot.slane %v3492, 1
  %v3630 = vadd.f32 %v163, %v3622
  %v3631 = vadd.f32 %v165, %v3623
  %v3632 = vadd.f32 %v234, %v3624
  %v3633 = vadd.f32 %v236, %v3625
  %v3634 = vxor.u32 %v3630, 2147483648
  %v3635 = vxor.u32 %v3631, 2147483648
  %v3636 = vxor.u32 %v3632, 2147483648
  %v3637 = vmul.f32 %v3634, 1.442695
  %v3638 = vpow.pop %v3637
  %v3639 = vmul.f32 %v3635, 1.442695
  %v3640 = vpow.pop %v3639
  %v3641 = vmul.f32 %v3636, 1.442695
  %v3642 = vpow.pop %v3641
  %v3643 = vadd.f32 %v3638, 1.0
  %v3644 = vadd.f32 %v3640, 1.0
  %v3645 = vadd.f32 %v3642, 1.0
  %v3646 = vrcp.pop %v3643
  %v3647 = vmul.f32 1.0, %v3646
  %v3648 = vrcp.pop %v3644
  %v3649 = vmul.f32 1.0, %v3648
  %v3650 = vrcp.pop %v3645
  %v3651 = vmul.f32 1.0, %v3650
  %v3652 = vtanh.pop %v3633
  %s3653 = sld [smem:[#allocation4 + $0x7]]
  %v3654 = vld [vmem:[#allocation2 + $0x38] sm:$0xff]
  %v3655 = vpack.c.bf16 %v3654, %v3654
  %v3656 = vld [vmem:[%s9] sm:$0xf]
  %v3657 = vld [vmem:[%s9 + $0x4] sm:$0xf]
  %v3658 = vld [vmem:[%s9 + $0x8] sm:$0xf]
  %v3659 = vld [vmem:[%s9 + $0xc] sm:$0xf]
  %v3664 = vunpack.c.l.b16 %v3656
  %v3665 = vunpack.c.l.b16 %v3657
  %v3666 = vunpack.c.l.b16 %v3658
  %v3667 = vunpack.c.l.b16 %v3659
  %v3668 = vpack.c.b16 %v3665, %v3664
  %v3669 = vpack.c.b16 %v3667, %v3666
  %v3673 = vsel %vm92, %v3655, 0
  %3675 = vmatprep.subr.bf16.mxu0 0
  %3676 = vmatpush1.bf16.msra.mxu0 %v3668
  %3677 = vmatprep.subr.bf16.mxu0 0
  %3678 = vmatpush1.bf16.msra.mxu0 %v3669
  %3679 = vmatprep.subr.bf16.mxu0 0
  %3680 = vmatpush1.bf16.msra.mxu0 0
  %3681 = vmatprep.subr.bf16.mxu0 0
  %3682 = vmatpush1.bf16.msra.mxu0 0
  %3683 = vmatprep.subr.bf16.mxu0 0
  %3684 = vmatpush1.bf16.msra.mxu0 0
  %3685 = vmatprep.subr.bf16.mxu0 0
  %3686 = vmatpush1.bf16.msra.mxu0 0
  %3687 = vmatprep.subr.bf16.mxu0 0
  %3688 = vmatpush1.bf16.msra.mxu0 0
  %3689 = vmatprep.subr.bf16.mxu0 0
  %3690 = vmatpush1.bf16.msra.mxu0 0
  %3691 = vmatprep.subr.bf16.mxu0 0
  %3692 = vmatpush1.bf16.msra.mxu0 0
  %3693 = vmatprep.subr.bf16.mxu0 0
  %3694 = vmatpush1.bf16.msra.mxu0 0
  %3695 = vmatprep.subr.bf16.mxu0 0
  %3696 = vmatpush1.bf16.msra.mxu0 0
  %3697 = vmatprep.subr.bf16.mxu0 0
  %3698 = vmatpush1.bf16.msra.mxu0 0
  %3699 = vmatprep.subr.bf16.mxu0 0
  %3700 = vmatpush1.bf16.msra.mxu0 0
  %3701 = vmatprep.subr.bf16.mxu0 0
  %3702 = vmatpush1.bf16.msra.mxu0 0
  %3703 = vmatprep.subr.bf16.mxu0 0
  %3704 = vmatpush1.bf16.msra.mxu0 0
  %3705 = vmatprep.subr.bf16.mxu0 0
  %3706 = vmatpush1.bf16.msra.mxu0 0
  %3707 = vmatprep.mubr.bf16.mxu0 0
  %3708 = vmatmul.mubr.bf16.gmra.mrb[0].mxu0 %v3673
  %v3709 = vpop.f32.mrb[0].mxu0
  %v3710 = vadd.f32 0.0, %v3709
  %v3711 = vpop.f32.mrb[0].mxu0
  %v3712 = vpop.f32.mrb[0].mxu0
  %v3713 = vpop.f32.mrb[0].mxu0
  %3714 = vdwg.mxu0
  %v3715 = vlaneseq
  %v3716 = vshrl.u32 %v3715, 7
  %v3717 = vsub.s32 7, %v3716
  %v3718 = vrot.slane %v305, %v3717
  %v3719 = vadd.f32 %v3718, %v3710
  %v3720 = vxor.u32 %v3719, 2147483648
  %v3721 = vmul.f32 %v3720, 1.442695
  %v3722 = vpow.pop %v3721
  %v3723 = vadd.f32 %v3722, 1.0
  %v3724 = vrcp.pop %v3723
  %v3725 = vmul.f32 1.0, %v3724
  %v3726 = vstv %s3653
  %vm3727 = vcmp.lt.s32.totalorder %v507, %v3726
  %v3728 = vmul.f32 %v3725, 1.442695
  %v3729 = vpow.pop %v3728
  %v3730 = vsel %vm3727, %v3729, 0.0
  %v3731 = vmul.f32 %v3647, 1.442695
  %v3732 = vpow.pop %v3731
  %v3733 = vrot.slane %v3730, 4
  %v3734 = vadd.f32 %v3730, %v3733
  %v3735 = vrot.slane %v3734, 2
  %v3736 = vadd.f32 %v3734, %v3735
  %v3737 = vrot.slane %v3736, 1
  %v3738 = vadd.f32 %v3736, %v3737
  %v3739 = vadd.f32 %v3732, %v3738
  %v3740 = vmul.f32 %v3732, %v3652
  %v3741 = vmul.f32 %v3730, %v3654
  %v3742 = vrot.slane %v3741, 4
  %v3743 = vadd.f32 %v3741, %v3742
  %v3744 = vrot.slane %v3743, 2
  %v3745 = vadd.f32 %v3743, %v3744
  %v3746 = vrot.slane %v3745, 1
  %v3747 = vadd.f32 %v3745, %v3746
  %v3748 = vadd.f32 %v3740, %v3747
  %v3749 = vrcp.pop %v3739
  %v3750 = vmul.f32 %v3748, %v3749
  %v3752 = vrot.slane %v3315, 7
  %v3754 = vmul.f32 %v3649, %v3752
  %v3755 = vmul.f32 %v3647, %v3652
  %v3756 = vadd.f32 %v3754, %v3755
  %p3757 = scmp.gt.s32.totalorder %s3653, 0
  %s3758 = scalar_select %p3757, 1, 0
  %v3759 = vstv %s3758
  %vm3760 = vcmp.eq.s32.totalorder %v3759, 1
  %v3761 = vsel %vm3760, %v3750, %v3756
  %v3762 = vtanh.pop %v3761
  %v3763 = vmul.f32 %v3651, %v3762
  %3764 = vst [vmem:[%s10] sm:$0x80] %v3763
  %3765 = vst [vmem:[%s11] sm:$0x80] %v3761
  %v3766 = vpack.c.bf16 %v3763, %v3763
  %v3767 = vld [vmem:[%s8 + $0x10] sm:$0xff]
  %v3768 = vld [vmem:[%s8 + $0x18] sm:$0xf]
  %v3769 = vld [vmem:[%s8 + $0x2c] sm:$0xff]
  %v3770 = vld [vmem:[%s8 + $0x34] sm:$0xf]
  %v3771 = vld [vmem:[%s8 + $0x48] sm:$0xff]
  %v3772 = vld [vmem:[%s8 + $0x50] sm:$0xf]
  %v3773 = vld [vmem:[%s8 + $0x64] sm:$0xff]
  %v3774 = vld [vmem:[%s8 + $0x6c] sm:$0xf]
  %v3776 = vshrl.u32 %v3766, 16
  %v3778 = vrot.slane %v3776, 3
  %v3787 = vunpack.c.l.b16 %v3767
  %v3788 = vunpack.c.h.b16 %v3767
  %v3789 = vunpack.c.l.b16 %v3768
  %v3790 = vunpack.c.l.b16 %v3769
  %v3791 = vunpack.c.h.b16 %v3769
  %v3792 = vunpack.c.l.b16 %v3770
  %v3793 = vunpack.c.l.b16 %v3771
  %v3794 = vunpack.c.h.b16 %v3771
  %v3795 = vunpack.c.l.b16 %v3772
  %v3796 = vunpack.c.l.b16 %v3773
  %v3797 = vunpack.c.h.b16 %v3773
  %v3798 = vunpack.c.l.b16 %v3774
  %v3799 = vpack.c.b16 %v3790, %v3787
  %v3800 = vpack.c.b16 %v3791, %v3788
  %v3801 = vpack.c.b16 %v3792, %v3789
  %v3802 = vpack.c.b16 %v3796, %v3793
  %v3803 = vpack.c.b16 %v3797, %v3794
  %v3804 = vpack.c.b16 %v3798, %v3795
  %v3812 = vsel %vm92, %v3778, 0
  %3814 = vmatprep.subr.bf16.mxu0 %v3800
  %3815 = vmatpush1.bf16.msra.mxu0 %v3799
  %3816 = vmatprep.subr.bf16.mxu0 %v3803
  %3817 = vmatpush1.bf16.msra.mxu0 %v3802
  %3818 = vmatprep.subr.bf16.mxu0 0
  %3819 = vmatpush1.bf16.msra.mxu0 0
  %3820 = vmatprep.subr.bf16.mxu0 0
  %3821 = vmatpush1.bf16.msra.mxu0 0
  %3822 = vmatprep.subr.bf16.mxu0 0
  %3823 = vmatpush1.bf16.msra.mxu0 0
  %3824 = vmatprep.subr.bf16.mxu0 0
  %3825 = vmatpush1.bf16.msra.mxu0 0
  %3826 = vmatprep.subr.bf16.mxu0 0
  %3827 = vmatpush1.bf16.msra.mxu0 0
  %3828 = vmatprep.subr.bf16.mxu0 0
  %3829 = vmatpush1.bf16.msra.mxu0 0
  %3830 = vmatprep.subr.bf16.mxu0 0
  %3831 = vmatpush1.bf16.msra.mxu0 0
  %3832 = vmatprep.subr.bf16.mxu0 0
  %3833 = vmatpush1.bf16.msra.mxu0 0
  %3834 = vmatprep.subr.bf16.mxu0 0
  %3835 = vmatpush1.bf16.msra.mxu0 0
  %3836 = vmatprep.subr.bf16.mxu0 0
  %3837 = vmatpush1.bf16.msra.mxu0 0
  %3838 = vmatprep.subr.bf16.mxu0 0
  %3839 = vmatpush1.bf16.msra.mxu0 0
  %3840 = vmatprep.subr.bf16.mxu0 0
  %3841 = vmatpush1.bf16.msra.mxu0 0
  %3842 = vmatprep.subr.bf16.mxu0 0
  %3843 = vmatpush1.bf16.msra.mxu0 0
  %3844 = vmatprep.subr.bf16.mxu0 0
  %3845 = vmatpush1.bf16.msra.mxu0 0
  %3846 = vmatprep.mubr.bf16.mxu0 0
  %3847 = vmatmul.mubr.bf16.gmra.mrb[0].mxu0 %v3812
  %v3848 = vpop.f32.mrb[0].mxu0
  %v3849 = vadd.f32 0.0, %v3848
  %v3850 = vpop.f32.mrb[0].mxu0
  %v3851 = vadd.f32 0.0, %v3850
  %v3852 = vpop.f32.mrb[0].mxu0
  %v3853 = vpop.f32.mrb[0].mxu0
  %3854 = vdwg.mxu0
  %3855 = vmatprep.subr.bf16.mxu0 0
  %3856 = vmatpush1.bf16.msra.mxu0 %v3801
  %3857 = vmatprep.subr.bf16.mxu0 0
  %3858 = vmatpush1.bf16.msra.mxu0 %v3804
  %3859 = vmatprep.subr.bf16.mxu0 0
  %3860 = vmatpush1.bf16.msra.mxu0 0
  %3861 = vmatprep.subr.bf16.mxu0 0
  %3862 = vmatpush1.bf16.msra.mxu0 0
  %3863 = vmatprep.subr.bf16.mxu0 0
  %3864 = vmatpush1.bf16.msra.mxu0 0
  %3865 = vmatprep.subr.bf16.mxu0 0
  %3866 = vmatpush1.bf16.msra.mxu0 0
  %3867 = vmatprep.subr.bf16.mxu0 0
  %3868 = vmatpush1.bf16.msra.mxu0 0
  %3869 = vmatprep.subr.bf16.mxu0 0
  %3870 = vmatpush1.bf16.msra.mxu0 0
  %3871 = vmatprep.subr.bf16.mxu0 0
  %3872 = vmatpush1.bf16.msra.mxu0 0
  %3873 = vmatprep.subr.bf16.mxu0 0
  %3874 = vmatpush1.bf16.msra.mxu0 0
  %3875 = vmatprep.subr.bf16.mxu0 0
  %3876 = vmatpush1.bf16.msra.mxu0 0
  %3877 = vmatprep.subr.bf16.mxu0 0
  %3878 = vmatpush1.bf16.msra.mxu0 0
  %3879 = vmatprep.subr.bf16.mxu0 0
  %3880 = vmatpush1.bf16.msra.mxu0 0
  %3881 = vmatprep.subr.bf16.mxu0 0
  %3882 = vmatpush1.bf16.msra.mxu0 0
  %3883 = vmatprep.subr.bf16.mxu0 0
  %3884 = vmatpush1.bf16.msra.mxu0 0
  %3885 = vmatprep.subr.bf16.mxu0 0
  %3886 = vmatpush1.bf16.msra.mxu0 0
  %3887 = vmatprep.mubr.bf16.mxu0 0
  %3888 = vmatmul.mubr.bf16.gmra.mrb[0].mxu0 %v3812
  %v3889 = vpop.f32.mrb[0].mxu0
  %v3890 = vadd.f32 0.0, %v3889
  %v3891 = vpop.f32.mrb[0].mxu0
  %v3892 = vpop.f32.mrb[0].mxu0
  %v3893 = vpop.f32.mrb[0].mxu0
  %3894 = vdwg.mxu0
  %v3895 = vlaneseq
  %v3896 = vshrl.u32 %v3895, 7
  %v3897 = vsub.s32 0, %v3896
  %v3898 = vrot.slane %v3849, %v3897
  %v3899 = vlaneseq
  %v3900 = vshrl.u32 %v3899, 7
  %v3901 = vsub.s32 0, %v3900
  %v3902 = vrot.slane %v3851, %v3901
  %v3903 = vlaneseq
  %v3904 = vshrl.u32 %v3903, 7
  %v3905 = vsub.s32 0, %v3904
  %v3906 = vrot.slane %v3890, %v3905
  %v3907 = vadd.f32 %v418, %v3898
  %v3908 = vadd.f32 %v420, %v3902
  %v3909 = vadd.f32 %v494, %v3906
  %v3910 = vxor.u32 %v3907, 2147483648
  %v3911 = vxor.u32 %v3908, 2147483648
  %v3912 = vmul.f32 %v3910, 1.442695
  %v3913 = vpow.pop %v3912
  %v3914 = vmul.f32 %v3911, 1.442695
  %v3915 = vpow.pop %v3914
  %v3916 = vadd.f32 %v3913, 1.0
  %v3917 = vadd.f32 %v3915, 1.0
  %v3918 = vrcp.pop %v3916
  %v3919 = vmul.f32 1.0, %v3918
  %v3920 = vrcp.pop %v3917
  %v3921 = vmul.f32 1.0, %v3920
  %v3922 = vtanh.pop %v3909
  %v3923 = vlaneseq
  %v3924 = vshrl.u32 %v3923, 7
  %v3925 = vsub.s32 7, %v3924
  %v3926 = vrot.slane %v3761, %v3925
  %v3927 = vmul.f32 %v3921, %v3926
  %v3928 = vmul.f32 %v3919, %v3922
  %v3929 = vadd.f32 %v3927, %v3928
  %s3930 = sld [smem:[#allocation5 + $0xe]]
  %s3931 = scalar_lea.vmem [#allocation2], %s3930
  %3932 = vst [vmem:[%s3931 - $0x6] sm:$0x40] %v3929
  %s3933 = sld [smem:[#allocation5 + $0xf]]
  %s3934 = scalar_lea.vmem [#allocation2], %s3933
  %3935 = vst [vmem:[%s3934 - $0x7] sm:$0x80] %v3929
  // Predicated region
  $region34: #{_device_forward.1} parent=0 // pred_check
    _
  $region35: #{_device_forward.1} parent=0 // pred_check_branch
    %3937 = sbr.rel (0) target = $region37
  $region36: #{_device_forward.1} parent=0 // pred_region
    _
  $region37: #{_device_forward.1} parent=0 // pred_fallthru
    _
  // Predicated region
  $region38: #{_device_forward.1} parent=0 // pred_check
    _
  $region39: #{_device_forward.1} parent=0 // pred_check_branch
    %3939 = sbr.rel (0) target = $region41
  $region40: #{_device_forward.1} parent=0 // pred_region
    _
  $region41: #{_device_forward.1} parent=0 // pred_fallthru
    _
  // Predicated region
  $region42: #{_device_forward.1} parent=0 // pred_check
    _
  $region43: #{_device_forward.1} parent=0 // pred_check_branch
    %3941 = sbr.rel (0) target = $region45
  $region44: #{_device_forward.1} parent=0 // pred_region
    _
  $region45: #{_device_forward.1} parent=0 // pred_fallthru
    _
  // Predicated region
  $region46: #{_device_forward.1} parent=0 // pred_check
    _
  $region47: #{_device_forward.1} parent=0 // pred_check_branch
    %3943 = sbr.rel (0) target = $region49
  $region48: #{_device_forward.1} parent=0 // pred_region
    _
  $region49: #{_device_forward.1} parent=0 // pred_fallthru
    _

</llo_original>
